<compile_context>
chip_gen: v7x
topology: tpu7x:2x2x1
jax: 0.10.0
libtpu: 0.0.40
codegen_flags: <defaults>
</compile_context>

<pallas_src>
import math
import functools

import numpy as np
import jax
import jax.numpy as jnp
from jax import lax
from jax.experimental import pallas as pl
from jax.experimental.pallas import tpu as pltpu


# ----------------------------- Pallas kernels ------------------------------

def _pe_kernel(x_ref, pe_ref, o_ref, *, scale):
    # x * sqrt(d_model) + pe[:S]   (single block, whole [B,S,D] slab)
    o_ref[...] = (x_ref[...].astype(jnp.float32) * scale
                  + pe_ref[...][None]).astype(o_ref.dtype)


def _norm_kernel(x_ref, a_ref, b_ref, o_ref, *, eps):
    # alpha * (x - mean) / (std + eps) + bias, torch-style UNBIASED std (n-1)
    x = x_ref[...].astype(jnp.float32)
    d = x.shape[-1]
    mean = jnp.mean(x, axis=-1, keepdims=True)
    xc = x - mean
    var = jnp.sum(xc * xc, axis=-1, keepdims=True) * (1.0 / (d - 1))
    o_ref[...] = (a_ref[...] * xc / (jnp.sqrt(var) + eps)
                  + b_ref[...]).astype(o_ref.dtype)


def _attn_sublayer_kernel(x_ref, m_ref, na_ref, nb_ref, wqkv_ref, bqkv_ref,
                          wo_ref, bo_ref, o_ref, *, heads, d_k, scale, eps):
    # Fused: x + MultiHeadAttention(NormLayer(x))   for one batch element.
    x = x_ref[0].astype(jnp.float32)                       # [S, D]
    S = x.shape[0]
    D = heads * d_k

    # ---- LayerNorm (unbiased std + eps, matches torch reference) ----
    mean = jnp.mean(x, axis=-1, keepdims=True)
    xc = x - mean
    var = jnp.sum(xc * xc, axis=-1, keepdims=True) * (1.0 / (D - 1))
    x2 = na_ref[...] * xc / (jnp.sqrt(var) + eps) + nb_ref[...]     # [S, D]

    # ---- fused Q|K|V projection: one [S,D] x [D,3D] MXU matmul ----
    qkv = (jnp.dot(x2, wqkv_ref[...], preferred_element_type=jnp.float32)
           + bqkv_ref[...])                                          # [S, 3D]

    mask = m_ref[0]                                                  # [1, S]
    wo = wo_ref[...].astype(jnp.float32)                             # [D, D]

    # Per-head attention (heads is small & static -> unrolled), output
    # projection folded in:  concat @ Wo == sum_h (attn_h @ Wo[h*dk:(h+1)*dk]).
    acc = jnp.zeros((S, D), jnp.float32)
    for h in range(heads):
        lo = h * d_k
        qh = qkv[:, lo:lo + d_k]                                     # [S, dk]
        kh = qkv[:, D + lo:D + lo + d_k]                             # [S, dk]
        vh = qkv[:, 2 * D + lo:2 * D + lo + d_k]                     # [S, dk]

        # contract last dims of q and k (no materialized transpose)
        s = lax.dot_general(qh, kh, (((1,), (1,)), ((), ())),
                            preferred_element_type=jnp.float32) * scale  # [S,S]
        s = jnp.where(mask == 0, -1e9, s)
        s = s - jnp.max(s, axis=-1, keepdims=True)
        e = jnp.exp(s)
        p = e * pl.reciprocal(jnp.sum(e, axis=-1, keepdims=True), approx=True)

        oh = jnp.dot(p, vh, preferred_element_type=jnp.float32)          # [S, dk]
        acc = acc + jnp.dot(oh, wo[lo:lo + d_k, :],
                            preferred_element_type=jnp.float32)          # [S, D]

    out = acc + bo_ref[...]
    o_ref[0] = (x + out).astype(o_ref.dtype)        # residual (dropout = identity)


def _ffn_sublayer_kernel(x_ref, na_ref, nb_ref, w1_ref, b1_ref, w2_ref, b2_ref,
                         o_ref, *, eps):
    # Fused: x + FeedForward(NormLayer(x))   on a [TM, D] row tile.
    x = x_ref[...].astype(jnp.float32)                               # [TM, D]
    d = x.shape[-1]
    mean = jnp.mean(x, axis=-1, keepdims=True)
    xc = x - mean
    var = jnp.sum(xc * xc, axis=-1, keepdims=True) * (1.0 / (d - 1))
    x2 = na_ref[...] * xc / (jnp.sqrt(var) + eps) + nb_ref[...]      # [TM, D]

    h = jnp.dot(x2, w1_ref[...], preferred_element_type=jnp.float32) + b1_ref[...]
    h = jnp.maximum(h, 0.0)                                          # relu (dropout = identity)
    y = jnp.dot(h, w2_ref[...], preferred_element_type=jnp.float32) + b2_ref[...]
    o_ref[...] = (x + y).astype(o_ref.dtype)                         # residual


# ------------------------------ wrappers ------------------------------------

def positional_encode(x3d, pe_table, d_model):
    B, S, D = x3d.shape
    kern = functools.partial(_pe_kernel, scale=math.sqrt(d_model))
    return pl.pallas_call(
        kern,
        out_shape=jax.ShapeDtypeStruct((B, S, D), x3d.dtype),
    )(x3d, pe_table)


def norm_layer(x3d, alpha, bias, eps=1e-6):
    B, S, D = x3d.shape
    x2d = x3d.reshape(B * S, D)
    kern = functools.partial(_norm_kernel, eps=eps)
    out = pl.pallas_call(
        kern,
        out_shape=jax.ShapeDtypeStruct((B * S, D), x3d.dtype),
    )(x2d, alpha.reshape(1, D), bias.reshape(1, D))
    return out.reshape(B, S, D)


def attn_sublayer(x, mask, na, nb, wqkv, bqkv, wo, bo, heads, eps=1e-6):
    # x: [B, S, D], mask: [B, 1, S] -> returns x + MHA(Norm(x))
    B, S, D = x.shape
    d_k = D // heads
    kern = functools.partial(_attn_sublayer_kernel, heads=heads, d_k=d_k,
                             scale=1.0 / math.sqrt(d_k), eps=eps)
    return pl.pallas_call(
        kern,
        out_shape=jax.ShapeDtypeStruct((B, S, D), x.dtype),
        grid=(B,),
        in_specs=[
            pl.BlockSpec((1, S, D), lambda b: (b, 0, 0)),     # x (one batch)
            pl.BlockSpec((1, 1, S), lambda b: (b, 0, 0)),     # mask (no H dup)
            pl.BlockSpec((1, D), lambda b: (0, 0)),           # norm alpha (resident)
            pl.BlockSpec((1, D), lambda b: (0, 0)),           # norm bias
            pl.BlockSpec((D, 3 * D), lambda b: (0, 0)),       # fused Wq|Wk|Wv
            pl.BlockSpec((1, 3 * D), lambda b: (0, 0)),       # fused bq|bk|bv
            pl.BlockSpec((D, D), lambda b: (0, 0)),           # Wo
            pl.BlockSpec((1, D), lambda b: (0, 0)),           # bo
        ],
        out_specs=pl.BlockSpec((1, S, D), lambda b: (b, 0, 0)),
        compiler_params=pltpu.CompilerParams(
            dimension_semantics=("parallel",)),
    )(x, mask, na.reshape(1, D), nb.reshape(1, D),
      wqkv, bqkv.reshape(1, 3 * D), wo, bo.reshape(1, D))


def _pick_row_tile(m, cap=512):
    if m <= cap:
        return m
    for tm in (512, 256, 128):
        if m % tm == 0:
            return tm
    return m  # fallback: single block


def ffn_sublayer(x, na, nb, w1, b1, w2, b2, eps=1e-6):
    # x: [B, S, D] -> returns x + FFN(Norm(x)); row-tiled over B*S, weights resident.
    B, S, D = x.shape
    M = B * S
    d_ff = w1.shape[1]
    TM = _pick_row_tile(M)
    x2d = x.reshape(M, D)
    kern = functools.partial(_ffn_sublayer_kernel, eps=eps)
    out = pl.pallas_call(
        kern,
        out_shape=jax.ShapeDtypeStruct((M, D), x.dtype),
        grid=(M // TM,),
        in_specs=[
            pl.BlockSpec((TM, D), lambda i: (i, 0)),          # x rows
            pl.BlockSpec((1, D), lambda i: (0, 0)),           # norm alpha
            pl.BlockSpec((1, D), lambda i: (0, 0)),           # norm bias
            pl.BlockSpec((D, d_ff), lambda i: (0, 0)),        # W1 (resident)
            pl.BlockSpec((1, d_ff), lambda i: (0, 0)),        # b1
            pl.BlockSpec((d_ff, D), lambda i: (0, 0)),        # W2 (resident)
            pl.BlockSpec((1, D), lambda i: (0, 0)),           # b2
        ],
        out_specs=pl.BlockSpec((TM, D), lambda i: (i, 0)),
        compiler_params=pltpu.CompilerParams(
            dimension_semantics=("parallel",)),
    )(x2d, na.reshape(1, D), nb.reshape(1, D),
      w1, b1.reshape(1, d_ff), w2, b2.reshape(1, D))
    return out.reshape(B, S, D)


# --------------------------- model construction -----------------------------

def make_pe_table(max_seq_len, d_model):
    # faithful reproduction of the PyTorch PositionalEncoder init
    pe = np.zeros((max_seq_len, d_model), dtype=np.float32)
    for pos in range(max_seq_len):
        for i in range(0, d_model, 2):
            pe[pos, i] = math.sin(pos / 10000 ** (2 * i / d_model))
            pe[pos, i + 1] = math.cos(pos / 10000 ** (2 * (i + 1) / d_model))
    return jnp.asarray(pe)


def init_params(key, vocab_size, d_model, N, heads, d_ff=2048):
    def dense(k, fan_in, fan_out):
        w = jax.random.normal(k, (fan_in, fan_out), jnp.float32) / math.sqrt(fan_in)
        b = jnp.zeros((fan_out,), jnp.float32)
        return w, b

    keys = jax.random.split(key, 1 + N)
    params = {
        "embed": jax.random.normal(keys[0], (vocab_size, d_model), jnp.float32),
        "pe": make_pe_table(80, d_model),
        "layers": [],
        "norm_a": jnp.ones((d_model,), jnp.float32),
        "norm_b": jnp.zeros((d_model,), jnp.float32),
    }
    for n in range(N):
        lk = jax.random.split(keys[1 + n], 6)
        wq, bq = dense(lk[0], d_model, d_model)
        wk, bk = dense(lk[1], d_model, d_model)
        wv, bv = dense(lk[2], d_model, d_model)
        wo, bo = dense(lk[3], d_model, d_model)
        w1, b1 = dense(lk[4], d_model, d_ff)
        w2, b2 = dense(lk[5], d_ff, d_model)
        params["layers"].append(dict(
            norm1_a=jnp.ones((d_model,), jnp.float32),
            norm1_b=jnp.zeros((d_model,), jnp.float32),
            norm2_a=jnp.ones((d_model,), jnp.float32),
            norm2_b=jnp.zeros((d_model,), jnp.float32),
            # fused QKV weights: one [D, 3D] matmul instead of three [D, D]
            wqkv=jnp.concatenate([wq, wk, wv], axis=1),
            bqkv=jnp.concatenate([bq, bk, bv], axis=0),
            wo=wo, bo=bo, w1=w1, b1=b1, w2=w2, b2=b2,
        ))
    return params


def encoder_layer_forward(x, mask, p, heads):
    # self-attention sublayer: one fused kernel (norm + QKV + attn + out-proj + residual)
    x = attn_sublayer(x, mask, p["norm1_a"], p["norm1_b"],
                      p["wqkv"], p["bqkv"], p["wo"], p["bo"], heads)
    # feed-forward sublayer: one fused kernel (norm + FFN + residual)
    x = ffn_sublayer(x, p["norm2_a"], p["norm2_b"],
                     p["w1"], p["b1"], p["w2"], p["b2"])
    return x


def encoder_forward(params, src, mask, heads):
    B, S = src.shape
    d_model = params["embed"].shape[1]
    # TODO(synk): embedding gather stays in plain JAX glue (data-dependent gather).
    x = jnp.take(params["embed"], src, axis=0)                   # [B, S, D]
    x = positional_encode(x, params["pe"][:S], d_model)
    for p in params["layers"]:
        x = encoder_layer_forward(x, mask, p, heads)
    return norm_layer(x, params["norm_a"], params["norm_b"])


# --------------------------------- main --------------------------------------

if __name__ == "__main__":
    vocab_size, d_model, N, heads, dropout = 50, 32, 2, 4, 0.1
    B, S = 2, 8

    key = jax.random.PRNGKey(0)
    k_params, k_src = jax.random.split(key)

    params = init_params(k_params, vocab_size, d_model, N, heads, d_ff=2048)
    src = jax.random.randint(k_src, (B, S), 0, vocab_size, dtype=jnp.int32)

    # source mask [B, 1, S]: last two positions of batch 1 are padding
    mask = jnp.ones((B, 1, S), jnp.int32)
    mask = mask.at[1, 0, S - 2:].set(0)

    fwd = jax.jit(functools.partial(encoder_forward, heads=heads))
    out = fwd(params, src, mask)
    jax.block_until_ready(out)
    assert out.shape == (B, S, d_model)
    assert bool(jnp.all(jnp.isfinite(out)))
    print("KERNEL_OK")
</pallas_src>

<mosaic_0001>
module attributes {stable_mosaic.version = 11 : i64} {
  func.func @_pe_kernel(%arg0: memref<2x8x32xf32, #tpu.memory_space<vmem>>, %arg1: memref<8x32xf32, #tpu.memory_space<vmem>>, %arg2: memref<2x8x32xf32, #tpu.memory_space<vmem>>) attributes {dimension_semantics = [], scalar_prefetch = 0 : i64, scratch_operands = 0 : i64, tpu.core_type = #tpu.core_type<tc>} {
    %c0 = arith.constant 0 : index
    %c0_0 = arith.constant 0 : index
    %c0_1 = arith.constant 0 : index
    %0 = vector.load %arg0[%c0, %c0_0, %c0_1] : memref<2x8x32xf32, #tpu.memory_space<vmem>>, vector<2x8x32xf32>
    %cst = arith.constant 5.65685415 : f32
    %1 = vector.broadcast %cst : f32 to vector<2x8x32xf32>
    %2 = arith.mulf %0, %1 : vector<2x8x32xf32>
    %c0_2 = arith.constant 0 : index
    %c0_3 = arith.constant 0 : index
    %3 = vector.load %arg1[%c0_2, %c0_3] : memref<8x32xf32, #tpu.memory_space<vmem>>, vector<8x32xf32>
    %4 = vector.shape_cast %3 : vector<8x32xf32> to vector<1x8x32xf32>
    %5 = vector.broadcast %4 : vector<1x8x32xf32> to vector<2x8x32xf32>
    %6 = arith.addf %2, %5 : vector<2x8x32xf32>
    %c0_4 = arith.constant 0 : index
    %c0_5 = arith.constant 0 : index
    %c0_6 = arith.constant 0 : index
    %7 = vector.load %arg2[%c0_4, %c0_5, %c0_6] : memref<2x8x32xf32, #tpu.memory_space<vmem>>, vector<2x8x32xf32>
    tpu.vector_store %arg2[%c0_4, %c0_5, %c0_6], %6 {strides = array<i32>} : memref<2x8x32xf32, #tpu.memory_space<vmem>>, vector<2x8x32xf32>,
    return
  }
}

module attributes {stable_mosaic.version = 11 : i64} {
  func.func @_ffn_sublayer_kernel(%arg0: i32, %arg1: memref<16x32xf32, #tpu.memory_space<vmem>>, %arg2: memref<1x32xf32, #tpu.memory_space<vmem>>, %arg3: memref<1x32xf32, #tpu.memory_space<vmem>>, %arg4: memref<32x2048xf32, #tpu.memory_space<vmem>>, %arg5: memref<1x2048xf32, #tpu.memory_space<vmem>>, %arg6: memref<2048x32xf32, #tpu.memory_space<vmem>>, %arg7: memref<1x32xf32, #tpu.memory_space<vmem>>, %arg8: memref<16x32xf32, #tpu.memory_space<vmem>>) attributes {dimension_semantics = [#tpu.dimension_semantics<parallel>], iteration_bounds = array<i64: 1>, scalar_prefetch = 0 : i64, scratch_operands = 0 : i64, tpu.core_type = #tpu.core_type<tc>, window_params = [{transform_indices = @transform_0, window_bounds = array<i64: 16, 32>}, {pipeline_mode = #tpu.pipeline_mode<synchronous>, transform_indices = @transform_1, window_bounds = array<i64: 1, 32>}, {pipeline_mode = #tpu.pipeline_mode<synchronous>, transform_indices = @transform_2, window_bounds = array<i64: 1, 32>}, {pipeline_mode = #tpu.pipeline_mode<synchronous>, transform_indices = @transform_3, window_bounds = array<i64: 32, 2048>}, {pipeline_mode = #tpu.pipeline_mode<synchronous>, transform_indices = @transform_4, window_bounds = array<i64: 1, 2048>}, {pipeline_mode = #tpu.pipeline_mode<synchronous>, transform_indices = @transform_5, window_bounds = array<i64: 2048, 32>}, {pipeline_mode = #tpu.pipeline_mode<synchronous>, transform_indices = @transform_6, window_bounds = array<i64: 1, 32>}, {transform_indices = @transform_7, window_bounds = array<i64: 16, 32>}]} {
    %c0 = arith.constant 0 : index
    %c0_0 = arith.constant 0 : index
    %0 = vector.load %arg1[%c0, %c0_0] : memref<16x32xf32, #tpu.memory_space<vmem>>, vector<16x32xf32>
    %cst = arith.constant dense<0.000000e+00> : vector<16xf32>
    %1 = vector.multi_reduction <add>, %0, %cst [1] : vector<16x32xf32> to vector<16xf32>
    %2 = vector.shape_cast %1 : vector<16xf32> to vector<16x1xf32>
    %cst_1 = arith.constant 3.200000e+01 : f32
    %3 = vector.broadcast %cst_1 : f32 to vector<16x1xf32>
    %4 = arith.divf %2, %3 : vector<16x1xf32>
    %5 = vector.broadcast %4 : vector<16x1xf32> to vector<16x32xf32>
    %6 = arith.subf %0, %5 : vector<16x32xf32>
    %7 = arith.mulf %6, %6 : vector<16x32xf32>
    %cst_2 = arith.constant dense<0.000000e+00> : vector<16xf32>
    %8 = vector.multi_reduction <add>, %7, %cst_2 [1] : vector<16x32xf32> to vector<16xf32>
    %9 = vector.shape_cast %8 : vector<16xf32> to vector<16x1xf32>
    %cst_3 = arith.constant 0.0322580636 : f32
    %10 = vector.broadcast %cst_3 : f32 to vector<16x1xf32>
    %11 = arith.mulf %9, %10 : vector<16x1xf32>
    %c0_4 = arith.constant 0 : index
    %c0_5 = arith.constant 0 : index
    %12 = vector.load %arg2[%c0_4, %c0_5] : memref<1x32xf32, #tpu.memory_space<vmem>>, vector<1x32xf32>
    %13 = vector.broadcast %12 : vector<1x32xf32> to vector<16x32xf32>
    %14 = arith.mulf %13, %6 : vector<16x32xf32>
    %15 = math.sqrt %11 : vector<16x1xf32>
    %cst_6 = arith.constant 9.99999997E-7 : f32
    %16 = vector.broadcast %cst_6 : f32 to vector<16x1xf32>
    %17 = arith.addf %15, %16 : vector<16x1xf32>
    %18 = vector.broadcast %17 : vector<16x1xf32> to vector<16x32xf32>
    %19 = arith.divf %14, %18 : vector<16x32xf32>
    %c0_7 = arith.constant 0 : index
    %c0_8 = arith.constant 0 : index
    %20 = vector.load %arg3[%c0_7, %c0_8] : memref<1x32xf32, #tpu.memory_space<vmem>>, vector<1x32xf32>
    %21 = vector.broadcast %20 : vector<1x32xf32> to vector<16x32xf32>
    %22 = arith.addf %19, %21 : vector<16x32xf32>
    %c0_9 = arith.constant 0 : index
    %c0_10 = arith.constant 0 : index
    %23 = vector.load %arg4[%c0_9, %c0_10] : memref<32x2048xf32, #tpu.memory_space<vmem>>, vector<32x2048xf32>
    %cst_11 = arith.constant dense<0.000000e+00> : vector<16x2048xf32>
    %24 = tpu.matmul %22, %23, %cst_11 {dimension_numbers = #tpu.dot_dimension_numbers<[1], [0], [0], [1], [0, 0, 1, 1], [], []>} : vector<16x32xf32>, vector<32x2048xf32>, vector<16x2048xf32> -> vector<16x2048xf32>
    %c0_12 = arith.constant 0 : index
    %c0_13 = arith.constant 0 : index
    %25 = vector.load %arg5[%c0_12, %c0_13] : memref<1x2048xf32, #tpu.memory_space<vmem>>, vector<1x2048xf32>
    %26 = vector.broadcast %25 : vector<1x2048xf32> to vector<16x2048xf32>
    %27 = arith.addf %24, %26 : vector<16x2048xf32>
    %cst_14 = arith.constant 0.000000e+00 : f32
    %28 = vector.broadcast %cst_14 : f32 to vector<16x2048xf32>
    %29 = arith.maximumf %27, %28 : vector<16x2048xf32>
    %c0_15 = arith.constant 0 : index
    %c0_16 = arith.constant 0 : index
    %30 = vector.load %arg6[%c0_15, %c0_16] : memref<2048x32xf32, #tpu.memory_space<vmem>>, vector<2048x32xf32>
    %cst_17 = arith.constant dense<0.000000e+00> : vector<16x32xf32>
    %31 = tpu.matmul %29, %30, %cst_17 {dimension_numbers = #tpu.dot_dimension_numbers<[1], [0], [0], [1], [0, 0, 1, 1], [], []>} : vector<16x2048xf32>, vector<2048x32xf32>, vector<16x32xf32> -> vector<16x32xf32>
    %c0_18 = arith.constant 0 : index
    %c0_19 = arith.constant 0 : index
    %32 = vector.load %arg7[%c0_18, %c0_19] : memref<1x32xf32, #tpu.memory_space<vmem>>, vector<1x32xf32>
    %33 = vector.broadcast %32 : vector<1x32xf32> to vector<16x32xf32>
    %34 = arith.addf %31, %33 : vector<16x32xf32>
    %35 = arith.addf %0, %34 : vector<16x32xf32>
    %c0_20 = arith.constant 0 : index
    %c0_21 = arith.constant 0 : index
    %36 = vector.load %arg8[%c0_20, %c0_21] : memref<16x32xf32, #tpu.memory_space<vmem>>, vector<16x32xf32>
    tpu.vector_store %arg8[%c0_20, %c0_21], %35 {strides = array<i32>} : memref<16x32xf32, #tpu.memory_space<vmem>>, vector<16x32xf32>,
    return
  }
  func.func @transform_0(%arg0: i32) -> (i32, i32) {
    %c0_i32 = arith.constant 0 : i32
    %c0_i32_0 = arith.constant 0 : i32
    return %arg0, %c0_i32 : i32, i32
  }
  func.func @transform_1(%arg0: i32) -> (i32, i32) {
    %c0_i32 = arith.constant 0 : i32
    %c0_i32_0 = arith.constant 0 : i32
    %c0_i32_1 = arith.constant 0 : i32
    return %c0_i32, %c0_i32_0 : i32, i32
  }
  func.func @transform_2(%arg0: i32) -> (i32, i32) {
    %c0_i32 = arith.constant 0 : i32
    %c0_i32_0 = arith.constant 0 : i32
    %c0_i32_1 = arith.constant 0 : i32
    return %c0_i32, %c0_i32_0 : i32, i32
  }
  func.func @transform_3(%arg0: i32) -> (i32, i32) {
    %c0_i32 = arith.constant 0 : i32
    %c0_i32_0 = arith.constant 0 : i32
    %c0_i32_1 = arith.constant 0 : i32
    return %c0_i32, %c0_i32_0 : i32, i32
  }
  func.func @transform_4(%arg0: i32) -> (i32, i32) {
    %c0_i32 = arith.constant 0 : i32
    %c0_i32_0 = arith.constant 0 : i32
    %c0_i32_1 = arith.constant 0 : i32
    return %c0_i32, %c0_i32_0 : i32, i32
  }
  func.func @transform_5(%arg0: i32) -> (i32, i32) {
    %c0_i32 = arith.constant 0 : i32
    %c0_i32_0 = arith.constant 0 : i32
    %c0_i32_1 = arith.constant 0 : i32
    return %c0_i32, %c0_i32_0 : i32, i32
  }
  func.func @transform_6(%arg0: i32) -> (i32, i32) {
    %c0_i32 = arith.constant 0 : i32
    %c0_i32_0 = arith.constant 0 : i32
    %c0_i32_1 = arith.constant 0 : i32
    return %c0_i32, %c0_i32_0 : i32, i32
  }
  func.func @transform_7(%arg0: i32) -> (i32, i32) {
    %c0_i32 = arith.constant 0 : i32
    %c0_i32_0 = arith.constant 0 : i32
    return %arg0, %c0_i32 : i32, i32
  }
}

module attributes {stable_mosaic.version = 11 : i64} {
  func.func @_attn_sublayer_kernel(%arg0: i32, %arg1: memref<1x8x32xf32, #tpu.memory_space<vmem>>, %arg2: memref<1x1x8xi32, #tpu.memory_space<vmem>>, %arg3: memref<1x32xf32, #tpu.memory_space<vmem>>, %arg4: memref<1x32xf32, #tpu.memory_space<vmem>>, %arg5: memref<32x96xf32, #tpu.memory_space<vmem>>, %arg6: memref<1x96xf32, #tpu.memory_space<vmem>>, %arg7: memref<32x32xf32, #tpu.memory_space<vmem>>, %arg8: memref<1x32xf32, #tpu.memory_space<vmem>>, %arg9: memref<1x8x32xf32, #tpu.memory_space<vmem>>) attributes {dimension_semantics = [#tpu.dimension_semantics<parallel>], iteration_bounds = array<i64: 2>, scalar_prefetch = 0 : i64, scratch_operands = 0 : i64, tpu.core_type = #tpu.core_type<tc>, window_params = [{transform_indices = @transform_0, window_bounds = array<i64: 1, 8, 32>}, {transform_indices = @transform_1, window_bounds = array<i64: 1, 1, 8>}, {pipeline_mode = #tpu.pipeline_mode<synchronous>, transform_indices = @transform_2, window_bounds = array<i64: 1, 32>}, {pipeline_mode = #tpu.pipeline_mode<synchronous>, transform_indices = @transform_3, window_bounds = array<i64: 1, 32>}, {pipeline_mode = #tpu.pipeline_mode<synchronous>, transform_indices = @transform_4, window_bounds = array<i64: 32, 96>}, {pipeline_mode = #tpu.pipeline_mode<synchronous>, transform_indices = @transform_5, window_bounds = array<i64: 1, 96>}, {pipeline_mode = #tpu.pipeline_mode<synchronous>, transform_indices = @transform_6, window_bounds = array<i64: 32, 32>}, {pipeline_mode = #tpu.pipeline_mode<synchronous>, transform_indices = @transform_7, window_bounds = array<i64: 1, 32>}, {transform_indices = @transform_8, window_bounds = array<i64: 1, 8, 32>}]} {
    %c0 = arith.constant 0 : index
    %c0_0 = arith.constant 0 : index
    %c0_1 = arith.constant 0 : index
    %0 = vector.load %arg1[%c0, %c0_0, %c0_1] : memref<1x8x32xf32, #tpu.memory_space<vmem>>, vector<1x8x32xf32>
    %1 = vector.shape_cast %0 : vector<1x8x32xf32> to vector<8x32xf32>
    %cst = arith.constant dense<0.000000e+00> : vector<8xf32>
    %2 = vector.multi_reduction <add>, %1, %cst [1] : vector<8x32xf32> to vector<8xf32>
    %3 = vector.shape_cast %2 : vector<8xf32> to vector<8x1xf32>
    %cst_2 = arith.constant 3.200000e+01 : f32
    %4 = vector.broadcast %cst_2 : f32 to vector<8x1xf32>
    %5 = arith.divf %3, %4 : vector<8x1xf32>
    %6 = vector.broadcast %5 : vector<8x1xf32> to vector<8x32xf32>
    %7 = arith.subf %1, %6 : vector<8x32xf32>
    %8 = arith.mulf %7, %7 : vector<8x32xf32>
    %cst_3 = arith.constant dense<0.000000e+00> : vector<8xf32>
    %9 = vector.multi_reduction <add>, %8, %cst_3 [1] : vector<8x32xf32> to vector<8xf32>
    %10 = vector.shape_cast %9 : vector<8xf32> to vector<8x1xf32>
    %cst_4 = arith.constant 0.0322580636 : f32
    %11 = vector.broadcast %cst_4 : f32 to vector<8x1xf32>
    %12 = arith.mulf %10, %11 : vector<8x1xf32>
    %c0_5 = arith.constant 0 : index
    %c0_6 = arith.constant 0 : index
    %13 = vector.load %arg3[%c0_5, %c0_6] : memref<1x32xf32, #tpu.memory_space<vmem>>, vector<1x32xf32>
    %14 = vector.broadcast %13 : vector<1x32xf32> to vector<8x32xf32>
    %15 = arith.mulf %14, %7 : vector<8x32xf32>
    %16 = math.sqrt %12 : vector<8x1xf32>
    %cst_7 = arith.constant 9.99999997E-7 : f32
    %17 = vector.broadcast %cst_7 : f32 to vector<8x1xf32>
    %18 = arith.addf %16, %17 : vector<8x1xf32>
    %19 = vector.broadcast %18 : vector<8x1xf32> to vector<8x32xf32>
    %20 = arith.divf %15, %19 : vector<8x32xf32>
    %c0_8 = arith.constant 0 : index
    %c0_9 = arith.constant 0 : index
    %21 = vector.load %arg4[%c0_8, %c0_9] : memref<1x32xf32, #tpu.memory_space<vmem>>, vector<1x32xf32>
    %22 = vector.broadcast %21 : vector<1x32xf32> to vector<8x32xf32>
    %23 = arith.addf %20, %22 : vector<8x32xf32>
    %c0_10 = arith.constant 0 : index
    %c0_11 = arith.constant 0 : index
    %24 = vector.load %arg5[%c0_10, %c0_11] : memref<32x96xf32, #tpu.memory_space<vmem>>, vector<32x96xf32>
    %cst_12 = arith.constant dense<0.000000e+00> : vector<8x96xf32>
    %25 = tpu.matmul %23, %24, %cst_12 {dimension_numbers = #tpu.dot_dimension_numbers<[1], [0], [0], [1], [0, 0, 1, 1], [], []>} : vector<8x32xf32>, vector<32x96xf32>, vector<8x96xf32> -> vector<8x96xf32>
    %c0_13 = arith.constant 0 : index
    %c0_14 = arith.constant 0 : index
    %26 = vector.load %arg6[%c0_13, %c0_14] : memref<1x96xf32, #tpu.memory_space<vmem>>, vector<1x96xf32>
    %27 = vector.broadcast %26 : vector<1x96xf32> to vector<8x96xf32>
    %28 = arith.addf %25, %27 : vector<8x96xf32>
    %c0_15 = arith.constant 0 : index
    %c0_16 = arith.constant 0 : index
    %c0_17 = arith.constant 0 : index
    %29 = vector.load %arg2[%c0_15, %c0_16, %c0_17] : memref<1x1x8xi32, #tpu.memory_space<vmem>>, vector<1x1x8xi32>
    %30 = vector.shape_cast %29 : vector<1x1x8xi32> to vector<1x8xi32>
    %c0_18 = arith.constant 0 : index
    %c0_19 = arith.constant 0 : index
    %31 = vector.load %arg7[%c0_18, %c0_19] : memref<32x32xf32, #tpu.memory_space<vmem>>, vector<32x32xf32>
    %cst_20 = arith.constant 0.000000e+00 : f32
    %32 = vector.broadcast %cst_20 : f32 to vector<8x32xf32>
    %33 = vector.extract_strided_slice %28 {offsets = [0, 0], sizes = [8, 8], strides = [1, 1]} : vector<8x96xf32> to vector<8x8xf32>
    %34 = vector.extract_strided_slice %28 {offsets = [0, 32], sizes = [8, 8], strides = [1, 1]} : vector<8x96xf32> to vector<8x8xf32>
    %35 = vector.extract_strided_slice %28 {offsets = [0, 64], sizes = [8, 8], strides = [1, 1]} : vector<8x96xf32> to vector<8x8xf32>
    %cst_21 = arith.constant dense<0.000000e+00> : vector<8x8xf32>
    %36 = tpu.matmul %33, %34, %cst_21 {dimension_numbers = #tpu.dot_dimension_numbers<[1], [1], [0], [0], [0, 0, 1, 0], [], []>} : vector<8x8xf32>, vector<8x8xf32>, vector<8x8xf32> -> vector<8x8xf32>
    %cst_22 = arith.constant 0.353553385 : f32
    %37 = vector.broadcast %cst_22 : f32 to vector<8x8xf32>
    %38 = arith.mulf %36, %37 : vector<8x8xf32>
    %c0_i32 = arith.constant 0 : i32
    %39 = vector.broadcast %c0_i32 : i32 to vector<1x8xi32>
    %40 = arith.cmpi eq, %30, %39 : vector<1x8xi32>
    %cst_23 = arith.constant -1.000000e+09 : f32
    %41 = vector.shape_cast %40 : vector<1x8xi1> to vector<1x8xi1>
    %42 = vector.broadcast %41 : vector<1x8xi1> to vector<8x8xi1>
    %43 = vector.broadcast %cst_23 : f32 to vector<8x8xf32>
    %44 = arith.select %42, %43, %38 : vector<8x8xi1>, vector<8x8xf32>
    %cst_24 = arith.constant dense<0xFF800000> : vector<8xf32>
    %45 = vector.multi_reduction <maximumf>, %44, %cst_24 [1] : vector<8x8xf32> to vector<8xf32>
    %46 = vector.shape_cast %45 : vector<8xf32> to vector<8x1xf32>
    %47 = vector.broadcast %46 : vector<8x1xf32> to vector<8x8xf32>
    %48 = arith.subf %44, %47 : vector<8x8xf32>
    %49 = math.exp %48 : vector<8x8xf32>
    %cst_25 = arith.constant dense<0.000000e+00> : vector<8xf32>
    %50 = vector.multi_reduction <add>, %49, %cst_25 [1] : vector<8x8xf32> to vector<8xf32>
    %51 = vector.shape_cast %50 : vector<8xf32> to vector<8x1xf32>
    %52 = tpu.reciprocal %51 {approx = true} : vector<8x1xf32> -> vector<8x1xf32>
    %53 = vector.broadcast %52 : vector<8x1xf32> to vector<8x8xf32>
    %54 = arith.mulf %49, %53 : vector<8x8xf32>
    %cst_26 = arith.constant dense<0.000000e+00> : vector<8x8xf32>
    %55 = tpu.matmul %54, %35, %cst_26 {dimension_numbers = #tpu.dot_dimension_numbers<[1], [0], [0], [1], [0, 0, 1, 1], [], []>} : vector<8x8xf32>, vector<8x8xf32>, vector<8x8xf32> -> vector<8x8xf32>
    %56 = vector.extract_strided_slice %31 {offsets = [0, 0], sizes = [8, 32], strides = [1, 1]} : vector<32x32xf32> to vector<8x32xf32>
    %cst_27 = arith.constant dense<0.000000e+00> : vector<8x32xf32>
    %57 = tpu.matmul %55, %56, %cst_27 {dimension_numbers = #tpu.dot_dimension_numbers<[1], [0], [0], [1], [0, 0, 1, 1], [], []>} : vector<8x8xf32>, vector<8x32xf32>, vector<8x32xf32> -> vector<8x32xf32>
    %58 = arith.addf %32, %57 : vector<8x32xf32>
    %59 = vector.extract_strided_slice %28 {offsets = [0, 8], sizes = [8, 8], strides = [1, 1]} : vector<8x96xf32> to vector<8x8xf32>
    %60 = vector.extract_strided_slice %28 {offsets = [0, 40], sizes = [8, 8], strides = [1, 1]} : vector<8x96xf32> to vector<8x8xf32>
    %61 = vector.extract_strided_slice %28 {offsets = [0, 72], sizes = [8, 8], strides = [1, 1]} : vector<8x96xf32> to vector<8x8xf32>
    %cst_28 = arith.constant dense<0.000000e+00> : vector<8x8xf32>
    %62 = tpu.matmul %59, %60, %cst_28 {dimension_numbers = #tpu.dot_dimension_numbers<[1], [1], [0], [0], [0, 0, 1, 0], [], []>} : vector<8x8xf32>, vector<8x8xf32>, vector<8x8xf32> -> vector<8x8xf32>
    %cst_29 = arith.constant 0.353553385 : f32
    %63 = vector.broadcast %cst_29 : f32 to vector<8x8xf32>
    %64 = arith.mulf %62, %63 : vector<8x8xf32>
    %c0_i32_30 = arith.constant 0 : i32
    %65 = vector.broadcast %c0_i32_30 : i32 to vector<1x8xi32>
    %66 = arith.cmpi eq, %30, %65 : vector<1x8xi32>
    %cst_31 = arith.constant -1.000000e+09 : f32
    %67 = vector.shape_cast %66 : vector<1x8xi1> to vector<1x8xi1>
    %68 = vector.broadcast %67 : vector<1x8xi1> to vector<8x8xi1>
    %69 = vector.broadcast %cst_31 : f32 to vector<8x8xf32>
    %70 = arith.select %68, %69, %64 : vector<8x8xi1>, vector<8x8xf32>
    %cst_32 = arith.constant dense<0xFF800000> : vector<8xf32>
    %71 = vector.multi_reduction <maximumf>, %70, %cst_32 [1] : vector<8x8xf32> to vector<8xf32>
    %72 = vector.shape_cast %71 : vector<8xf32> to vector<8x1xf32>
    %73 = vector.broadcast %72 : vector<8x1xf32> to vector<8x8xf32>
    %74 = arith.subf %70, %73 : vector<8x8xf32>
    %75 = math.exp %74 : vector<8x8xf32>
    %cst_33 = arith.constant dense<0.000000e+00> : vector<8xf32>
    %76 = vector.multi_reduction <add>, %75, %cst_33 [1] : vector<8x8xf32> to vector<8xf32>
    %77 = vector.shape_cast %76 : vector<8xf32> to vector<8x1xf32>
    %78 = tpu.reciprocal %77 {approx = true} : vector<8x1xf32> -> vector<8x1xf32>
    %79 = vector.broadcast %78 : vector<8x1xf32> to vector<8x8xf32>
    %80 = arith.mulf %75, %79 : vector<8x8xf32>
    %cst_34 = arith.constant dense<0.000000e+00> : vector<8x8xf32>
    %81 = tpu.matmul %80, %61, %cst_34 {dimension_numbers = #tpu.dot_dimension_numbers<[1], [0], [0], [1], [0, 0, 1, 1], [], []>} : vector<8x8xf32>, vector<8x8xf32>, vector<8x8xf32> -> vector<8x8xf32>
    %82 = vector.extract_strided_slice %31 {offsets = [8, 0], sizes = [8, 32], strides = [1, 1]} : vector<32x32xf32> to vector<8x32xf32>
    %cst_35 = arith.constant dense<0.000000e+00> : vector<8x32xf32>
    %83 = tpu.matmul %81, %82, %cst_35 {dimension_numbers = #tpu.dot_dimension_numbers<[1], [0], [0], [1], [0, 0, 1, 1], [], []>} : vector<8x8xf32>, vector<8x32xf32>, vector<8x32xf32> -> vector<8x32xf32>
    %84 = arith.addf %58, %83 : vector<8x32xf32>
    %85 = vector.extract_strided_slice %28 {offsets = [0, 16], sizes = [8, 8], strides = [1, 1]} : vector<8x96xf32> to vector<8x8xf32>
    %86 = vector.extract_strided_slice %28 {offsets = [0, 48], sizes = [8, 8], strides = [1, 1]} : vector<8x96xf32> to vector<8x8xf32>
    %87 = vector.extract_strided_slice %28 {offsets = [0, 80], sizes = [8, 8], strides = [1, 1]} : vector<8x96xf32> to vector<8x8xf32>
    %cst_36 = arith.constant dense<0.000000e+00> : vector<8x8xf32>
    %88 = tpu.matmul %85, %86, %cst_36 {dimension_numbers = #tpu.dot_dimension_numbers<[1], [1], [0], [0], [0, 0, 1, 0], [], []>} : vector<8x8xf32>, vector<8x8xf32>, vector<8x8xf32> -> vector<8x8xf32>
    %cst_37 = arith.constant 0.353553385 : f32
    %89 = vector.broadcast %cst_37 : f32 to vector<8x8xf32>
    %90 = arith.mulf %88, %89 : vector<8x8xf32>
    %c0_i32_38 = arith.constant 0 : i32
    %91 = vector.broadcast %c0_i32_38 : i32 to vector<1x8xi32>
    %92 = arith.cmpi eq, %30, %91 : vector<1x8xi32>
    %cst_39 = arith.constant -1.000000e+09 : f32
    %93 = vector.shape_cast %92 : vector<1x8xi1> to vector<1x8xi1>
    %94 = vector.broadcast %93 : vector<1x8xi1> to vector<8x8xi1>
    %95 = vector.broadcast %cst_39 : f32 to vector<8x8xf32>
    %96 = arith.select %94, %95, %90 : vector<8x8xi1>, vector<8x8xf32>
    %cst_40 = arith.constant dense<0xFF800000> : vector<8xf32>
    %97 = vector.multi_reduction <maximumf>, %96, %cst_40 [1] : vector<8x8xf32> to vector<8xf32>
    %98 = vector.shape_cast %97 : vector<8xf32> to vector<8x1xf32>
    %99 = vector.broadcast %98 : vector<8x1xf32> to vector<8x8xf32>
    %100 = arith.subf %96, %99 : vector<8x8xf32>
    %101 = math.exp %100 : vector<8x8xf32>
    %cst_41 = arith.constant dense<0.000000e+00> : vector<8xf32>
    %102 = vector.multi_reduction <add>, %101, %cst_41 [1] : vector<8x8xf32> to vector<8xf32>
    %103 = vector.shape_cast %102 : vector<8xf32> to vector<8x1xf32>
    %104 = tpu.reciprocal %103 {approx = true} : vector<8x1xf32> -> vector<8x1xf32>
    %105 = vector.broadcast %104 : vector<8x1xf32> to vector<8x8xf32>
    %106 = arith.mulf %101, %105 : vector<8x8xf32>
    %cst_42 = arith.constant dense<0.000000e+00> : vector<8x8xf32>
    %107 = tpu.matmul %106, %87, %cst_42 {dimension_numbers = #tpu.dot_dimension_numbers<[1], [0], [0], [1], [0, 0, 1, 1], [], []>} : vector<8x8xf32>, vector<8x8xf32>, vector<8x8xf32> -> vector<8x8xf32>
    %108 = vector.extract_strided_slice %31 {offsets = [16, 0], sizes = [8, 32], strides = [1, 1]} : vector<32x32xf32> to vector<8x32xf32>
    %cst_43 = arith.constant dense<0.000000e+00> : vector<8x32xf32>
    %109 = tpu.matmul %107, %108, %cst_43 {dimension_numbers = #tpu.dot_dimension_numbers<[1], [0], [0], [1], [0, 0, 1, 1], [], []>} : vector<8x8xf32>, vector<8x32xf32>, vector<8x32xf32> -> vector<8x32xf32>
    %110 = arith.addf %84, %109 : vector<8x32xf32>
    %111 = vector.extract_strided_slice %28 {offsets = [0, 24], sizes = [8, 8], strides = [1, 1]} : vector<8x96xf32> to vector<8x8xf32>
    %112 = vector.extract_strided_slice %28 {offsets = [0, 56], sizes = [8, 8], strides = [1, 1]} : vector<8x96xf32> to vector<8x8xf32>
    %113 = vector.extract_strided_slice %28 {offsets = [0, 88], sizes = [8, 8], strides = [1, 1]} : vector<8x96xf32> to vector<8x8xf32>
    %cst_44 = arith.constant dense<0.000000e+00> : vector<8x8xf32>
    %114 = tpu.matmul %111, %112, %cst_44 {dimension_numbers = #tpu.dot_dimension_numbers<[1], [1], [0], [0], [0, 0, 1, 0], [], []>} : vector<8x8xf32>, vector<8x8xf32>, vector<8x8xf32> -> vector<8x8xf32>
    %cst_45 = arith.constant 0.353553385 : f32
    %115 = vector.broadcast %cst_45 : f32 to vector<8x8xf32>
    %116 = arith.mulf %114, %115 : vector<8x8xf32>
    %c0_i32_46 = arith.constant 0 : i32
    %117 = vector.broadcast %c0_i32_46 : i32 to vector<1x8xi32>
    %118 = arith.cmpi eq, %30, %117 : vector<1x8xi32>
    %cst_47 = arith.constant -1.000000e+09 : f32
    %119 = vector.shape_cast %118 : vector<1x8xi1> to vector<1x8xi1>
    %120 = vector.broadcast %119 : vector<1x8xi1> to vector<8x8xi1>
    %121 = vector.broadcast %cst_47 : f32 to vector<8x8xf32>
    %122 = arith.select %120, %121, %116 : vector<8x8xi1>, vector<8x8xf32>
    %cst_48 = arith.constant dense<0xFF800000> : vector<8xf32>
    %123 = vector.multi_reduction <maximumf>, %122, %cst_48 [1] : vector<8x8xf32> to vector<8xf32>
    %124 = vector.shape_cast %123 : vector<8xf32> to vector<8x1xf32>
    %125 = vector.broadcast %124 : vector<8x1xf32> to vector<8x8xf32>
    %126 = arith.subf %122, %125 : vector<8x8xf32>
    %127 = math.exp %126 : vector<8x8xf32>
    %cst_49 = arith.constant dense<0.000000e+00> : vector<8xf32>
    %128 = vector.multi_reduction <add>, %127, %cst_49 [1] : vector<8x8xf32> to vector<8xf32>
    %129 = vector.shape_cast %128 : vector<8xf32> to vector<8x1xf32>
    %130 = tpu.reciprocal %129 {approx = true} : vector<8x1xf32> -> vector<8x1xf32>
    %131 = vector.broadcast %130 : vector<8x1xf32> to vector<8x8xf32>
    %132 = arith.mulf %127, %131 : vector<8x8xf32>
    %cst_50 = arith.constant dense<0.000000e+00> : vector<8x8xf32>
    %133 = tpu.matmul %132, %113, %cst_50 {dimension_numbers = #tpu.dot_dimension_numbers<[1], [0], [0], [1], [0, 0, 1, 1], [], []>} : vector<8x8xf32>, vector<8x8xf32>, vector<8x8xf32> -> vector<8x8xf32>
    %134 = vector.extract_strided_slice %31 {offsets = [24, 0], sizes = [8, 32], strides = [1, 1]} : vector<32x32xf32> to vector<8x32xf32>
    %cst_51 = arith.constant dense<0.000000e+00> : vector<8x32xf32>
    %135 = tpu.matmul %133, %134, %cst_51 {dimension_numbers = #tpu.dot_dimension_numbers<[1], [0], [0], [1], [0, 0, 1, 1], [], []>} : vector<8x8xf32>, vector<8x32xf32>, vector<8x32xf32> -> vector<8x32xf32>
    %136 = arith.addf %110, %135 : vector<8x32xf32>
    %c0_52 = arith.constant 0 : index
    %c0_53 = arith.constant 0 : index
    %137 = vector.load %arg8[%c0_52, %c0_53] : memref<1x32xf32, #tpu.memory_space<vmem>>, vector<1x32xf32>
    %138 = vector.broadcast %137 : vector<1x32xf32> to vector<8x32xf32>
    %139 = arith.addf %136, %138 : vector<8x32xf32>
    %140 = arith.addf %1, %139 : vector<8x32xf32>
    %c0_54 = arith.constant 0 : index
    %c0_55 = arith.constant 0 : index
    %c0_56 = arith.constant 0 : index
    %141 = vector.load %arg9[%c0_54, %c0_55, %c0_56] : memref<1x8x32xf32, #tpu.memory_space<vmem>>, vector<1x8x32xf32>
    %142 = vector.shape_cast %141 : vector<1x8x32xf32> to vector<8x32xf32>
    %143 = vector.shape_cast %140 : vector<8x32xf32> to vector<1x8x32xf32>
    tpu.vector_store %arg9[%c0_54, %c0_55, %c0_56], %143 {strides = array<i32>} : memref<1x8x32xf32, #tpu.memory_space<vmem>>, vector<1x8x32xf32>,
    return
  }
  func.func @transform_0(%arg0: i32) -> (i32, i32, i32) {
    %c0_i32 = arith.constant 0 : i32
    %c0_i32_0 = arith.constant 0 : i32
    %c0_i32_1 = arith.constant 0 : i32
    return %arg0, %c0_i32, %c0_i32_0 : i32, i32, i32
  }
  func.func @transform_1(%arg0: i32) -> (i32, i32, i32) {
    %c0_i32 = arith.constant 0 : i32
    %c0_i32_0 = arith.constant 0 : i32
    %c0_i32_1 = arith.constant 0 : i32
    return %arg0, %c0_i32, %c0_i32_0 : i32, i32, i32
  }
  func.func @transform_2(%arg0: i32) -> (i32, i32) {
    %c0_i32 = arith.constant 0 : i32
    %c0_i32_0 = arith.constant 0 : i32
    %c0_i32_1 = arith.constant 0 : i32
    return %c0_i32, %c0_i32_0 : i32, i32
  }
  func.func @transform_3(%arg0: i32) -> (i32, i32) {
    %c0_i32 = arith.constant 0 : i32
    %c0_i32_0 = arith.constant 0 : i32
    %c0_i32_1 = arith.constant 0 : i32
    return %c0_i32, %c0_i32_0 : i32, i32
  }
  func.func @transform_4(%arg0: i32) -> (i32, i32) {
    %c0_i32 = arith.constant 0 : i32
    %c0_i32_0 = arith.constant 0 : i32
    %c0_i32_1 = arith.constant 0 : i32
    return %c0_i32, %c0_i32_0 : i32, i32
  }
  func.func @transform_5(%arg0: i32) -> (i32, i32) {
    %c0_i32 = arith.constant 0 : i32
    %c0_i32_0 = arith.constant 0 : i32
    %c0_i32_1 = arith.constant 0 : i32
    return %c0_i32, %c0_i32_0 : i32, i32
  }
  func.func @transform_6(%arg0: i32) -> (i32, i32) {
    %c0_i32 = arith.constant 0 : i32
    %c0_i32_0 = arith.constant 0 : i32
    %c0_i32_1 = arith.constant 0 : i32
    return %c0_i32, %c0_i32_0 : i32, i32
  }
  func.func @transform_7(%arg0: i32) -> (i32, i32) {
    %c0_i32 = arith.constant 0 : i32
    %c0_i32_0 = arith.constant 0 : i32
    %c0_i32_1 = arith.constant 0 : i32
    return %c0_i32, %c0_i32_0 : i32, i32
  }
  func.func @transform_8(%arg0: i32) -> (i32, i32, i32) {
    %c0_i32 = arith.constant 0 : i32
    %c0_i32_0 = arith.constant 0 : i32
    %c0_i32_1 = arith.constant 0 : i32
    return %arg0, %c0_i32, %c0_i32_0 : i32, i32, i32
  }
}

module attributes {stable_mosaic.version = 11 : i64} {
  func.func @_attn_sublayer_kernel(%arg0: i32, %arg1: memref<1x8x32xf32, #tpu.memory_space<vmem>>, %arg2: memref<1x1x8xi32, #tpu.memory_space<vmem>>, %arg3: memref<1x32xf32, #tpu.memory_space<vmem>>, %arg4: memref<1x32xf32, #tpu.memory_space<vmem>>, %arg5: memref<32x96xf32, #tpu.memory_space<vmem>>, %arg6: memref<1x96xf32, #tpu.memory_space<vmem>>, %arg7: memref<32x32xf32, #tpu.memory_space<vmem>>, %arg8: memref<1x32xf32, #tpu.memory_space<vmem>>, %arg9: memref<1x8x32xf32, #tpu.memory_space<vmem>>) attributes {dimension_semantics = [#tpu.dimension_semantics<parallel>], iteration_bounds = array<i64: 2>, scalar_prefetch = 0 : i64, scratch_operands = 0 : i64, tpu.core_type = #tpu.core_type<tc>, window_params = [{transform_indices = @transform_0, window_bounds = array<i64: 1, 8, 32>}, {transform_indices = @transform_1, window_bounds = array<i64: 1, 1, 8>}, {pipeline_mode = #tpu.pipeline_mode<synchronous>, transform_indices = @transform_2, window_bounds = array<i64: 1, 32>}, {pipeline_mode = #tpu.pipeline_mode<synchronous>, transform_indices = @transform_3, window_bounds = array<i64: 1, 32>}, {pipeline_mode = #tpu.pipeline_mode<synchronous>, transform_indices = @transform_4, window_bounds = array<i64: 32, 96>}, {pipeline_mode = #tpu.pipeline_mode<synchronous>, transform_indices = @transform_5, window_bounds = array<i64: 1, 96>}, {pipeline_mode = #tpu.pipeline_mode<synchronous>, transform_indices = @transform_6, window_bounds = array<i64: 32, 32>}, {pipeline_mode = #tpu.pipeline_mode<synchronous>, transform_indices = @transform_7, window_bounds = array<i64: 1, 32>}, {transform_indices = @transform_8, window_bounds = array<i64: 1, 8, 32>}]} {
    %c0 = arith.constant 0 : index
    %c0_0 = arith.constant 0 : index
    %c0_1 = arith.constant 0 : index
    %0 = vector.load %arg1[%c0, %c0_0, %c0_1] : memref<1x8x32xf32, #tpu.memory_space<vmem>>, vector<1x8x32xf32>
    %1 = vector.shape_cast %0 : vector<1x8x32xf32> to vector<8x32xf32>
    %cst = arith.constant dense<0.000000e+00> : vector<8xf32>
    %2 = vector.multi_reduction <add>, %1, %cst [1] : vector<8x32xf32> to vector<8xf32>
    %3 = vector.shape_cast %2 : vector<8xf32> to vector<8x1xf32>
    %cst_2 = arith.constant 3.200000e+01 : f32
    %4 = vector.broadcast %cst_2 : f32 to vector<8x1xf32>
    %5 = arith.divf %3, %4 : vector<8x1xf32>
    %6 = vector.broadcast %5 : vector<8x1xf32> to vector<8x32xf32>
    %7 = arith.subf %1, %6 : vector<8x32xf32>
    %8 = arith.mulf %7, %7 : vector<8x32xf32>
    %cst_3 = arith.constant dense<0.000000e+00> : vector<8xf32>
    %9 = vector.multi_reduction <add>, %8, %cst_3 [1] : vector<8x32xf32> to vector<8xf32>
    %10 = vector.shape_cast %9 : vector<8xf32> to vector<8x1xf32>
    %cst_4 = arith.constant 0.0322580636 : f32
    %11 = vector.broadcast %cst_4 : f32 to vector<8x1xf32>
    %12 = arith.mulf %10, %11 : vector<8x1xf32>
    %c0_5 = arith.constant 0 : index
    %c0_6 = arith.constant 0 : index
    %13 = vector.load %arg3[%c0_5, %c0_6] : memref<1x32xf32, #tpu.memory_space<vmem>>, vector<1x32xf32>
    %14 = vector.broadcast %13 : vector<1x32xf32> to vector<8x32xf32>
    %15 = arith.mulf %14, %7 : vector<8x32xf32>
    %16 = math.sqrt %12 : vector<8x1xf32>
    %cst_7 = arith.constant 9.99999997E-7 : f32
    %17 = vector.broadcast %cst_7 : f32 to vector<8x1xf32>
    %18 = arith.addf %16, %17 : vector<8x1xf32>
    %19 = vector.broadcast %18 : vector<8x1xf32> to vector<8x32xf32>
    %20 = arith.divf %15, %19 : vector<8x32xf32>
    %c0_8 = arith.constant 0 : index
    %c0_9 = arith.constant 0 : index
    %21 = vector.load %arg4[%c0_8, %c0_9] : memref<1x32xf32, #tpu.memory_space<vmem>>, vector<1x32xf32>
    %22 = vector.broadcast %21 : vector<1x32xf32> to vector<8x32xf32>
    %23 = arith.addf %20, %22 : vector<8x32xf32>
    %c0_10 = arith.constant 0 : index
    %c0_11 = arith.constant 0 : index
    %24 = vector.load %arg5[%c0_10, %c0_11] : memref<32x96xf32, #tpu.memory_space<vmem>>, vector<32x96xf32>
    %cst_12 = arith.constant dense<0.000000e+00> : vector<8x96xf32>
    %25 = tpu.matmul %23, %24, %cst_12 {dimension_numbers = #tpu.dot_dimension_numbers<[1], [0], [0], [1], [0, 0, 1, 1], [], []>} : vector<8x32xf32>, vector<32x96xf32>, vector<8x96xf32> -> vector<8x96xf32>
    %c0_13 = arith.constant 0 : index
    %c0_14 = arith.constant 0 : index
    %26 = vector.load %arg6[%c0_13, %c0_14] : memref<1x96xf32, #tpu.memory_space<vmem>>, vector<1x96xf32>
    %27 = vector.broadcast %26 : vector<1x96xf32> to vector<8x96xf32>
    %28 = arith.addf %25, %27 : vector<8x96xf32>
    %c0_15 = arith.constant 0 : index
    %c0_16 = arith.constant 0 : index
    %c0_17 = arith.constant 0 : index
    %29 = vector.load %arg2[%c0_15, %c0_16, %c0_17] : memref<1x1x8xi32, #tpu.memory_space<vmem>>, vector<1x1x8xi32>
    %30 = vector.shape_cast %29 : vector<1x1x8xi32> to vector<1x8xi32>
    %c0_18 = arith.constant 0 : index
    %c0_19 = arith.constant 0 : index
    %31 = vector.load %arg7[%c0_18, %c0_19] : memref<32x32xf32, #tpu.memory_space<vmem>>, vector<32x32xf32>
    %cst_20 = arith.constant 0.000000e+00 : f32
    %32 = vector.broadcast %cst_20 : f32 to vector<8x32xf32>
    %33 = vector.extract_strided_slice %28 {offsets = [0, 0], sizes = [8, 8], strides = [1, 1]} : vector<8x96xf32> to vector<8x8xf32>
    %34 = vector.extract_strided_slice %28 {offsets = [0, 32], sizes = [8, 8], strides = [1, 1]} : vector<8x96xf32> to vector<8x8xf32>
    %35 = vector.extract_strided_slice %28 {offsets = [0, 64], sizes = [8, 8], strides = [1, 1]} : vector<8x96xf32> to vector<8x8xf32>
    %cst_21 = arith.constant dense<0.000000e+00> : vector<8x8xf32>
    %36 = tpu.matmul %33, %34, %cst_21 {dimension_numbers = #tpu.dot_dimension_numbers<[1], [1], [0], [0], [0, 0, 1, 0], [], []>} : vector<8x8xf32>, vector<8x8xf32>, vector<8x8xf32> -> vector<8x8xf32>
    %cst_22 = arith.constant 0.353553385 : f32
    %37 = vector.broadcast %cst_22 : f32 to vector<8x8xf32>
    %38 = arith.mulf %36, %37 : vector<8x8xf32>
    %c0_i32 = arith.constant 0 : i32
    %39 = vector.broadcast %c0_i32 : i32 to vector<1x8xi32>
    %40 = arith.cmpi eq, %30, %39 : vector<1x8xi32>
    %cst_23 = arith.constant -1.000000e+09 : f32
    %41 = vector.shape_cast %40 : vector<1x8xi1> to vector<1x8xi1>
    %42 = vector.broadcast %41 : vector<1x8xi1> to vector<8x8xi1>
    %43 = vector.broadcast %cst_23 : f32 to vector<8x8xf32>
    %44 = arith.select %42, %43, %38 : vector<8x8xi1>, vector<8x8xf32>
    %cst_24 = arith.constant dense<0xFF800000> : vector<8xf32>
    %45 = vector.multi_reduction <maximumf>, %44, %cst_24 [1] : vector<8x8xf32> to vector<8xf32>
    %46 = vector.shape_cast %45 : vector<8xf32> to vector<8x1xf32>
    %47 = vector.broadcast %46 : vector<8x1xf32> to vector<8x8xf32>
    %48 = arith.subf %44, %47 : vector<8x8xf32>
    %49 = math.exp %48 : vector<8x8xf32>
    %cst_25 = arith.constant dense<0.000000e+00> : vector<8xf32>
    %50 = vector.multi_reduction <add>, %49, %cst_25 [1] : vector<8x8xf32> to vector<8xf32>
    %51 = vector.shape_cast %50 : vector<8xf32> to vector<8x1xf32>
    %52 = tpu.reciprocal %51 {approx = true} : vector<8x1xf32> -> vector<8x1xf32>
    %53 = vector.broadcast %52 : vector<8x1xf32> to vector<8x8xf32>
    %54 = arith.mulf %49, %53 : vector<8x8xf32>
    %cst_26 = arith.constant dense<0.000000e+00> : vector<8x8xf32>
    %55 = tpu.matmul %54, %35, %cst_26 {dimension_numbers = #tpu.dot_dimension_numbers<[1], [0], [0], [1], [0, 0, 1, 1], [], []>} : vector<8x8xf32>, vector<8x8xf32>, vector<8x8xf32> -> vector<8x8xf32>
    %56 = vector.extract_strided_slice %31 {offsets = [0, 0], sizes = [8, 32], strides = [1, 1]} : vector<32x32xf32> to vector<8x32xf32>
    %cst_27 = arith.constant dense<0.000000e+00> : vector<8x32xf32>
    %57 = tpu.matmul %55, %56, %cst_27 {dimension_numbers = #tpu.dot_dimension_numbers<[1], [0], [0], [1], [0, 0, 1, 1], [], []>} : vector<8x8xf32>, vector<8x32xf32>, vector<8x32xf32> -> vector<8x32xf32>
    %58 = arith.addf %32, %57 : vector<8x32xf32>
    %59 = vector.extract_strided_slice %28 {offsets = [0, 8], sizes = [8, 8], strides = [1, 1]} : vector<8x96xf32> to vector<8x8xf32>
    %60 = vector.extract_strided_slice %28 {offsets = [0, 40], sizes = [8, 8], strides = [1, 1]} : vector<8x96xf32> to vector<8x8xf32>
    %61 = vector.extract_strided_slice %28 {offsets = [0, 72], sizes = [8, 8], strides = [1, 1]} : vector<8x96xf32> to vector<8x8xf32>
    %cst_28 = arith.constant dense<0.000000e+00> : vector<8x8xf32>
    %62 = tpu.matmul %59, %60, %cst_28 {dimension_numbers = #tpu.dot_dimension_numbers<[1], [1], [0], [0], [0, 0, 1, 0], [], []>} : vector<8x8xf32>, vector<8x8xf32>, vector<8x8xf32> -> vector<8x8xf32>
    %cst_29 = arith.constant 0.353553385 : f32
    %63 = vector.broadcast %cst_29 : f32 to vector<8x8xf32>
    %64 = arith.mulf %62, %63 : vector<8x8xf32>
    %c0_i32_30 = arith.constant 0 : i32
    %65 = vector.broadcast %c0_i32_30 : i32 to vector<1x8xi32>
    %66 = arith.cmpi eq, %30, %65 : vector<1x8xi32>
    %cst_31 = arith.constant -1.000000e+09 : f32
    %67 = vector.shape_cast %66 : vector<1x8xi1> to vector<1x8xi1>
    %68 = vector.broadcast %67 : vector<1x8xi1> to vector<8x8xi1>
    %69 = vector.broadcast %cst_31 : f32 to vector<8x8xf32>
    %70 = arith.select %68, %69, %64 : vector<8x8xi1>, vector<8x8xf32>
    %cst_32 = arith.constant dense<0xFF800000> : vector<8xf32>
    %71 = vector.multi_reduction <maximumf>, %70, %cst_32 [1] : vector<8x8xf32> to vector<8xf32>
    %72 = vector.shape_cast %71 : vector<8xf32> to vector<8x1xf32>
    %73 = vector.broadcast %72 : vector<8x1xf32> to vector<8x8xf32>
    %74 = arith.subf %70, %73 : vector<8x8xf32>
    %75 = math.exp %74 : vector<8x8xf32>
    %cst_33 = arith.constant dense<0.000000e+00> : vector<8xf32>
    %76 = vector.multi_reduction <add>, %75, %cst_33 [1] : vector<8x8xf32> to vector<8xf32>
    %77 = vector.shape_cast %76 : vector<8xf32> to vector<8x1xf32>
    %78 = tpu.reciprocal %77 {approx = true} : vector<8x1xf32> -> vector<8x1xf32>
    %79 = vector.broadcast %78 : vector<8x1xf32> to vector<8x8xf32>
    %80 = arith.mulf %75, %79 : vector<8x8xf32>
    %cst_34 = arith.constant dense<0.000000e+00> : vector<8x8xf32>
    %81 = tpu.matmul %80, %61, %cst_34 {dimension_numbers = #tpu.dot_dimension_numbers<[1], [0], [0], [1], [0, 0, 1, 1], [], []>} : vector<8x8xf32>, vector<8x8xf32>, vector<8x8xf32> -> vector<8x8xf32>
    %82 = vector.extract_strided_slice %31 {offsets = [8, 0], sizes = [8, 32], strides = [1, 1]} : vector<32x32xf32> to vector<8x32xf32>
    %cst_35 = arith.constant dense<0.000000e+00> : vector<8x32xf32>
    %83 = tpu.matmul %81, %82, %cst_35 {dimension_numbers = #tpu.dot_dimension_numbers<[1], [0], [0], [1], [0, 0, 1, 1], [], []>} : vector<8x8xf32>, vector<8x32xf32>, vector<8x32xf32> -> vector<8x32xf32>
    %84 = arith.addf %58, %83 : vector<8x32xf32>
    %85 = vector.extract_strided_slice %28 {offsets = [0, 16], sizes = [8, 8], strides = [1, 1]} : vector<8x96xf32> to vector<8x8xf32>
    %86 = vector.extract_strided_slice %28 {offsets = [0, 48], sizes = [8, 8], strides = [1, 1]} : vector<8x96xf32> to vector<8x8xf32>
    %87 = vector.extract_strided_slice %28 {offsets = [0, 80], sizes = [8, 8], strides = [1, 1]} : vector<8x96xf32> to vector<8x8xf32>
    %cst_36 = arith.constant dense<0.000000e+00> : vector<8x8xf32>
    %88 = tpu.matmul %85, %86, %cst_36 {dimension_numbers = #tpu.dot_dimension_numbers<[1], [1], [0], [0], [0, 0, 1, 0], [], []>} : vector<8x8xf32>, vector<8x8xf32>, vector<8x8xf32> -> vector<8x8xf32>
    %cst_37 = arith.constant 0.353553385 : f32
    %89 = vector.broadcast %cst_37 : f32 to vector<8x8xf32>
    %90 = arith.mulf %88, %89 : vector<8x8xf32>
    %c0_i32_38 = arith.constant 0 : i32
    %91 = vector.broadcast %c0_i32_38 : i32 to vector<1x8xi32>
    %92 = arith.cmpi eq, %30, %91 : vector<1x8xi32>
    %cst_39 = arith.constant -1.000000e+09 : f32
    %93 = vector.shape_cast %92 : vector<1x8xi1> to vector<1x8xi1>
    %94 = vector.broadcast %93 : vector<1x8xi1> to vector<8x8xi1>
    %95 = vector.broadcast %cst_39 : f32 to vector<8x8xf32>
    %96 = arith.select %94, %95, %90 : vector<8x8xi1>, vector<8x8xf32>
    %cst_40 = arith.constant dense<0xFF800000> : vector<8xf32>
    %97 = vector.multi_reduction <maximumf>, %96, %cst_40 [1] : vector<8x8xf32> to vector<8xf32>
    %98 = vector.shape_cast %97 : vector<8xf32> to vector<8x1xf32>
    %99 = vector.broadcast %98 : vector<8x1xf32> to vector<8x8xf32>
    %100 = arith.subf %96, %99 : vector<8x8xf32>
    %101 = math.exp %100 : vector<8x8xf32>
    %cst_41 = arith.constant dense<0.000000e+00> : vector<8xf32>
    %102 = vector.multi_reduction <add>, %101, %cst_41 [1] : vector<8x8xf32> to vector<8xf32>
    %103 = vector.shape_cast %102 : vector<8xf32> to vector<8x1xf32>
    %104 = tpu.reciprocal %103 {approx = true} : vector<8x1xf32> -> vector<8x1xf32>
    %105 = vector.broadcast %104 : vector<8x1xf32> to vector<8x8xf32>
    %106 = arith.mulf %101, %105 : vector<8x8xf32>
    %cst_42 = arith.constant dense<0.000000e+00> : vector<8x8xf32>
    %107 = tpu.matmul %106, %87, %cst_42 {dimension_numbers = #tpu.dot_dimension_numbers<[1], [0], [0], [1], [0, 0, 1, 1], [], []>} : vector<8x8xf32>, vector<8x8xf32>, vector<8x8xf32> -> vector<8x8xf32>
    %108 = vector.extract_strided_slice %31 {offsets = [16, 0], sizes = [8, 32], strides = [1, 1]} : vector<32x32xf32> to vector<8x32xf32>
    %cst_43 = arith.constant dense<0.000000e+00> : vector<8x32xf32>
    %109 = tpu.matmul %107, %108, %cst_43 {dimension_numbers = #tpu.dot_dimension_numbers<[1], [0], [0], [1], [0, 0, 1, 1], [], []>} : vector<8x8xf32>, vector<8x32xf32>, vector<8x32xf32> -> vector<8x32xf32>
    %110 = arith.addf %84, %109 : vector<8x32xf32>
    %111 = vector.extract_strided_slice %28 {offsets = [0, 24], sizes = [8, 8], strides = [1, 1]} : vector<8x96xf32> to vector<8x8xf32>
    %112 = vector.extract_strided_slice %28 {offsets = [0, 56], sizes = [8, 8], strides = [1, 1]} : vector<8x96xf32> to vector<8x8xf32>
    %113 = vector.extract_strided_slice %28 {offsets = [0, 88], sizes = [8, 8], strides = [1, 1]} : vector<8x96xf32> to vector<8x8xf32>
    %cst_44 = arith.constant dense<0.000000e+00> : vector<8x8xf32>
    %114 = tpu.matmul %111, %112, %cst_44 {dimension_numbers = #tpu.dot_dimension_numbers<[1], [1], [0], [0], [0, 0, 1, 0], [], []>} : vector<8x8xf32>, vector<8x8xf32>, vector<8x8xf32> -> vector<8x8xf32>
    %cst_45 = arith.constant 0.353553385 : f32
    %115 = vector.broadcast %cst_45 : f32 to vector<8x8xf32>
    %116 = arith.mulf %114, %115 : vector<8x8xf32>
    %c0_i32_46 = arith.constant 0 : i32
    %117 = vector.broadcast %c0_i32_46 : i32 to vector<1x8xi32>
    %118 = arith.cmpi eq, %30, %117 : vector<1x8xi32>
    %cst_47 = arith.constant -1.000000e+09 : f32
    %119 = vector.shape_cast %118 : vector<1x8xi1> to vector<1x8xi1>
    %120 = vector.broadcast %119 : vector<1x8xi1> to vector<8x8xi1>
    %121 = vector.broadcast %cst_47 : f32 to vector<8x8xf32>
    %122 = arith.select %120, %121, %116 : vector<8x8xi1>, vector<8x8xf32>
    %cst_48 = arith.constant dense<0xFF800000> : vector<8xf32>
    %123 = vector.multi_reduction <maximumf>, %122, %cst_48 [1] : vector<8x8xf32> to vector<8xf32>
    %124 = vector.shape_cast %123 : vector<8xf32> to vector<8x1xf32>
    %125 = vector.broadcast %124 : vector<8x1xf32> to vector<8x8xf32>
    %126 = arith.subf %122, %125 : vector<8x8xf32>
    %127 = math.exp %126 : vector<8x8xf32>
    %cst_49 = arith.constant dense<0.000000e+00> : vector<8xf32>
    %128 = vector.multi_reduction <add>, %127, %cst_49 [1] : vector<8x8xf32> to vector<8xf32>
    %129 = vector.shape_cast %128 : vector<8xf32> to vector<8x1xf32>
    %130 = tpu.reciprocal %129 {approx = true} : vector<8x1xf32> -> vector<8x1xf32>
    %131 = vector.broadcast %130 : vector<8x1xf32> to vector<8x8xf32>
    %132 = arith.mulf %127, %131 : vector<8x8xf32>
    %cst_50 = arith.constant dense<0.000000e+00> : vector<8x8xf32>
    %133 = tpu.matmul %132, %113, %cst_50 {dimension_numbers = #tpu.dot_dimension_numbers<[1], [0], [0], [1], [0, 0, 1, 1], [], []>} : vector<8x8xf32>, vector<8x8xf32>, vector<8x8xf32> -> vector<8x8xf32>
    %134 = vector.extract_strided_slice %31 {offsets = [24, 0], sizes = [8, 32], strides = [1, 1]} : vector<32x32xf32> to vector<8x32xf32>
    %cst_51 = arith.constant dense<0.000000e+00> : vector<8x32xf32>
    %135 = tpu.matmul %133, %134, %cst_51 {dimension_numbers = #tpu.dot_dimension_numbers<[1], [0], [0], [1], [0, 0, 1, 1], [], []>} : vector<8x8xf32>, vector<8x32xf32>, vector<8x32xf32> -> vector<8x32xf32>
    %136 = arith.addf %110, %135 : vector<8x32xf32>
    %c0_52 = arith.constant 0 : index
    %c0_53 = arith.constant 0 : index
    %137 = vector.load %arg8[%c0_52, %c0_53] : memref<1x32xf32, #tpu.memory_space<vmem>>, vector<1x32xf32>
    %138 = vector.broadcast %137 : vector<1x32xf32> to vector<8x32xf32>
    %139 = arith.addf %136, %138 : vector<8x32xf32>
    %140 = arith.addf %1, %139 : vector<8x32xf32>
    %c0_54 = arith.constant 0 : index
    %c0_55 = arith.constant 0 : index
    %c0_56 = arith.constant 0 : index
    %141 = vector.load %arg9[%c0_54, %c0_55, %c0_56] : memref<1x8x32xf32, #tpu.memory_space<vmem>>, vector<1x8x32xf32>
    %142 = vector.shape_cast %141 : vector<1x8x32xf32> to vector<8x32xf32>
    %143 = vector.shape_cast %140 : vector<8x32xf32> to vector<1x8x32xf32>
    tpu.vector_store %arg9[%c0_54, %c0_55, %c0_56], %143 {strides = array<i32>} : memref<1x8x32xf32, #tpu.memory_space<vmem>>, vector<1x8x32xf32>,
    return
  }
  func.func @transform_0(%arg0: i32) -> (i32, i32, i32) {
    %c0_i32 = arith.constant 0 : i32
    %c0_i32_0 = arith.constant 0 : i32
    %c0_i32_1 = arith.constant 0 : i32
    return %arg0, %c0_i32, %c0_i32_0 : i32, i32, i32
  }
  func.func @transform_1(%arg0: i32) -> (i32, i32, i32) {
    %c0_i32 = arith.constant 0 : i32
    %c0_i32_0 = arith.constant 0 : i32
    %c0_i32_1 = arith.constant 0 : i32
    return %arg0, %c0_i32, %c0_i32_0 : i32, i32, i32
  }
  func.func @transform_2(%arg0: i32) -> (i32, i32) {
    %c0_i32 = arith.constant 0 : i32
    %c0_i32_0 = arith.constant 0 : i32
    %c0_i32_1 = arith.constant 0 : i32
    return %c0_i32, %c0_i32_0 : i32, i32
  }
  func.func @transform_3(%arg0: i32) -> (i32, i32) {
    %c0_i32 = arith.constant 0 : i32
    %c0_i32_0 = arith.constant 0 : i32
    %c0_i32_1 = arith.constant 0 : i32
    return %c0_i32, %c0_i32_0 : i32, i32
  }
  func.func @transform_4(%arg0: i32) -> (i32, i32) {
    %c0_i32 = arith.constant 0 : i32
    %c0_i32_0 = arith.constant 0 : i32
    %c0_i32_1 = arith.constant 0 : i32
    return %c0_i32, %c0_i32_0 : i32, i32
  }
  func.func @transform_5(%arg0: i32) -> (i32, i32) {
    %c0_i32 = arith.constant 0 : i32
    %c0_i32_0 = arith.constant 0 : i32
    %c0_i32_1 = arith.constant 0 : i32
    return %c0_i32, %c0_i32_0 : i32, i32
  }
  func.func @transform_6(%arg0: i32) -> (i32, i32) {
    %c0_i32 = arith.constant 0 : i32
    %c0_i32_0 = arith.constant 0 : i32
    %c0_i32_1 = arith.constant 0 : i32
    return %c0_i32, %c0_i32_0 : i32, i32
  }
  func.func @transform_7(%arg0: i32) -> (i32, i32) {
    %c0_i32 = arith.constant 0 : i32
    %c0_i32_0 = arith.constant 0 : i32
    %c0_i32_1 = arith.constant 0 : i32
    return %c0_i32, %c0_i32_0 : i32, i32
  }
  func.func @transform_8(%arg0: i32) -> (i32, i32, i32) {
    %c0_i32 = arith.constant 0 : i32
    %c0_i32_0 = arith.constant 0 : i32
    %c0_i32_1 = arith.constant 0 : i32
    return %arg0, %c0_i32, %c0_i32_0 : i32, i32, i32
  }
}

module attributes {stable_mosaic.version = 11 : i64} {
  func.func @_norm_kernel(%arg0: memref<16x32xf32, #tpu.memory_space<vmem>>, %arg1: memref<1x32xf32, #tpu.memory_space<vmem>>, %arg2: memref<1x32xf32, #tpu.memory_space<vmem>>, %arg3: memref<16x32xf32, #tpu.memory_space<vmem>>) attributes {dimension_semantics = [], scalar_prefetch = 0 : i64, scratch_operands = 0 : i64, tpu.core_type = #tpu.core_type<tc>} {
    %c0 = arith.constant 0 : index
    %c0_0 = arith.constant 0 : index
    %0 = vector.load %arg0[%c0, %c0_0] : memref<16x32xf32, #tpu.memory_space<vmem>>, vector<16x32xf32>
    %cst = arith.constant dense<0.000000e+00> : vector<16xf32>
    %1 = vector.multi_reduction <add>, %0, %cst [1] : vector<16x32xf32> to vector<16xf32>
    %2 = vector.shape_cast %1 : vector<16xf32> to vector<16x1xf32>
    %cst_1 = arith.constant 3.200000e+01 : f32
    %3 = vector.broadcast %cst_1 : f32 to vector<16x1xf32>
    %4 = arith.divf %2, %3 : vector<16x1xf32>
    %5 = vector.broadcast %4 : vector<16x1xf32> to vector<16x32xf32>
    %6 = arith.subf %0, %5 : vector<16x32xf32>
    %7 = arith.mulf %6, %6 : vector<16x32xf32>
    %cst_2 = arith.constant dense<0.000000e+00> : vector<16xf32>
    %8 = vector.multi_reduction <add>, %7, %cst_2 [1] : vector<16x32xf32> to vector<16xf32>
    %9 = vector.shape_cast %8 : vector<16xf32> to vector<16x1xf32>
    %cst_3 = arith.constant 0.0322580636 : f32
    %10 = vector.broadcast %cst_3 : f32 to vector<16x1xf32>
    %11 = arith.mulf %9, %10 : vector<16x1xf32>
    %c0_4 = arith.constant 0 : index
    %c0_5 = arith.constant 0 : index
    %12 = vector.load %arg1[%c0_4, %c0_5] : memref<1x32xf32, #tpu.memory_space<vmem>>, vector<1x32xf32>
    %13 = vector.broadcast %12 : vector<1x32xf32> to vector<16x32xf32>
    %14 = arith.mulf %13, %6 : vector<16x32xf32>
    %15 = math.sqrt %11 : vector<16x1xf32>
    %cst_6 = arith.constant 9.99999997E-7 : f32
    %16 = vector.broadcast %cst_6 : f32 to vector<16x1xf32>
    %17 = arith.addf %15, %16 : vector<16x1xf32>
    %18 = vector.broadcast %17 : vector<16x1xf32> to vector<16x32xf32>
    %19 = arith.divf %14, %18 : vector<16x32xf32>
    %c0_7 = arith.constant 0 : index
    %c0_8 = arith.constant 0 : index
    %20 = vector.load %arg2[%c0_7, %c0_8] : memref<1x32xf32, #tpu.memory_space<vmem>>, vector<1x32xf32>
    %21 = vector.broadcast %20 : vector<1x32xf32> to vector<16x32xf32>
    %22 = arith.addf %19, %21 : vector<16x32xf32>
    %c0_9 = arith.constant 0 : index
    %c0_10 = arith.constant 0 : index
    %23 = vector.load %arg3[%c0_9, %c0_10] : memref<16x32xf32, #tpu.memory_space<vmem>>, vector<16x32xf32>
    tpu.vector_store %arg3[%c0_9, %c0_10], %22 {strides = array<i32>} : memref<16x32xf32, #tpu.memory_space<vmem>>, vector<16x32xf32>,
    return
  }
}

</mosaic_0001>

<llo_original>
// kernel: encoder_forward.6
$region0: #{encoder_forward.6}
  #allocation0 [shape = 'u32[]', space=smem, size = 0x4, offset = 0x4, fixed_abs, tag = 'smem constant byte address 0x4 - core index']
  #allocation1 [shape = 'u32[144,128]{1,0:T(1,128)}', space=vmem, size = 0x12000, scoped, tag = 'internal scratch']
  %s0 = inlined_call_operand.vmem [shape: f32[2,8,32], index: 0, kind: input, shape index: {}]
  %s1 = inlined_call_operand.vmem [shape: f32[8,32], index: 1, kind: input, shape index: {}]
  %s2 = inlined_call_operand.vmem [shape: f32[2,8,32], index: 2, kind: output, shape index: {}]
  %s3 = sld [smem:[#allocation0]]
  $region18: #{encoder_forward.6} parent=0
    _
  %s5 = ssub.s32 1, %s3
  %s6 = scalar_select 0, %s5, %s3
  // Predicated region
  $region2: #{encoder_forward.6} parent=0 // pred_check
    _
  $region3: #{encoder_forward.6} parent=0 // pred_check_branch
    %8 = sbr.rel (0) target = $region5
  $region4: #{encoder_forward.6} parent=0 // pred_region
    _
  $region5: #{encoder_forward.6} parent=0 // pred_fallthru
    _
  // Predicated region
  $region6: #{encoder_forward.6} parent=0 // pred_check
    _
  $region7: #{encoder_forward.6} parent=0 // pred_check_branch
    %10 = sbr.rel (0) target = $region9
  $region8: #{encoder_forward.6} parent=0 // pred_region
    _
  $region9: #{encoder_forward.6} parent=0 // pred_fallthru
    _
  %v11 = vld [vmem:[%s0] sm:$0xff]
  %v12 = vld [vmem:[%s0 + $0x8] sm:$0xff]
  %v13 = vmul.f32 %v11, 5.656854
  %v14 = vmul.f32 %v12, 5.656854
  %v15 = vld [vmem:[%s1] sm:$0xff]
  %v16 = vadd.f32 %v13, %v15
  %v17 = vadd.f32 %v14, %v15
  %vm18 = vcmask 261120
  %19 = vst.msk [vmem:[%s2] sm:$0xff] %vm18, %v16
  %20 = vst.msk [vmem:[%s2 + $0x8] sm:$0xff] %vm18, %v17
  // Predicated region
  $region10: #{encoder_forward.6} parent=0 // pred_check
    _
  $region11: #{encoder_forward.6} parent=0 // pred_check_branch
    %22 = sbr.rel (0) target = $region13
  $region12: #{encoder_forward.6} parent=0 // pred_region
    _
  $region13: #{encoder_forward.6} parent=0 // pred_fallthru
    _
  // Predicated region
  $region14: #{encoder_forward.6} parent=0 // pred_check
    _
  $region15: #{encoder_forward.6} parent=0 // pred_check_branch
    %24 = sbr.rel (0) target = $region17
  $region16: #{encoder_forward.6} parent=0 // pred_region
    _
  $region17: #{encoder_forward.6} parent=0 // pred_fallthru
    _

// kernel: encoder_forward.7
$region0: #{encoder_forward.7}
  #allocation0 [shape = 'u32[]', space=smem, size = 0x4, offset = 0x4, fixed_abs, tag = 'smem constant byte address 0x4 - core index']
  #allocation1 [shape = 'u32[144,128]{1,0:T(1,128)}', space=vmem, size = 0x12000, scoped, tag = 'internal scratch']
  %s0 = inlined_call_operand.vmem [shape: f32[2,8,32], index: 0, kind: input, shape index: {}]
  %s1 = inlined_call_operand.vmem [shape: s32[2,1,8], index: 1, kind: input, shape index: {}]
  %s2 = inlined_call_operand.hbm [shape: f32[1,32], index: 2, kind: input, shape index: {}]
  %s3 = inlined_call_operand.hbm [shape: f32[1,32], index: 3, kind: input, shape index: {}]
  %s4 = inlined_call_operand.vmem [shape: f32[32,96], index: 4, kind: input, shape index: {}]
  %s5 = inlined_call_operand.hbm [shape: f32[1,96], index: 5, kind: input, shape index: {}]
  %s6 = inlined_call_operand.hbm [shape: f32[32,32], index: 6, kind: input, shape index: {}]
  %s7 = inlined_call_operand.hbm [shape: f32[1,32], index: 7, kind: input, shape index: {}]
  %s8 = inlined_call_operand.vmem [shape: f32[2,8,32], index: 8, kind: output, shape index: {}]
  %s9 = sld [smem:[#allocation0]]
  $region85: #{encoder_forward.7} parent=0
    _
  %s11 = ssub.s32 1, %s9
  %s12 = scalar_select 0, %s11, %s9
  $region1: #{encoder_forward.7} parent=0
    #allocation2 [shape = 'u8[512]{0}', space=vmem, size = 0x400, scoped, tag = 'input window, operand 2, single buffered']
    #allocation3 [shape = 's32[2]{0}', space=sflag, size = 0x8, scoped, tag = 'scoped memory for encoder_forward.7']
    #allocation4 [shape = 'u8[512]{0}', space=vmem, size = 0x400, scoped, tag = 'input window, operand 3, single buffered']
    #allocation5 [shape = 's32[1]{0}', space=sflag, size = 0x4, scoped, tag = 'scoped memory for encoder_forward.7']
    #allocation6 [shape = 'u8[512]{0}', space=vmem, size = 0x400, scoped, tag = 'input window, operand 5, single buffered']
    #allocation7 [shape = 'u8[16384]{0}', space=vmem, size = 0x4000, scoped, tag = 'input window, operand 6, single buffered']
    #allocation8 [shape = 's32[1]{0}', space=sflag, size = 0x4, scoped, tag = 'scoped memory for encoder_forward.7']
    #allocation9 [shape = 'u8[512]{0}', space=vmem, size = 0x400, scoped, tag = 'input window, operand 7, single buffered']
    %13 = vsyncpa [#allocation3], 0
    %14 = vsyncpa [#allocation5], 0
    %15 = vsyncpa [#allocation8], 0
    loop: start=0, step=1, limit=4
    $region2: #{encoder_forward.7} parent=1 // loop_pre_header
      _
    $region3: #{encoder_forward.7} parent=1 // loop_header
      %s17 = sphi 0, %s21
      %p18 = scmp.ge.s32.totalorder %s17, 4
      %s27 = sphi 0, %s29
      %s30 = sphi 0, %s27
      %s31 = sphi 0, %s30
      %s47 = sphi 0, %s31
      %s53 = sphi 0, %s55
      %s56 = sphi 0, %s53
      %s57 = sphi 0, %s56
      %s73 = sphi 0, %s57
      %s77 = sphi 0, %s77
      %s79 = sphi 0, %s77
      %s80 = sphi 0, %s79
      %s94 = sphi 0, %s80
      %s98 = sphi 0, %s98
      %s100 = sphi 0, %s98
      %s101 = sphi 0, %s100
      %s115 = sphi 0, %s101
      %s119 = sphi 0, %s119
      %s121 = sphi 0, %s119
      %s122 = sphi 0, %s121
      %s136 = sphi 0, %s122
      %s140 = sphi 0, %s140
      %s142 = sphi 0, %s140
      %s143 = sphi 0, %s142
      %s157 = sphi 0, %s143
      %s161 = sphi 0, %s161
      %s163 = sphi 0, %s161
      %s164 = sphi 0, %s163
      %s178 = sphi 0, %s164
      %s182 = sphi 0, %s182
      %s184 = sphi 0, %s182
      %s185 = sphi 0, %s184
      %s199 = sphi 0, %s185
      %s205 = sphi 0, %s207
      %s208 = sphi 0, %s205
      %s209 = sphi 0, %s208
      %s225 = sphi 0, %s209
    $region4: #{encoder_forward.7} parent=1 // loop_header_branch
      %20 = sbr.rel (%p18) target = $region8
    $region5: #{encoder_forward.7} parent=1 // loop_body
      %s22 = ssub.s32 %s17, 1
      %s23 = ssub.s32 %s17, 2
      %s24 = sadd.s32 %s17, 1
      %s25 = ssub.s32 %s17, %s24
      %p26 = scmp.eq.s32.totalorder %s25, 0
      %s28 = sadd.s32 %s27, 1
      %s29 = scalar_select %p26, %s27, %s28
      %p32 = pneg %p26
      %p33 = scmp.eq.s32.totalorder %s17, 1
      %p34 = por %p32, %p33
      %p35 = scmp.ne.s32.totalorder %s27, %s30
      %p36 = scmp.eq.s32.totalorder %s17, 0
      %p37 = por %p35, %p36
      %p38 = scmp.ne.s32.totalorder %s27, %s30
      %p39 = scmp.eq.s32.totalorder %s22, 1
      %p40 = por %p38, %p39
      %p41 = scmp.ne.s32.totalorder %s30, %s31
      %p42 = scmp.eq.s32.totalorder %s22, 0
      %p43 = por %p41, %p42
      %p44 = scmp.ne.s32.totalorder %s30, %s31
      %p45 = scmp.eq.s32.totalorder %s23, 1
      %p46 = por %p44, %p45
      %p48 = scmp.ne.s32.totalorder %s31, %s47
      %p49 = scmp.eq.s32.totalorder %s23, 0
      %p50 = por %p48, %p49
      %s51 = ssub.s32 %s17, %s24
      %p52 = scmp.eq.s32.totalorder %s51, 0
      %s54 = sadd.s32 %s53, 1
      %s55 = scalar_select %p52, %s53, %s54
      %p58 = pneg %p52
      %p59 = scmp.eq.s32.totalorder %s17, 1
      %p60 = por %p58, %p59
      %p61 = scmp.ne.s32.totalorder %s53, %s56
      %p62 = scmp.eq.s32.totalorder %s17, 0
      %p63 = por %p61, %p62
      %p64 = scmp.ne.s32.totalorder %s53, %s56
      %p65 = scmp.eq.s32.totalorder %s22, 1
      %p66 = por %p64, %p65
      %p67 = scmp.ne.s32.totalorder %s56, %s57
      %p68 = scmp.eq.s32.totalorder %s22, 0
      %p69 = por %p67, %p68
      %p70 = scmp.ne.s32.totalorder %s56, %s57
      %p71 = scmp.eq.s32.totalorder %s23, 1
      %p72 = por %p70, %p71
      %p74 = scmp.ne.s32.totalorder %s57, %s73
      %p75 = scmp.eq.s32.totalorder %s23, 0
      %p76 = por %p74, %p75
      %s78 = sadd.s32 %s77, 1
      %p81 = scmp.eq.s32.totalorder %s17, 1
      %p82 = scmp.ne.s32.totalorder %s77, %s79
      %p83 = scmp.eq.s32.totalorder %s17, 0
      %p84 = por %p82, %p83
      %p85 = scmp.ne.s32.totalorder %s77, %s79
      %p86 = scmp.eq.s32.totalorder %s22, 1
      %p87 = por %p85, %p86
      %p88 = scmp.ne.s32.totalorder %s79, %s80
      %p89 = scmp.eq.s32.totalorder %s22, 0
      %p90 = por %p88, %p89
      %p91 = scmp.ne.s32.totalorder %s79, %s80
      %p92 = scmp.eq.s32.totalorder %s23, 1
      %p93 = por %p91, %p92
      %p95 = scmp.ne.s32.totalorder %s80, %s94
      %p96 = scmp.eq.s32.totalorder %s23, 0
      %p97 = por %p95, %p96
      %s99 = sadd.s32 %s98, 1
      %p102 = scmp.eq.s32.totalorder %s17, 1
      %p103 = scmp.ne.s32.totalorder %s98, %s100
      %p104 = scmp.eq.s32.totalorder %s17, 0
      %p105 = por %p103, %p104
      %p106 = scmp.ne.s32.totalorder %s98, %s100
      %p107 = scmp.eq.s32.totalorder %s22, 1
      %p108 = por %p106, %p107
      %p109 = scmp.ne.s32.totalorder %s100, %s101
      %p110 = scmp.eq.s32.totalorder %s22, 0
      %p111 = por %p109, %p110
      %p112 = scmp.ne.s32.totalorder %s100, %s101
      %p113 = scmp.eq.s32.totalorder %s23, 1
      %p114 = por %p112, %p113
      %p116 = scmp.ne.s32.totalorder %s101, %s115
      %p117 = scmp.eq.s32.totalorder %s23, 0
      %p118 = por %p116, %p117
      %s120 = sadd.s32 %s119, 1
      %p123 = scmp.eq.s32.totalorder %s17, 1
      %p124 = scmp.ne.s32.totalorder %s119, %s121
      %p125 = scmp.eq.s32.totalorder %s17, 0
      %p126 = por %p124, %p125
      %p127 = scmp.ne.s32.totalorder %s119, %s121
      %p128 = scmp.eq.s32.totalorder %s22, 1
      %p129 = por %p127, %p128
      %p130 = scmp.ne.s32.totalorder %s121, %s122
      %p131 = scmp.eq.s32.totalorder %s22, 0
      %p132 = por %p130, %p131
      %p133 = scmp.ne.s32.totalorder %s121, %s122
      %p134 = scmp.eq.s32.totalorder %s23, 1
      %p135 = por %p133, %p134
      %p137 = scmp.ne.s32.totalorder %s122, %s136
      %p138 = scmp.eq.s32.totalorder %s23, 0
      %p139 = por %p137, %p138
      %s141 = sadd.s32 %s140, 1
      %p144 = scmp.eq.s32.totalorder %s17, 1
      %p145 = scmp.ne.s32.totalorder %s140, %s142
      %p146 = scmp.eq.s32.totalorder %s17, 0
      %p147 = por %p145, %p146
      %p148 = scmp.ne.s32.totalorder %s140, %s142
      %p149 = scmp.eq.s32.totalorder %s22, 1
      %p150 = por %p148, %p149
      %p151 = scmp.ne.s32.totalorder %s142, %s143
      %p152 = scmp.eq.s32.totalorder %s22, 0
      %p153 = por %p151, %p152
      %p154 = scmp.ne.s32.totalorder %s142, %s143
      %p155 = scmp.eq.s32.totalorder %s23, 1
      %p156 = por %p154, %p155
      %p158 = scmp.ne.s32.totalorder %s143, %s157
      %p159 = scmp.eq.s32.totalorder %s23, 0
      %p160 = por %p158, %p159
      %s162 = sadd.s32 %s161, 1
      %p165 = scmp.eq.s32.totalorder %s17, 1
      %p166 = scmp.ne.s32.totalorder %s161, %s163
      %p167 = scmp.eq.s32.totalorder %s17, 0
      %p168 = por %p166, %p167
      %p169 = scmp.ne.s32.totalorder %s161, %s163
      %p170 = scmp.eq.s32.totalorder %s22, 1
      %p171 = por %p169, %p170
      %p172 = scmp.ne.s32.totalorder %s163, %s164
      %p173 = scmp.eq.s32.totalorder %s22, 0
      %p174 = por %p172, %p173
      %p175 = scmp.ne.s32.totalorder %s163, %s164
      %p176 = scmp.eq.s32.totalorder %s23, 1
      %p177 = por %p175, %p176
      %p179 = scmp.ne.s32.totalorder %s164, %s178
      %p180 = scmp.eq.s32.totalorder %s23, 0
      %p181 = por %p179, %p180
      %s183 = sadd.s32 %s182, 1
      %p186 = scmp.eq.s32.totalorder %s17, 1
      %p187 = scmp.ne.s32.totalorder %s182, %s184
      %p188 = scmp.eq.s32.totalorder %s17, 0
      %p189 = por %p187, %p188
      %p190 = scmp.ne.s32.totalorder %s182, %s184
      %p191 = scmp.eq.s32.totalorder %s22, 1
      %p192 = por %p190, %p191
      %p193 = scmp.ne.s32.totalorder %s184, %s185
      %p194 = scmp.eq.s32.totalorder %s22, 0
      %p195 = por %p193, %p194
      %p196 = scmp.ne.s32.totalorder %s184, %s185
      %p197 = scmp.eq.s32.totalorder %s23, 1
      %p198 = por %p196, %p197
      %p200 = scmp.ne.s32.totalorder %s185, %s199
      %p201 = scmp.eq.s32.totalorder %s23, 0
      %p202 = por %p200, %p201
      %s203 = ssub.s32 %s17, %s24
      %p204 = scmp.eq.s32.totalorder %s203, 0
      %s206 = sadd.s32 %s205, 1
      %s207 = scalar_select %p204, %s205, %s206
      %p210 = pneg %p204
      %p211 = scmp.eq.s32.totalorder %s17, 1
      %p212 = por %p210, %p211
      %p213 = scmp.ne.s32.totalorder %s205, %s208
      %p214 = scmp.eq.s32.totalorder %s17, 0
      %p215 = por %p213, %p214
      %p216 = scmp.ne.s32.totalorder %s205, %s208
      %p217 = scmp.eq.s32.totalorder %s22, 1
      %p218 = por %p216, %p217
      %p219 = scmp.ne.s32.totalorder %s208, %s209
      %p220 = scmp.eq.s32.totalorder %s22, 0
      %p221 = por %p219, %p220
      %p222 = scmp.ne.s32.totalorder %s208, %s209
      %p223 = scmp.eq.s32.totalorder %s23, 1
      %p224 = por %p222, %p223
      %p226 = scmp.ne.s32.totalorder %s209, %s225
      %p227 = scmp.eq.s32.totalorder %s23, 0
      %p228 = por %p226, %p227
      %p229 = scmp.le.s32.totalorder 1, %s17
      %p230 = scmp.lt.s32.totalorder %s17, 3
      %p231 = pnand %p229, %p230
      %p232 = pneg %p231
      // Predicated region
      $region9: #{encoder_forward.7} parent=5 // pred_check
        _
      $region10: #{encoder_forward.7} parent=5 // pred_check_branch
        %234 = sbr.rel (%p231) target = $region12
      $region11: #{encoder_forward.7} parent=5 // pred_region
        %s235 = ssub.s32 %s17, 1
        // Predicated region
        $region13: #{encoder_forward.7} parent=11 // pred_check
          %p236 = pneg %p90
        $region14: #{encoder_forward.7} parent=11 // pred_check_branch
          %238 = sbr.rel (%p236) target = $region16
        $region15: #{encoder_forward.7} parent=11 // pred_region
          %s240 = ssub.s32 16, 16
          %241 = vsyncadd [#allocation3], %s240
          %s243 = sshll.u32 [#allocation2], 4
          %s244 = int_to_ptr.vmem [resolvable:$true] %s243
          %246 = dma.hbm_to_vmem [thread:$0]  %s2, 16, %s244, [#allocation3]
        $region16: #{encoder_forward.7} parent=11 // pred_fallthru
          _
        // Predicated region
        $region17: #{encoder_forward.7} parent=11 // pred_check
          %p247 = pneg %p111
        $region18: #{encoder_forward.7} parent=11 // pred_check_branch
          %249 = sbr.rel (%p247) target = $region20
        $region19: #{encoder_forward.7} parent=11 // pred_region
          %s251 = ssub.s32 16, 16
          %252 = vsyncadd [#allocation5], %s251
          %s254 = sshll.u32 [#allocation4], 4
          %s255 = int_to_ptr.vmem [resolvable:$true] %s254
          %257 = dma.hbm_to_vmem [thread:$0]  %s3, 16, %s255, [#allocation5]
        $region20: #{encoder_forward.7} parent=11 // pred_fallthru
          _
        // Predicated region
        $region21: #{encoder_forward.7} parent=11 // pred_check
          %p258 = pneg %p132
        $region22: #{encoder_forward.7} parent=11 // pred_check_branch
          %260 = sbr.rel (%p258) target = $region24
        $region23: #{encoder_forward.7} parent=11 // pred_region
          _
        $region24: #{encoder_forward.7} parent=11 // pred_fallthru
          _
        // Predicated region
        $region25: #{encoder_forward.7} parent=11 // pred_check
          %p261 = pneg %p153
        $region26: #{encoder_forward.7} parent=11 // pred_check_branch
          %263 = sbr.rel (%p261) target = $region28
        $region27: #{encoder_forward.7} parent=11 // pred_region
          %s265 = ssub.s32 16, 16
          %266 = vsyncadd [#allocation5], %s265
          %s268 = sshll.u32 [#allocation6], 4
          %s269 = int_to_ptr.vmem [resolvable:$true] %s268
          %271 = dma.hbm_to_vmem [thread:$0]  %s5, 16, %s269, [#allocation5]
        $region28: #{encoder_forward.7} parent=11 // pred_fallthru
          _
        // Predicated region
        $region29: #{encoder_forward.7} parent=11 // pred_check
          %p272 = pneg %p174
        $region30: #{encoder_forward.7} parent=11 // pred_check_branch
          %274 = sbr.rel (%p272) target = $region32
        $region31: #{encoder_forward.7} parent=11 // pred_region
          %s276 = ssub.s32 512, 512
          %277 = vsyncadd [#allocation8], %s276
          %s278 = sshll.u32 [#allocation7], 4
          %s279 = int_to_ptr.vmem [resolvable:$true] %s278
          %284 = dma.hbm_to_vmem [thread:$0]  %s6, 512, %s279, [#allocation8], 128, 128, 8
        $region32: #{encoder_forward.7} parent=11 // pred_fallthru
          _
        // Predicated region
        $region33: #{encoder_forward.7} parent=11 // pred_check
          %p285 = pneg %p195
        $region34: #{encoder_forward.7} parent=11 // pred_check_branch
          %287 = sbr.rel (%p285) target = $region36
        $region35: #{encoder_forward.7} parent=11 // pred_region
          %s289 = ssub.s32 16, 16
          %290 = vsyncadd [#allocation8], %s289
          %s292 = sshll.u32 [#allocation9], 4
          %s293 = int_to_ptr.vmem [resolvable:$true] %s292
          %295 = dma.hbm_to_vmem [thread:$0]  %s7, 16, %s293, [#allocation8]
        $region36: #{encoder_forward.7} parent=11 // pred_fallthru
          _
      $region12: #{encoder_forward.7} parent=5 // pred_fallthru
        _
      %p296 = scmp.lt.s32.totalorder %s17, 2
      // Predicated region
      $region37: #{encoder_forward.7} parent=5 // pred_check
        %p297 = pneg %p296
      $region38: #{encoder_forward.7} parent=5 // pred_check_branch
        %299 = sbr.rel (%p297) target = $region40
      $region39: #{encoder_forward.7} parent=5 // pred_region
        // Predicated region
        $region41: #{encoder_forward.7} parent=39 // pred_check
          %p300 = pneg %p37
        $region42: #{encoder_forward.7} parent=39 // pred_check_branch
          %302 = sbr.rel (%p300) target = $region44
        $region43: #{encoder_forward.7} parent=39 // pred_region
          %p303 = scmp.lt.s32.totalorder %s17, 1
          %s304 = scalar_select %p303, %s17, 1
          %s305 = smul.addr %s304, 8
          %s306 = scalar_lea.vmem %s0, %s305
        $region44: #{encoder_forward.7} parent=39 // pred_fallthru
          _
        // Predicated region
        $region45: #{encoder_forward.7} parent=39 // pred_check
          %p307 = pneg %p63
        $region46: #{encoder_forward.7} parent=39 // pred_check_branch
          %309 = sbr.rel (%p307) target = $region48
        $region47: #{encoder_forward.7} parent=39 // pred_region
          %p310 = scmp.lt.s32.totalorder %s17, 1
          %s311 = scalar_select %p310, %s17, 1
          %s312 = scalar_lea.vmem %s1, %s311
        $region48: #{encoder_forward.7} parent=39 // pred_fallthru
          _
      $region40: #{encoder_forward.7} parent=5 // pred_fallthru
        _
      %p313 = scmp.le.s32.totalorder 1, %s17
      %p314 = scmp.lt.s32.totalorder %s17, 3
      %p315 = pnand %p313, %p314
      %p316 = pneg %p315
      // Predicated region
      $region49: #{encoder_forward.7} parent=5 // pred_check
        _
      $region50: #{encoder_forward.7} parent=5 // pred_check_branch
        %318 = sbr.rel (%p315) target = $region52
      $region51: #{encoder_forward.7} parent=5 // pred_region
        %s319 = ssub.s32 %s17, 1
        // Predicated region
        $region53: #{encoder_forward.7} parent=51 // pred_check
          %p320 = pneg %p90
        $region54: #{encoder_forward.7} parent=51 // pred_check_branch
          %322 = sbr.rel (%p320) target = $region56
        $region55: #{encoder_forward.7} parent=51 // pred_region
          %323 = dma.done [#allocation3], 16
        $region56: #{encoder_forward.7} parent=51 // pred_fallthru
          _
        // Predicated region
        $region57: #{encoder_forward.7} parent=51 // pred_check
          %p324 = pneg %p111
        $region58: #{encoder_forward.7} parent=51 // pred_check_branch
          %326 = sbr.rel (%p324) target = $region60
        $region59: #{encoder_forward.7} parent=51 // pred_region
          %327 = dma.done [#allocation5], 16
        $region60: #{encoder_forward.7} parent=51 // pred_fallthru
          _
        // Predicated region
        $region61: #{encoder_forward.7} parent=51 // pred_check
          %p328 = pneg %p153
        $region62: #{encoder_forward.7} parent=51 // pred_check_branch
          %330 = sbr.rel (%p328) target = $region64
        $region63: #{encoder_forward.7} parent=51 // pred_region
          %331 = dma.done [#allocation5], 16
        $region64: #{encoder_forward.7} parent=51 // pred_fallthru
          _
        // Predicated region
        $region65: #{encoder_forward.7} parent=51 // pred_check
          %p332 = pneg %p174
        $region66: #{encoder_forward.7} parent=51 // pred_check_branch
          %334 = sbr.rel (%p332) target = $region68
        $region67: #{encoder_forward.7} parent=51 // pred_region
          %335 = dma.done [#allocation8], 512
        $region68: #{encoder_forward.7} parent=51 // pred_fallthru
          _
        // Predicated region
        $region69: #{encoder_forward.7} parent=51 // pred_check
          %p336 = pneg %p195
        $region70: #{encoder_forward.7} parent=51 // pred_check_branch
          %338 = sbr.rel (%p336) target = $region72
        $region71: #{encoder_forward.7} parent=51 // pred_region
          %339 = dma.done [#allocation8], 16
        $region72: #{encoder_forward.7} parent=51 // pred_fallthru
          _
        %p340 = scmp.lt.s32.totalorder %s22, 1
        %s341 = scalar_select %p340, %s22, 1
        %s342 = smul.addr %s341, 8
        %s343 = scalar_lea.vmem %s0, %s342
        %p344 = pneg %p43
        %p345 = pneg %p40
        %p346 = scmp.lt.s32.totalorder %s22, 1
        %s347 = scalar_select %p346, %s22, 1
        %s348 = scalar_lea.vmem %s1, %s347
        %p349 = pneg %p69
        %p350 = pneg %p66
        %p351 = pneg %p90
        %p352 = pneg %p87
        %p353 = pneg %p111
        %p354 = pneg %p108
        %p355 = pneg %p132
        %p356 = pneg %p129
        %p357 = pneg %p153
        %p358 = pneg %p150
        %p359 = pneg %p174
        %p360 = pneg %p171
        %p361 = pneg %p195
        %p362 = pneg %p192
        %p363 = pneg %p221
        %p364 = pneg %p218
        %p365 = scmp.lt.s32.totalorder %s22, 1
        %s366 = scalar_select %p365, %s22, 1
        %s367 = smul.addr %s366, 8
        %s368 = scalar_lea.vmem %s8, %s367
        %p369 = scmp.lt.s32.totalorder %s22, 1
        %s370 = scalar_select %p369, %s22, 1
        %s371 = smul.addr %s370, 8
        %s372 = scalar_lea.vmem %s0, %s371
        %p373 = scmp.lt.s32.totalorder %s22, 1
        %s374 = scalar_select %p373, %s22, 1
        %s375 = scalar_lea.vmem %s1, %s374
        %p376 = scmp.lt.s32.totalorder %s22, 1
        %s377 = scalar_select %p376, %s22, 1
        %s378 = smul.addr %s377, 8
        %s379 = scalar_lea.vmem %s8, %s378
        %v380 = vld [vmem:[%s372] sm:$0xff]
        %vm381 = vcmask 261120
        %v382 = vsel %vm381, %v380, 0.0
        %383 = vadd.xlane.f32.xlu0 %v382
        %v384 = vpop.xlane.xlu0 %383
        %v385 = vrcp.pop 32.0
        %v386 = vmul.f32 %v384, %v385
        %v387 = vsub.f32 %v380, %v386
        %v388 = vmul.f32 %v387, %v387
        %v389 = vsel %vm381, %v388, 0.0
        %390 = vadd.xlane.f32.xlu0 %v389
        %v391 = vpop.xlane.xlu0 %390
        %v392 = vmul.f32 %v391, 0.032258064
        %v393 = vld [vmem:[#allocation2] sm:$0x1]
        %v395 = vlaneseq
        %v396 = vshrl.u32 %v395, 7
        %v397 = vsub.s32 0, %v396
        %v398 = vrot.slane %v393, %v397
        %v400 = vmul.f32 %v398, %v387
        %v401 = vrsqrt.pop %v392
        %v402 = vmul.f32 %v392, %v401
        %vm403 = vcmp.eq.f32.partialorder %v392, inf
        %v404 = vsel %vm403, %v392, %v402
        %vm405 = vcmp.eq.f32.partialorder %v392, 0.0
        %v406 = vand.u32 %v392, 2147483648
        %v407 = vsel %vm405, %v406, %v404
        %v408 = vadd.f32 %v407, 1e-06
        %v409 = vrcp.pop %v408
        %v410 = vmul.f32 %v400, %v409
        %v411 = vld [vmem:[#allocation4] sm:$0x1]
        %v413 = vlaneseq
        %v414 = vshrl.u32 %v413, 7
        %v415 = vsub.s32 0, %v414
        %v416 = vrot.slane %v411, %v415
        %v418 = vadd.f32 %v410, %v416
        %v419 = vld [vmem:[%s4] sm:$0xff]
        %v420 = vld [vmem:[%s4 + $0x8] sm:$0xff]
        %v421 = vld [vmem:[%s4 + $0x10] sm:$0xff]
        %v422 = vld [vmem:[%s4 + $0x18] sm:$0xff]
        %v423 = vld [vmem:[#allocation6] sm:$0x1]
        %v425 = vlaneseq
        %v426 = vshrl.u32 %v425, 7
        %v427 = vsub.s32 0, %v426
        %v428 = vrot.slane %v423, %v427
        %v431 = vsel %vm381, %v418, 0
        %433 = vmatprep.subr.mxu0 0.0
        %434 = vmatpush1.msra.mxu0 %v419
        %435 = vmatprep.subr.mxu0 0.0
        %436 = vmatpush1.msra.mxu0 %v420
        %437 = vmatprep.subr.mxu0 0.0
        %438 = vmatpush1.msra.mxu0 %v421
        %439 = vmatprep.subr.mxu0 0.0
        %440 = vmatpush1.msra.mxu0 %v422
        %441 = vmatprep.subr.mxu0 0.0
        %442 = vmatpush1.msra.mxu0 0.0
        %443 = vmatprep.subr.mxu0 0.0
        %444 = vmatpush1.msra.mxu0 0.0
        %445 = vmatprep.subr.mxu0 0.0
        %446 = vmatpush1.msra.mxu0 0.0
        %447 = vmatprep.subr.mxu0 0.0
        %448 = vmatpush1.msra.mxu0 0.0
        %449 = vmatprep.subr.mxu0 0.0
        %450 = vmatpush1.msra.mxu0 0.0
        %451 = vmatprep.subr.mxu0 0.0
        %452 = vmatpush1.msra.mxu0 0.0
        %453 = vmatprep.subr.mxu0 0.0
        %454 = vmatpush1.msra.mxu0 0.0
        %455 = vmatprep.subr.mxu0 0.0
        %456 = vmatpush1.msra.mxu0 0.0
        %457 = vmatprep.subr.mxu0 0.0
        %458 = vmatpush1.msra.mxu0 0.0
        %459 = vmatprep.subr.mxu0 0.0
        %460 = vmatpush1.msra.mxu0 0.0
        %461 = vmatprep.subr.mxu0 0.0
        %462 = vmatpush1.msra.mxu0 0.0
        %463 = vmatprep.subr.mxu0 0.0
        %464 = vmatpush1.msra.mxu0 0.0
        %465 = vmatprep.subr.mxu0 0.0
        %466 = vmatpush1.msra.mxu0 0.0
        %467 = vmatprep.subr.mxu0 0.0
        %468 = vmatpush1.msra.mxu0 0.0
        %469 = vmatprep.subr.mxu0 0.0
        %470 = vmatpush1.msra.mxu0 0.0
        %471 = vmatprep.subr.mxu0 0.0
        %472 = vmatpush1.msra.mxu0 0.0
        %473 = vmatprep.subr.mxu0 0.0
        %474 = vmatpush1.msra.mxu0 0.0
        %475 = vmatprep.subr.mxu0 0.0
        %476 = vmatpush1.msra.mxu0 0.0
        %477 = vmatprep.subr.mxu0 0.0
        %478 = vmatpush1.msra.mxu0 0.0
        %479 = vmatprep.subr.mxu0 0.0
        %480 = vmatpush1.msra.mxu0 0.0
        %481 = vmatprep.subr.mxu0 0.0
        %482 = vmatpush1.msra.mxu0 0.0
        %483 = vmatprep.subr.mxu0 0.0
        %484 = vmatpush1.msra.mxu0 0.0
        %485 = vmatprep.subr.mxu0 0.0
        %486 = vmatpush1.msra.mxu0 0.0
        %487 = vmatprep.subr.mxu0 0.0
        %488 = vmatpush1.msra.mxu0 0.0
        %489 = vmatprep.subr.mxu0 0.0
        %490 = vmatpush1.msra.mxu0 0.0
        %491 = vmatprep.subr.mxu0 0.0
        %492 = vmatpush1.msra.mxu0 0.0
        %493 = vmatprep.subr.mxu0 0.0
        %494 = vmatpush1.msra.mxu0 0.0
        %495 = vmatprep.subr.mxu0 0.0
        %496 = vmatpush1.msra.mxu0 0.0
        %497 = vmatprep.mubr.f32.mxu0 0.0
        %498 = vmatmul.mubr.f32.gmra.mrb[0].mxu0 %v431
        %v499 = vpop.f32.mrb[0].mxu0
        %v500 = vadd.f32 %v428, %v499
        %v501 = vpop.f32.mrb[0].mxu0
        %502 = vdwg.mxu0
        %v503 = vld [vmem:[%s375] sm:$0x1]
        %v504 = vld [vmem:[#allocation7] sm:$0xff]
        %v505 = vld [vmem:[#allocation7 + $0x8] sm:$0xff]
        %v506 = vld [vmem:[#allocation7 + $0x10] sm:$0xff]
        %v507 = vld [vmem:[#allocation7 + $0x18] sm:$0xff]
        %509 = vrot.lane.b32.xlu0 %v500, 96
        %v510 = vpop.permute.xlu0 %509
        %vm511 = vcmask 64512
        %v512 = vsel %vm511, %v500, 0
        %v514 = vsel %vm511, %v510, 0
        %516 = vmatprep.subr.mxu0 0.0
        %517 = vmatpush1.xpose.msra.mxu0 %v514
        %518 = vmatprep.subr.mxu0 0.0
        %519 = vmatpush1.xpose.msra.mxu0 0.0
        %520 = vmatprep.subr.mxu0 0.0
        %521 = vmatpush1.xpose.msra.mxu0 0.0
        %522 = vmatprep.subr.mxu0 0.0
        %523 = vmatpush1.xpose.msra.mxu0 0.0
        %524 = vmatprep.subr.mxu0 0.0
        %525 = vmatpush1.xpose.msra.mxu0 0.0
        %526 = vmatprep.subr.mxu0 0.0
        %527 = vmatpush1.xpose.msra.mxu0 0.0
        %528 = vmatprep.subr.mxu0 0.0
        %529 = vmatpush1.xpose.msra.mxu0 0.0
        %530 = vmatprep.subr.mxu0 0.0
        %531 = vmatpush1.xpose.msra.mxu0 0.0
        %532 = vmatprep.subr.mxu0 0.0
        %533 = vmatpush1.xpose.msra.mxu0 0.0
        %534 = vmatprep.subr.mxu0 0.0
        %535 = vmatpush1.xpose.msra.mxu0 0.0
        %536 = vmatprep.subr.mxu0 0.0
        %537 = vmatpush1.xpose.msra.mxu0 0.0
        %538 = vmatprep.subr.mxu0 0.0
        %539 = vmatpush1.xpose.msra.mxu0 0.0
        %540 = vmatprep.subr.mxu0 0.0
        %541 = vmatpush1.xpose.msra.mxu0 0.0
        %542 = vmatprep.subr.mxu0 0.0
        %543 = vmatpush1.xpose.msra.mxu0 0.0
        %544 = vmatprep.subr.mxu0 0.0
        %545 = vmatpush1.xpose.msra.mxu0 0.0
        %546 = vmatprep.subr.mxu0 0.0
        %547 = vmatpush1.xpose.msra.mxu0 0.0
        %548 = vmatprep.subr.mxu0 0.0
        %549 = vmatpush1.xpose.msra.mxu0 0.0
        %550 = vmatprep.subr.mxu0 0.0
        %551 = vmatpush1.xpose.msra.mxu0 0.0
        %552 = vmatprep.subr.mxu0 0.0
        %553 = vmatpush1.xpose.msra.mxu0 0.0
        %554 = vmatprep.subr.mxu0 0.0
        %555 = vmatpush1.xpose.msra.mxu0 0.0
        %556 = vmatprep.subr.mxu0 0.0
        %557 = vmatpush1.xpose.msra.mxu0 0.0
        %558 = vmatprep.subr.mxu0 0.0
        %559 = vmatpush1.xpose.msra.mxu0 0.0
        %560 = vmatprep.subr.mxu0 0.0
        %561 = vmatpush1.xpose.msra.mxu0 0.0
        %562 = vmatprep.subr.mxu0 0.0
        %563 = vmatpush1.xpose.msra.mxu0 0.0
        %564 = vmatprep.subr.mxu0 0.0
        %565 = vmatpush1.xpose.msra.mxu0 0.0
        %566 = vmatprep.subr.mxu0 0.0
        %567 = vmatpush1.xpose.msra.mxu0 0.0
        %568 = vmatprep.subr.mxu0 0.0
        %569 = vmatpush1.xpose.msra.mxu0 0.0
        %570 = vmatprep.subr.mxu0 0.0
        %571 = vmatpush1.xpose.msra.mxu0 0.0
        %572 = vmatprep.subr.mxu0 0.0
        %573 = vmatpush1.xpose.msra.mxu0 0.0
        %574 = vmatprep.subr.mxu0 0.0
        %575 = vmatpush1.xpose.msra.mxu0 0.0
        %576 = vmatprep.subr.mxu0 0.0
        %577 = vmatpush1.xpose.msra.mxu0 0.0
        %578 = vmatprep.subr.mxu0 0.0
        %579 = vmatpush1.xpose.msra.mxu0 0.0
        %580 = vmatprep.mubr.f32.mxu0 0.0
        %581 = vmatmul.mubr.f32.gmra.mrb[0].mxu0 %v512
        %v582 = vpop.f32.mrb[0].mxu0
        %v583 = vadd.f32 0.0, %v582
        %v584 = vpop.f32.mrb[0].mxu0
        %585 = vdwg.mxu0
        %v586 = vmul.f32 %v583, 0.35355338
        %vm587 = vcmp.eq.s32.totalorder %v503, 0
        %v588 = vsel %vm587, 1, 0
        %v589 = vlaneseq
        %v590 = vshrl.u32 %v589, 7
        %v591 = vsub.s32 0, %v590
        %v592 = vrot.slane %v588, %v591
        %vm593 = vcmp.eq.s32.totalorder %v592, 1
        %v594 = vsel %vm593, -1e+09, %v586
        %v595 = vsel %vm511, %v594, -inf
        %596 = vmax.xlane.f32.xlu0 %v595
        %v597 = vpop.xlane.xlu0 %596
        %v598 = vsub.f32 %v594, %v597
        %v599 = vmul.f32 %v598, 1.442695
        %v600 = vpow.pop %v599
        %v601 = vsel %vm511, %v600, 0.0
        %602 = vadd.xlane.f32.xlu0 %v601
        %v603 = vpop.xlane.xlu0 %602
        %v604 = vrcp.pop %v603
        %v605 = vmul.f32 %v600, %v604
        %606 = vrot.lane.b32.xlu0 %v500, 64
        %v607 = vpop.permute.xlu0 %606
        %v610 = vsel %vm511, %v605, 0
        %612 = vmatprep.subr.mxu0 0.0
        %613 = vmatpush1.msra.mxu0 %v607
        %614 = vmatprep.subr.mxu0 0.0
        %615 = vmatpush1.msra.mxu0 0.0
        %616 = vmatprep.subr.mxu0 0.0
        %617 = vmatpush1.msra.mxu0 0.0
        %618 = vmatprep.subr.mxu0 0.0
        %619 = vmatpush1.msra.mxu0 0.0
        %620 = vmatprep.subr.mxu0 0.0
        %621 = vmatpush1.msra.mxu0 0.0
        %622 = vmatprep.subr.mxu0 0.0
        %623 = vmatpush1.msra.mxu0 0.0
        %624 = vmatprep.subr.mxu0 0.0
        %625 = vmatpush1.msra.mxu0 0.0
        %626 = vmatprep.subr.mxu0 0.0
        %627 = vmatpush1.msra.mxu0 0.0
        %628 = vmatprep.subr.mxu0 0.0
        %629 = vmatpush1.msra.mxu0 0.0
        %630 = vmatprep.subr.mxu0 0.0
        %631 = vmatpush1.msra.mxu0 0.0
        %632 = vmatprep.subr.mxu0 0.0
        %633 = vmatpush1.msra.mxu0 0.0
        %634 = vmatprep.subr.mxu0 0.0
        %635 = vmatpush1.msra.mxu0 0.0
        %636 = vmatprep.subr.mxu0 0.0
        %637 = vmatpush1.msra.mxu0 0.0
        %638 = vmatprep.subr.mxu0 0.0
        %639 = vmatpush1.msra.mxu0 0.0
        %640 = vmatprep.subr.mxu0 0.0
        %641 = vmatpush1.msra.mxu0 0.0
        %642 = vmatprep.subr.mxu0 0.0
        %643 = vmatpush1.msra.mxu0 0.0
        %644 = vmatprep.subr.mxu0 0.0
        %645 = vmatpush1.msra.mxu0 0.0
        %646 = vmatprep.subr.mxu0 0.0
        %647 = vmatpush1.msra.mxu0 0.0
        %648 = vmatprep.subr.mxu0 0.0
        %649 = vmatpush1.msra.mxu0 0.0
        %650 = vmatprep.subr.mxu0 0.0
        %651 = vmatpush1.msra.mxu0 0.0
        %652 = vmatprep.subr.mxu0 0.0
        %653 = vmatpush1.msra.mxu0 0.0
        %654 = vmatprep.subr.mxu0 0.0
        %655 = vmatpush1.msra.mxu0 0.0
        %656 = vmatprep.subr.mxu0 0.0
        %657 = vmatpush1.msra.mxu0 0.0
        %658 = vmatprep.subr.mxu0 0.0
        %659 = vmatpush1.msra.mxu0 0.0
        %660 = vmatprep.subr.mxu0 0.0
        %661 = vmatpush1.msra.mxu0 0.0
        %662 = vmatprep.subr.mxu0 0.0
        %663 = vmatpush1.msra.mxu0 0.0
        %664 = vmatprep.subr.mxu0 0.0
        %665 = vmatpush1.msra.mxu0 0.0
        %666 = vmatprep.subr.mxu0 0.0
        %667 = vmatpush1.msra.mxu0 0.0
        %668 = vmatprep.subr.mxu0 0.0
        %669 = vmatpush1.msra.mxu0 0.0
        %670 = vmatprep.subr.mxu0 0.0
        %671 = vmatpush1.msra.mxu0 0.0
        %672 = vmatprep.subr.mxu0 0.0
        %673 = vmatpush1.msra.mxu0 0.0
        %674 = vmatprep.subr.mxu0 0.0
        %675 = vmatpush1.msra.mxu0 0.0
        %676 = vmatprep.mubr.f32.mxu0 0.0
        %677 = vmatmul.mubr.f32.gmra.mrb[0].mxu0 %v610
        %v678 = vpop.f32.mrb[0].mxu0
        %v679 = vadd.f32 0.0, %v678
        %v680 = vpop.f32.mrb[0].mxu0
        %681 = vdwg.mxu0
        %682 = vrot.lane.b32.xlu0 %v500, 120
        %v683 = vpop.permute.xlu0 %682
        %684 = vrot.lane.b32.xlu0 %v500, 88
        %v685 = vpop.permute.xlu0 %684
        %v686 = vsel %vm511, %v683, 0
        %v688 = vsel %vm511, %v685, 0
        %690 = vmatprep.subr.mxu0 0.0
        %691 = vmatpush1.xpose.msra.mxu0 %v688
        %692 = vmatprep.subr.mxu0 0.0
        %693 = vmatpush1.xpose.msra.mxu0 0.0
        %694 = vmatprep.subr.mxu0 0.0
        %695 = vmatpush1.xpose.msra.mxu0 0.0
        %696 = vmatprep.subr.mxu0 0.0
        %697 = vmatpush1.xpose.msra.mxu0 0.0
        %698 = vmatprep.subr.mxu0 0.0
        %699 = vmatpush1.xpose.msra.mxu0 0.0
        %700 = vmatprep.subr.mxu0 0.0
        %701 = vmatpush1.xpose.msra.mxu0 0.0
        %702 = vmatprep.subr.mxu0 0.0
        %703 = vmatpush1.xpose.msra.mxu0 0.0
        %704 = vmatprep.subr.mxu0 0.0
        %705 = vmatpush1.xpose.msra.mxu0 0.0
        %706 = vmatprep.subr.mxu0 0.0
        %707 = vmatpush1.xpose.msra.mxu0 0.0
        %708 = vmatprep.subr.mxu0 0.0
        %709 = vmatpush1.xpose.msra.mxu0 0.0
        %710 = vmatprep.subr.mxu0 0.0
        %711 = vmatpush1.xpose.msra.mxu0 0.0
        %712 = vmatprep.subr.mxu0 0.0
        %713 = vmatpush1.xpose.msra.mxu0 0.0
        %714 = vmatprep.subr.mxu0 0.0
        %715 = vmatpush1.xpose.msra.mxu0 0.0
        %716 = vmatprep.subr.mxu0 0.0
        %717 = vmatpush1.xpose.msra.mxu0 0.0
        %718 = vmatprep.subr.mxu0 0.0
        %719 = vmatpush1.xpose.msra.mxu0 0.0
        %720 = vmatprep.subr.mxu0 0.0
        %721 = vmatpush1.xpose.msra.mxu0 0.0
        %722 = vmatprep.subr.mxu0 0.0
        %723 = vmatpush1.xpose.msra.mxu0 0.0
        %724 = vmatprep.subr.mxu0 0.0
        %725 = vmatpush1.xpose.msra.mxu0 0.0
        %726 = vmatprep.subr.mxu0 0.0
        %727 = vmatpush1.xpose.msra.mxu0 0.0
        %728 = vmatprep.subr.mxu0 0.0
        %729 = vmatpush1.xpose.msra.mxu0 0.0
        %730 = vmatprep.subr.mxu0 0.0
        %731 = vmatpush1.xpose.msra.mxu0 0.0
        %732 = vmatprep.subr.mxu0 0.0
        %733 = vmatpush1.xpose.msra.mxu0 0.0
        %734 = vmatprep.subr.mxu0 0.0
        %735 = vmatpush1.xpose.msra.mxu0 0.0
        %736 = vmatprep.subr.mxu0 0.0
        %737 = vmatpush1.xpose.msra.mxu0 0.0
        %738 = vmatprep.subr.mxu0 0.0
        %739 = vmatpush1.xpose.msra.mxu0 0.0
        %740 = vmatprep.subr.mxu0 0.0
        %741 = vmatpush1.xpose.msra.mxu0 0.0
        %742 = vmatprep.subr.mxu0 0.0
        %743 = vmatpush1.xpose.msra.mxu0 0.0
        %744 = vmatprep.subr.mxu0 0.0
        %745 = vmatpush1.xpose.msra.mxu0 0.0
        %746 = vmatprep.subr.mxu0 0.0
        %747 = vmatpush1.xpose.msra.mxu0 0.0
        %748 = vmatprep.subr.mxu0 0.0
        %749 = vmatpush1.xpose.msra.mxu0 0.0
        %750 = vmatprep.subr.mxu0 0.0
        %751 = vmatpush1.xpose.msra.mxu0 0.0
        %752 = vmatprep.subr.mxu0 0.0
        %753 = vmatpush1.xpose.msra.mxu0 0.0
        %754 = vmatprep.mubr.f32.mxu0 0.0
        %755 = vmatmul.mubr.f32.gmra.mrb[0].mxu0 %v686
        %v756 = vpop.f32.mrb[0].mxu0
        %v757 = vadd.f32 0.0, %v756
        %v758 = vpop.f32.mrb[0].mxu0
        %759 = vdwg.mxu0
        %v760 = vmul.f32 %v757, 0.35355338
        %v761 = vsel %vm593, -1e+09, %v760
        %v762 = vsel %vm511, %v761, -inf
        %763 = vmax.xlane.f32.xlu0 %v762
        %v764 = vpop.xlane.xlu0 %763
        %v765 = vsub.f32 %v761, %v764
        %v766 = vmul.f32 %v765, 1.442695
        %v767 = vpow.pop %v766
        %v768 = vsel %vm511, %v767, 0.0
        %769 = vadd.xlane.f32.xlu0 %v768
        %v770 = vpop.xlane.xlu0 %769
        %v771 = vrcp.pop %v770
        %v772 = vmul.f32 %v767, %v771
        %773 = vrot.lane.b32.xlu0 %v500, 56
        %v774 = vpop.permute.xlu0 %773
        %v777 = vsel %vm511, %v772, 0
        %779 = vmatprep.subr.mxu0 0.0
        %780 = vmatpush1.msra.mxu0 %v774
        %781 = vmatprep.subr.mxu0 0.0
        %782 = vmatpush1.msra.mxu0 0.0
        %783 = vmatprep.subr.mxu0 0.0
        %784 = vmatpush1.msra.mxu0 0.0
        %785 = vmatprep.subr.mxu0 0.0
        %786 = vmatpush1.msra.mxu0 0.0
        %787 = vmatprep.subr.mxu0 0.0
        %788 = vmatpush1.msra.mxu0 0.0
        %789 = vmatprep.subr.mxu0 0.0
        %790 = vmatpush1.msra.mxu0 0.0
        %791 = vmatprep.subr.mxu0 0.0
        %792 = vmatpush1.msra.mxu0 0.0
        %793 = vmatprep.subr.mxu0 0.0
        %794 = vmatpush1.msra.mxu0 0.0
        %795 = vmatprep.subr.mxu0 0.0
        %796 = vmatpush1.msra.mxu0 0.0
        %797 = vmatprep.subr.mxu0 0.0
        %798 = vmatpush1.msra.mxu0 0.0
        %799 = vmatprep.subr.mxu0 0.0
        %800 = vmatpush1.msra.mxu0 0.0
        %801 = vmatprep.subr.mxu0 0.0
        %802 = vmatpush1.msra.mxu0 0.0
        %803 = vmatprep.subr.mxu0 0.0
        %804 = vmatpush1.msra.mxu0 0.0
        %805 = vmatprep.subr.mxu0 0.0
        %806 = vmatpush1.msra.mxu0 0.0
        %807 = vmatprep.subr.mxu0 0.0
        %808 = vmatpush1.msra.mxu0 0.0
        %809 = vmatprep.subr.mxu0 0.0
        %810 = vmatpush1.msra.mxu0 0.0
        %811 = vmatprep.subr.mxu0 0.0
        %812 = vmatpush1.msra.mxu0 0.0
        %813 = vmatprep.subr.mxu0 0.0
        %814 = vmatpush1.msra.mxu0 0.0
        %815 = vmatprep.subr.mxu0 0.0
        %816 = vmatpush1.msra.mxu0 0.0
        %817 = vmatprep.subr.mxu0 0.0
        %818 = vmatpush1.msra.mxu0 0.0
        %819 = vmatprep.subr.mxu0 0.0
        %820 = vmatpush1.msra.mxu0 0.0
        %821 = vmatprep.subr.mxu0 0.0
        %822 = vmatpush1.msra.mxu0 0.0
        %823 = vmatprep.subr.mxu0 0.0
        %824 = vmatpush1.msra.mxu0 0.0
        %825 = vmatprep.subr.mxu0 0.0
        %826 = vmatpush1.msra.mxu0 0.0
        %827 = vmatprep.subr.mxu0 0.0
        %828 = vmatpush1.msra.mxu0 0.0
        %829 = vmatprep.subr.mxu0 0.0
        %830 = vmatpush1.msra.mxu0 0.0
        %831 = vmatprep.subr.mxu0 0.0
        %832 = vmatpush1.msra.mxu0 0.0
        %833 = vmatprep.subr.mxu0 0.0
        %834 = vmatpush1.msra.mxu0 0.0
        %835 = vmatprep.subr.mxu0 0.0
        %836 = vmatpush1.msra.mxu0 0.0
        %837 = vmatprep.subr.mxu0 0.0
        %838 = vmatpush1.msra.mxu0 0.0
        %839 = vmatprep.subr.mxu0 0.0
        %840 = vmatpush1.msra.mxu0 0.0
        %841 = vmatprep.subr.mxu0 0.0
        %842 = vmatpush1.msra.mxu0 0.0
        %843 = vmatprep.mubr.f32.mxu0 0.0
        %844 = vmatmul.mubr.f32.gmra.mrb[0].mxu0 %v777
        %v845 = vpop.f32.mrb[0].mxu0
        %v846 = vadd.f32 0.0, %v845
        %v847 = vpop.f32.mrb[0].mxu0
        %848 = vdwg.mxu0
        %v850 = vsel %vm511, %v846, 0
        %852 = vmatprep.subr.mxu0 0.0
        %853 = vmatpush1.msra.mxu0 %v505
        %854 = vmatprep.subr.mxu0 0.0
        %855 = vmatpush1.msra.mxu0 0.0
        %856 = vmatprep.subr.mxu0 0.0
        %857 = vmatpush1.msra.mxu0 0.0
        %858 = vmatprep.subr.mxu0 0.0
        %859 = vmatpush1.msra.mxu0 0.0
        %860 = vmatprep.subr.mxu0 0.0
        %861 = vmatpush1.msra.mxu0 0.0
        %862 = vmatprep.subr.mxu0 0.0
        %863 = vmatpush1.msra.mxu0 0.0
        %864 = vmatprep.subr.mxu0 0.0
        %865 = vmatpush1.msra.mxu0 0.0
        %866 = vmatprep.subr.mxu0 0.0
        %867 = vmatpush1.msra.mxu0 0.0
        %868 = vmatprep.subr.mxu0 0.0
        %869 = vmatpush1.msra.mxu0 0.0
        %870 = vmatprep.subr.mxu0 0.0
        %871 = vmatpush1.msra.mxu0 0.0
        %872 = vmatprep.subr.mxu0 0.0
        %873 = vmatpush1.msra.mxu0 0.0
        %874 = vmatprep.subr.mxu0 0.0
        %875 = vmatpush1.msra.mxu0 0.0
        %876 = vmatprep.subr.mxu0 0.0
        %877 = vmatpush1.msra.mxu0 0.0
        %878 = vmatprep.subr.mxu0 0.0
        %879 = vmatpush1.msra.mxu0 0.0
        %880 = vmatprep.subr.mxu0 0.0
        %881 = vmatpush1.msra.mxu0 0.0
        %882 = vmatprep.subr.mxu0 0.0
        %883 = vmatpush1.msra.mxu0 0.0
        %884 = vmatprep.subr.mxu0 0.0
        %885 = vmatpush1.msra.mxu0 0.0
        %886 = vmatprep.subr.mxu0 0.0
        %887 = vmatpush1.msra.mxu0 0.0
        %888 = vmatprep.subr.mxu0 0.0
        %889 = vmatpush1.msra.mxu0 0.0
        %890 = vmatprep.subr.mxu0 0.0
        %891 = vmatpush1.msra.mxu0 0.0
        %892 = vmatprep.subr.mxu0 0.0
        %893 = vmatpush1.msra.mxu0 0.0
        %894 = vmatprep.subr.mxu0 0.0
        %895 = vmatpush1.msra.mxu0 0.0
        %896 = vmatprep.subr.mxu0 0.0
        %897 = vmatpush1.msra.mxu0 0.0
        %898 = vmatprep.subr.mxu0 0.0
        %899 = vmatpush1.msra.mxu0 0.0
        %900 = vmatprep.subr.mxu0 0.0
        %901 = vmatpush1.msra.mxu0 0.0
        %902 = vmatprep.subr.mxu0 0.0
        %903 = vmatpush1.msra.mxu0 0.0
        %904 = vmatprep.subr.mxu0 0.0
        %905 = vmatpush1.msra.mxu0 0.0
        %906 = vmatprep.subr.mxu0 0.0
        %907 = vmatpush1.msra.mxu0 0.0
        %908 = vmatprep.subr.mxu0 0.0
        %909 = vmatpush1.msra.mxu0 0.0
        %910 = vmatprep.subr.mxu0 0.0
        %911 = vmatpush1.msra.mxu0 0.0
        %912 = vmatprep.subr.mxu0 0.0
        %913 = vmatpush1.msra.mxu0 0.0
        %914 = vmatprep.subr.mxu0 0.0
        %915 = vmatpush1.msra.mxu0 0.0
        %916 = vmatprep.mubr.f32.mxu0 0.0
        %917 = vmatmul.mubr.f32.gmra.mrb[0].mxu0 %v850
        %v918 = vpop.f32.mrb[0].mxu0
        %v919 = vadd.f32 0.0, %v918
        %v920 = vpop.f32.mrb[0].mxu0
        %921 = vdwg.mxu0
        %v923 = vsel %vm511, %v679, 0
        %925 = vmatprep.subr.mxu0 0.0
        %926 = vmatpush1.msra.mxu0 %v504
        %927 = vmatprep.subr.mxu0 0.0
        %928 = vmatpush1.msra.mxu0 0.0
        %929 = vmatprep.subr.mxu0 0.0
        %930 = vmatpush1.msra.mxu0 0.0
        %931 = vmatprep.subr.mxu0 0.0
        %932 = vmatpush1.msra.mxu0 0.0
        %933 = vmatprep.subr.mxu0 0.0
        %934 = vmatpush1.msra.mxu0 0.0
        %935 = vmatprep.subr.mxu0 0.0
        %936 = vmatpush1.msra.mxu0 0.0
        %937 = vmatprep.subr.mxu0 0.0
        %938 = vmatpush1.msra.mxu0 0.0
        %939 = vmatprep.subr.mxu0 0.0
        %940 = vmatpush1.msra.mxu0 0.0
        %941 = vmatprep.subr.mxu0 0.0
        %942 = vmatpush1.msra.mxu0 0.0
        %943 = vmatprep.subr.mxu0 0.0
        %944 = vmatpush1.msra.mxu0 0.0
        %945 = vmatprep.subr.mxu0 0.0
        %946 = vmatpush1.msra.mxu0 0.0
        %947 = vmatprep.subr.mxu0 0.0
        %948 = vmatpush1.msra.mxu0 0.0
        %949 = vmatprep.subr.mxu0 0.0
        %950 = vmatpush1.msra.mxu0 0.0
        %951 = vmatprep.subr.mxu0 0.0
        %952 = vmatpush1.msra.mxu0 0.0
        %953 = vmatprep.subr.mxu0 0.0
        %954 = vmatpush1.msra.mxu0 0.0
        %955 = vmatprep.subr.mxu0 0.0
        %956 = vmatpush1.msra.mxu0 0.0
        %957 = vmatprep.subr.mxu0 0.0
        %958 = vmatpush1.msra.mxu0 0.0
        %959 = vmatprep.subr.mxu0 0.0
        %960 = vmatpush1.msra.mxu0 0.0
        %961 = vmatprep.subr.mxu0 0.0
        %962 = vmatpush1.msra.mxu0 0.0
        %963 = vmatprep.subr.mxu0 0.0
        %964 = vmatpush1.msra.mxu0 0.0
        %965 = vmatprep.subr.mxu0 0.0
        %966 = vmatpush1.msra.mxu0 0.0
        %967 = vmatprep.subr.mxu0 0.0
        %968 = vmatpush1.msra.mxu0 0.0
        %969 = vmatprep.subr.mxu0 0.0
        %970 = vmatpush1.msra.mxu0 0.0
        %971 = vmatprep.subr.mxu0 0.0
        %972 = vmatpush1.msra.mxu0 0.0
        %973 = vmatprep.subr.mxu0 0.0
        %974 = vmatpush1.msra.mxu0 0.0
        %975 = vmatprep.subr.mxu0 0.0
        %976 = vmatpush1.msra.mxu0 0.0
        %977 = vmatprep.subr.mxu0 0.0
        %978 = vmatpush1.msra.mxu0 0.0
        %979 = vmatprep.subr.mxu0 0.0
        %980 = vmatpush1.msra.mxu0 0.0
        %981 = vmatprep.subr.mxu0 0.0
        %982 = vmatpush1.msra.mxu0 0.0
        %983 = vmatprep.subr.mxu0 0.0
        %984 = vmatpush1.msra.mxu0 0.0
        %985 = vmatprep.subr.mxu0 0.0
        %986 = vmatpush1.msra.mxu0 0.0
        %987 = vmatprep.subr.mxu0 0.0
        %988 = vmatpush1.msra.mxu0 0.0
        %989 = vmatprep.mubr.f32.mxu0 0.0
        %990 = vmatmul.mubr.f32.gmra.mrb[0].mxu0 %v923
        %v991 = vpop.f32.mrb[0].mxu0
        %v992 = vadd.f32 %v919, %v991
        %v993 = vpop.f32.mrb[0].mxu0
        %994 = vdwg.mxu0
        %995 = vrot.lane.b32.xlu0 %v500, 112
        %v996 = vpop.permute.xlu0 %995
        %997 = vrot.lane.b32.xlu0 %v500, 80
        %v998 = vpop.permute.xlu0 %997
        %v999 = vsel %vm511, %v996, 0
        %v1001 = vsel %vm511, %v998, 0
        %1003 = vmatprep.subr.mxu0 0.0
        %1004 = vmatpush1.xpose.msra.mxu0 %v1001
        %1005 = vmatprep.subr.mxu0 0.0
        %1006 = vmatpush1.xpose.msra.mxu0 0.0
        %1007 = vmatprep.subr.mxu0 0.0
        %1008 = vmatpush1.xpose.msra.mxu0 0.0
        %1009 = vmatprep.subr.mxu0 0.0
        %1010 = vmatpush1.xpose.msra.mxu0 0.0
        %1011 = vmatprep.subr.mxu0 0.0
        %1012 = vmatpush1.xpose.msra.mxu0 0.0
        %1013 = vmatprep.subr.mxu0 0.0
        %1014 = vmatpush1.xpose.msra.mxu0 0.0
        %1015 = vmatprep.subr.mxu0 0.0
        %1016 = vmatpush1.xpose.msra.mxu0 0.0
        %1017 = vmatprep.subr.mxu0 0.0
        %1018 = vmatpush1.xpose.msra.mxu0 0.0
        %1019 = vmatprep.subr.mxu0 0.0
        %1020 = vmatpush1.xpose.msra.mxu0 0.0
        %1021 = vmatprep.subr.mxu0 0.0
        %1022 = vmatpush1.xpose.msra.mxu0 0.0
        %1023 = vmatprep.subr.mxu0 0.0
        %1024 = vmatpush1.xpose.msra.mxu0 0.0
        %1025 = vmatprep.subr.mxu0 0.0
        %1026 = vmatpush1.xpose.msra.mxu0 0.0
        %1027 = vmatprep.subr.mxu0 0.0
        %1028 = vmatpush1.xpose.msra.mxu0 0.0
        %1029 = vmatprep.subr.mxu0 0.0
        %1030 = vmatpush1.xpose.msra.mxu0 0.0
        %1031 = vmatprep.subr.mxu0 0.0
        %1032 = vmatpush1.xpose.msra.mxu0 0.0
        %1033 = vmatprep.subr.mxu0 0.0
        %1034 = vmatpush1.xpose.msra.mxu0 0.0
        %1035 = vmatprep.subr.mxu0 0.0
        %1036 = vmatpush1.xpose.msra.mxu0 0.0
        %1037 = vmatprep.subr.mxu0 0.0
        %1038 = vmatpush1.xpose.msra.mxu0 0.0
        %1039 = vmatprep.subr.mxu0 0.0
        %1040 = vmatpush1.xpose.msra.mxu0 0.0
        %1041 = vmatprep.subr.mxu0 0.0
        %1042 = vmatpush1.xpose.msra.mxu0 0.0
        %1043 = vmatprep.subr.mxu0 0.0
        %1044 = vmatpush1.xpose.msra.mxu0 0.0
        %1045 = vmatprep.subr.mxu0 0.0
        %1046 = vmatpush1.xpose.msra.mxu0 0.0
        %1047 = vmatprep.subr.mxu0 0.0
        %1048 = vmatpush1.xpose.msra.mxu0 0.0
        %1049 = vmatprep.subr.mxu0 0.0
        %1050 = vmatpush1.xpose.msra.mxu0 0.0
        %1051 = vmatprep.subr.mxu0 0.0
        %1052 = vmatpush1.xpose.msra.mxu0 0.0
        %1053 = vmatprep.subr.mxu0 0.0
        %1054 = vmatpush1.xpose.msra.mxu0 0.0
        %1055 = vmatprep.subr.mxu0 0.0
        %1056 = vmatpush1.xpose.msra.mxu0 0.0
        %1057 = vmatprep.subr.mxu0 0.0
        %1058 = vmatpush1.xpose.msra.mxu0 0.0
        %1059 = vmatprep.subr.mxu0 0.0
        %1060 = vmatpush1.xpose.msra.mxu0 0.0
        %1061 = vmatprep.subr.mxu0 0.0
        %1062 = vmatpush1.xpose.msra.mxu0 0.0
        %1063 = vmatprep.subr.mxu0 0.0
        %1064 = vmatpush1.xpose.msra.mxu0 0.0
        %1065 = vmatprep.subr.mxu0 0.0
        %1066 = vmatpush1.xpose.msra.mxu0 0.0
        %1067 = vmatprep.mubr.f32.mxu0 0.0
        %1068 = vmatmul.mubr.f32.gmra.mrb[0].mxu0 %v999
        %v1069 = vpop.f32.mrb[0].mxu0
        %v1070 = vadd.f32 0.0, %v1069
        %v1071 = vpop.f32.mrb[0].mxu0
        %1072 = vdwg.mxu0
        %v1073 = vmul.f32 %v1070, 0.35355338
        %v1074 = vsel %vm593, -1e+09, %v1073
        %v1075 = vsel %vm511, %v1074, -inf
        %1076 = vmax.xlane.f32.xlu0 %v1075
        %v1077 = vpop.xlane.xlu0 %1076
        %v1078 = vsub.f32 %v1074, %v1077
        %v1079 = vmul.f32 %v1078, 1.442695
        %v1080 = vpow.pop %v1079
        %v1081 = vsel %vm511, %v1080, 0.0
        %1082 = vadd.xlane.f32.xlu0 %v1081
        %v1083 = vpop.xlane.xlu0 %1082
        %v1084 = vrcp.pop %v1083
        %v1085 = vmul.f32 %v1080, %v1084
        %1086 = vrot.lane.b32.xlu0 %v500, 48
        %v1087 = vpop.permute.xlu0 %1086
        %v1090 = vsel %vm511, %v1085, 0
        %1092 = vmatprep.subr.mxu0 0.0
        %1093 = vmatpush1.msra.mxu0 %v1087
        %1094 = vmatprep.subr.mxu0 0.0
        %1095 = vmatpush1.msra.mxu0 0.0
        %1096 = vmatprep.subr.mxu0 0.0
        %1097 = vmatpush1.msra.mxu0 0.0
        %1098 = vmatprep.subr.mxu0 0.0
        %1099 = vmatpush1.msra.mxu0 0.0
        %1100 = vmatprep.subr.mxu0 0.0
        %1101 = vmatpush1.msra.mxu0 0.0
        %1102 = vmatprep.subr.mxu0 0.0
        %1103 = vmatpush1.msra.mxu0 0.0
        %1104 = vmatprep.subr.mxu0 0.0
        %1105 = vmatpush1.msra.mxu0 0.0
        %1106 = vmatprep.subr.mxu0 0.0
        %1107 = vmatpush1.msra.mxu0 0.0
        %1108 = vmatprep.subr.mxu0 0.0
        %1109 = vmatpush1.msra.mxu0 0.0
        %1110 = vmatprep.subr.mxu0 0.0
        %1111 = vmatpush1.msra.mxu0 0.0
        %1112 = vmatprep.subr.mxu0 0.0
        %1113 = vmatpush1.msra.mxu0 0.0
        %1114 = vmatprep.subr.mxu0 0.0
        %1115 = vmatpush1.msra.mxu0 0.0
        %1116 = vmatprep.subr.mxu0 0.0
        %1117 = vmatpush1.msra.mxu0 0.0
        %1118 = vmatprep.subr.mxu0 0.0
        %1119 = vmatpush1.msra.mxu0 0.0
        %1120 = vmatprep.subr.mxu0 0.0
        %1121 = vmatpush1.msra.mxu0 0.0
        %1122 = vmatprep.subr.mxu0 0.0
        %1123 = vmatpush1.msra.mxu0 0.0
        %1124 = vmatprep.subr.mxu0 0.0
        %1125 = vmatpush1.msra.mxu0 0.0
        %1126 = vmatprep.subr.mxu0 0.0
        %1127 = vmatpush1.msra.mxu0 0.0
        %1128 = vmatprep.subr.mxu0 0.0
        %1129 = vmatpush1.msra.mxu0 0.0
        %1130 = vmatprep.subr.mxu0 0.0
        %1131 = vmatpush1.msra.mxu0 0.0
        %1132 = vmatprep.subr.mxu0 0.0
        %1133 = vmatpush1.msra.mxu0 0.0
        %1134 = vmatprep.subr.mxu0 0.0
        %1135 = vmatpush1.msra.mxu0 0.0
        %1136 = vmatprep.subr.mxu0 0.0
        %1137 = vmatpush1.msra.mxu0 0.0
        %1138 = vmatprep.subr.mxu0 0.0
        %1139 = vmatpush1.msra.mxu0 0.0
        %1140 = vmatprep.subr.mxu0 0.0
        %1141 = vmatpush1.msra.mxu0 0.0
        %1142 = vmatprep.subr.mxu0 0.0
        %1143 = vmatpush1.msra.mxu0 0.0
        %1144 = vmatprep.subr.mxu0 0.0
        %1145 = vmatpush1.msra.mxu0 0.0
        %1146 = vmatprep.subr.mxu0 0.0
        %1147 = vmatpush1.msra.mxu0 0.0
        %1148 = vmatprep.subr.mxu0 0.0
        %1149 = vmatpush1.msra.mxu0 0.0
        %1150 = vmatprep.subr.mxu0 0.0
        %1151 = vmatpush1.msra.mxu0 0.0
        %1152 = vmatprep.subr.mxu0 0.0
        %1153 = vmatpush1.msra.mxu0 0.0
        %1154 = vmatprep.subr.mxu0 0.0
        %1155 = vmatpush1.msra.mxu0 0.0
        %1156 = vmatprep.mubr.f32.mxu0 0.0
        %1157 = vmatmul.mubr.f32.gmra.mrb[0].mxu0 %v1090
        %v1158 = vpop.f32.mrb[0].mxu0
        %v1159 = vadd.f32 0.0, %v1158
        %v1160 = vpop.f32.mrb[0].mxu0
        %1161 = vdwg.mxu0
        %v1163 = vsel %vm511, %v1159, 0
        %1165 = vmatprep.subr.mxu0 0.0
        %1166 = vmatpush1.msra.mxu0 %v506
        %1167 = vmatprep.subr.mxu0 0.0
        %1168 = vmatpush1.msra.mxu0 0.0
        %1169 = vmatprep.subr.mxu0 0.0
        %1170 = vmatpush1.msra.mxu0 0.0
        %1171 = vmatprep.subr.mxu0 0.0
        %1172 = vmatpush1.msra.mxu0 0.0
        %1173 = vmatprep.subr.mxu0 0.0
        %1174 = vmatpush1.msra.mxu0 0.0
        %1175 = vmatprep.subr.mxu0 0.0
        %1176 = vmatpush1.msra.mxu0 0.0
        %1177 = vmatprep.subr.mxu0 0.0
        %1178 = vmatpush1.msra.mxu0 0.0
        %1179 = vmatprep.subr.mxu0 0.0
        %1180 = vmatpush1.msra.mxu0 0.0
        %1181 = vmatprep.subr.mxu0 0.0
        %1182 = vmatpush1.msra.mxu0 0.0
        %1183 = vmatprep.subr.mxu0 0.0
        %1184 = vmatpush1.msra.mxu0 0.0
        %1185 = vmatprep.subr.mxu0 0.0
        %1186 = vmatpush1.msra.mxu0 0.0
        %1187 = vmatprep.subr.mxu0 0.0
        %1188 = vmatpush1.msra.mxu0 0.0
        %1189 = vmatprep.subr.mxu0 0.0
        %1190 = vmatpush1.msra.mxu0 0.0
        %1191 = vmatprep.subr.mxu0 0.0
        %1192 = vmatpush1.msra.mxu0 0.0
        %1193 = vmatprep.subr.mxu0 0.0
        %1194 = vmatpush1.msra.mxu0 0.0
        %1195 = vmatprep.subr.mxu0 0.0
        %1196 = vmatpush1.msra.mxu0 0.0
        %1197 = vmatprep.subr.mxu0 0.0
        %1198 = vmatpush1.msra.mxu0 0.0
        %1199 = vmatprep.subr.mxu0 0.0
        %1200 = vmatpush1.msra.mxu0 0.0
        %1201 = vmatprep.subr.mxu0 0.0
        %1202 = vmatpush1.msra.mxu0 0.0
        %1203 = vmatprep.subr.mxu0 0.0
        %1204 = vmatpush1.msra.mxu0 0.0
        %1205 = vmatprep.subr.mxu0 0.0
        %1206 = vmatpush1.msra.mxu0 0.0
        %1207 = vmatprep.subr.mxu0 0.0
        %1208 = vmatpush1.msra.mxu0 0.0
        %1209 = vmatprep.subr.mxu0 0.0
        %1210 = vmatpush1.msra.mxu0 0.0
        %1211 = vmatprep.subr.mxu0 0.0
        %1212 = vmatpush1.msra.mxu0 0.0
        %1213 = vmatprep.subr.mxu0 0.0
        %1214 = vmatpush1.msra.mxu0 0.0
        %1215 = vmatprep.subr.mxu0 0.0
        %1216 = vmatpush1.msra.mxu0 0.0
        %1217 = vmatprep.subr.mxu0 0.0
        %1218 = vmatpush1.msra.mxu0 0.0
        %1219 = vmatprep.subr.mxu0 0.0
        %1220 = vmatpush1.msra.mxu0 0.0
        %1221 = vmatprep.subr.mxu0 0.0
        %1222 = vmatpush1.msra.mxu0 0.0
        %1223 = vmatprep.subr.mxu0 0.0
        %1224 = vmatpush1.msra.mxu0 0.0
        %1225 = vmatprep.subr.mxu0 0.0
        %1226 = vmatpush1.msra.mxu0 0.0
        %1227 = vmatprep.subr.mxu0 0.0
        %1228 = vmatpush1.msra.mxu0 0.0
        %1229 = vmatprep.mubr.f32.mxu0 0.0
        %1230 = vmatmul.mubr.f32.gmra.mrb[0].mxu0 %v1163
        %v1231 = vpop.f32.mrb[0].mxu0
        %v1232 = vadd.f32 0.0, %v1231
        %v1233 = vpop.f32.mrb[0].mxu0
        %1234 = vdwg.mxu0
        %v1235 = vadd.f32 %v992, %v1232
        %1236 = vrot.lane.b32.xlu0 %v500, 104
        %v1237 = vpop.permute.xlu0 %1236
        %1238 = vrot.lane.b32.xlu0 %v500, 72
        %v1239 = vpop.permute.xlu0 %1238
        %v1240 = vsel %vm511, %v1237, 0
        %v1242 = vsel %vm511, %v1239, 0
        %1244 = vmatprep.subr.mxu0 0.0
        %1245 = vmatpush1.xpose.msra.mxu0 %v1242
        %1246 = vmatprep.subr.mxu0 0.0
        %1247 = vmatpush1.xpose.msra.mxu0 0.0
        %1248 = vmatprep.subr.mxu0 0.0
        %1249 = vmatpush1.xpose.msra.mxu0 0.0
        %1250 = vmatprep.subr.mxu0 0.0
        %1251 = vmatpush1.xpose.msra.mxu0 0.0
        %1252 = vmatprep.subr.mxu0 0.0
        %1253 = vmatpush1.xpose.msra.mxu0 0.0
        %1254 = vmatprep.subr.mxu0 0.0
        %1255 = vmatpush1.xpose.msra.mxu0 0.0
        %1256 = vmatprep.subr.mxu0 0.0
        %1257 = vmatpush1.xpose.msra.mxu0 0.0
        %1258 = vmatprep.subr.mxu0 0.0
        %1259 = vmatpush1.xpose.msra.mxu0 0.0
        %1260 = vmatprep.subr.mxu0 0.0
        %1261 = vmatpush1.xpose.msra.mxu0 0.0
        %1262 = vmatprep.subr.mxu0 0.0
        %1263 = vmatpush1.xpose.msra.mxu0 0.0
        %1264 = vmatprep.subr.mxu0 0.0
        %1265 = vmatpush1.xpose.msra.mxu0 0.0
        %1266 = vmatprep.subr.mxu0 0.0
        %1267 = vmatpush1.xpose.msra.mxu0 0.0
        %1268 = vmatprep.subr.mxu0 0.0
        %1269 = vmatpush1.xpose.msra.mxu0 0.0
        %1270 = vmatprep.subr.mxu0 0.0
        %1271 = vmatpush1.xpose.msra.mxu0 0.0
        %1272 = vmatprep.subr.mxu0 0.0
        %1273 = vmatpush1.xpose.msra.mxu0 0.0
        %1274 = vmatprep.subr.mxu0 0.0
        %1275 = vmatpush1.xpose.msra.mxu0 0.0
        %1276 = vmatprep.subr.mxu0 0.0
        %1277 = vmatpush1.xpose.msra.mxu0 0.0
        %1278 = vmatprep.subr.mxu0 0.0
        %1279 = vmatpush1.xpose.msra.mxu0 0.0
        %1280 = vmatprep.subr.mxu0 0.0
        %1281 = vmatpush1.xpose.msra.mxu0 0.0
        %1282 = vmatprep.subr.mxu0 0.0
        %1283 = vmatpush1.xpose.msra.mxu0 0.0
        %1284 = vmatprep.subr.mxu0 0.0
        %1285 = vmatpush1.xpose.msra.mxu0 0.0
        %1286 = vmatprep.subr.mxu0 0.0
        %1287 = vmatpush1.xpose.msra.mxu0 0.0
        %1288 = vmatprep.subr.mxu0 0.0
        %1289 = vmatpush1.xpose.msra.mxu0 0.0
        %1290 = vmatprep.subr.mxu0 0.0
        %1291 = vmatpush1.xpose.msra.mxu0 0.0
        %1292 = vmatprep.subr.mxu0 0.0
        %1293 = vmatpush1.xpose.msra.mxu0 0.0
        %1294 = vmatprep.subr.mxu0 0.0
        %1295 = vmatpush1.xpose.msra.mxu0 0.0
        %1296 = vmatprep.subr.mxu0 0.0
        %1297 = vmatpush1.xpose.msra.mxu0 0.0
        %1298 = vmatprep.subr.mxu0 0.0
        %1299 = vmatpush1.xpose.msra.mxu0 0.0
        %1300 = vmatprep.subr.mxu0 0.0
        %1301 = vmatpush1.xpose.msra.mxu0 0.0
        %1302 = vmatprep.subr.mxu0 0.0
        %1303 = vmatpush1.xpose.msra.mxu0 0.0
        %1304 = vmatprep.subr.mxu0 0.0
        %1305 = vmatpush1.xpose.msra.mxu0 0.0
        %1306 = vmatprep.subr.mxu0 0.0
        %1307 = vmatpush1.xpose.msra.mxu0 0.0
        %1308 = vmatprep.mubr.f32.mxu0 0.0
        %1309 = vmatmul.mubr.f32.gmra.mrb[0].mxu0 %v1240
        %v1310 = vpop.f32.mrb[0].mxu0
        %v1311 = vadd.f32 0.0, %v1310
        %v1312 = vpop.f32.mrb[0].mxu0
        %1313 = vdwg.mxu0
        %v1314 = vmul.f32 %v1311, 0.35355338
        %v1315 = vsel %vm593, -1e+09, %v1314
        %v1316 = vsel %vm511, %v1315, -inf
        %1317 = vmax.xlane.f32.xlu0 %v1316
        %v1318 = vpop.xlane.xlu0 %1317
        %v1319 = vsub.f32 %v1315, %v1318
        %v1320 = vmul.f32 %v1319, 1.442695
        %v1321 = vpow.pop %v1320
        %v1322 = vsel %vm511, %v1321, 0.0
        %1323 = vadd.xlane.f32.xlu0 %v1322
        %v1324 = vpop.xlane.xlu0 %1323
        %v1325 = vrcp.pop %v1324
        %v1326 = vmul.f32 %v1321, %v1325
        %1327 = vrot.lane.b32.xlu0 %v500, 40
        %v1328 = vpop.permute.xlu0 %1327
        %v1331 = vsel %vm511, %v1326, 0
        %1333 = vmatprep.subr.mxu0 0.0
        %1334 = vmatpush1.msra.mxu0 %v1328
        %1335 = vmatprep.subr.mxu0 0.0
        %1336 = vmatpush1.msra.mxu0 0.0
        %1337 = vmatprep.subr.mxu0 0.0
        %1338 = vmatpush1.msra.mxu0 0.0
        %1339 = vmatprep.subr.mxu0 0.0
        %1340 = vmatpush1.msra.mxu0 0.0
        %1341 = vmatprep.subr.mxu0 0.0
        %1342 = vmatpush1.msra.mxu0 0.0
        %1343 = vmatprep.subr.mxu0 0.0
        %1344 = vmatpush1.msra.mxu0 0.0
        %1345 = vmatprep.subr.mxu0 0.0
        %1346 = vmatpush1.msra.mxu0 0.0
        %1347 = vmatprep.subr.mxu0 0.0
        %1348 = vmatpush1.msra.mxu0 0.0
        %1349 = vmatprep.subr.mxu0 0.0
        %1350 = vmatpush1.msra.mxu0 0.0
        %1351 = vmatprep.subr.mxu0 0.0
        %1352 = vmatpush1.msra.mxu0 0.0
        %1353 = vmatprep.subr.mxu0 0.0
        %1354 = vmatpush1.msra.mxu0 0.0
        %1355 = vmatprep.subr.mxu0 0.0
        %1356 = vmatpush1.msra.mxu0 0.0
        %1357 = vmatprep.subr.mxu0 0.0
        %1358 = vmatpush1.msra.mxu0 0.0
        %1359 = vmatprep.subr.mxu0 0.0
        %1360 = vmatpush1.msra.mxu0 0.0
        %1361 = vmatprep.subr.mxu0 0.0
        %1362 = vmatpush1.msra.mxu0 0.0
        %1363 = vmatprep.subr.mxu0 0.0
        %1364 = vmatpush1.msra.mxu0 0.0
        %1365 = vmatprep.subr.mxu0 0.0
        %1366 = vmatpush1.msra.mxu0 0.0
        %1367 = vmatprep.subr.mxu0 0.0
        %1368 = vmatpush1.msra.mxu0 0.0
        %1369 = vmatprep.subr.mxu0 0.0
        %1370 = vmatpush1.msra.mxu0 0.0
        %1371 = vmatprep.subr.mxu0 0.0
        %1372 = vmatpush1.msra.mxu0 0.0
        %1373 = vmatprep.subr.mxu0 0.0
        %1374 = vmatpush1.msra.mxu0 0.0
        %1375 = vmatprep.subr.mxu0 0.0
        %1376 = vmatpush1.msra.mxu0 0.0
        %1377 = vmatprep.subr.mxu0 0.0
        %1378 = vmatpush1.msra.mxu0 0.0
        %1379 = vmatprep.subr.mxu0 0.0
        %1380 = vmatpush1.msra.mxu0 0.0
        %1381 = vmatprep.subr.mxu0 0.0
        %1382 = vmatpush1.msra.mxu0 0.0
        %1383 = vmatprep.subr.mxu0 0.0
        %1384 = vmatpush1.msra.mxu0 0.0
        %1385 = vmatprep.subr.mxu0 0.0
        %1386 = vmatpush1.msra.mxu0 0.0
        %1387 = vmatprep.subr.mxu0 0.0
        %1388 = vmatpush1.msra.mxu0 0.0
        %1389 = vmatprep.subr.mxu0 0.0
        %1390 = vmatpush1.msra.mxu0 0.0
        %1391 = vmatprep.subr.mxu0 0.0
        %1392 = vmatpush1.msra.mxu0 0.0
        %1393 = vmatprep.subr.mxu0 0.0
        %1394 = vmatpush1.msra.mxu0 0.0
        %1395 = vmatprep.subr.mxu0 0.0
        %1396 = vmatpush1.msra.mxu0 0.0
        %1397 = vmatprep.mubr.f32.mxu0 0.0
        %1398 = vmatmul.mubr.f32.gmra.mrb[0].mxu0 %v1331
        %v1399 = vpop.f32.mrb[0].mxu0
        %v1400 = vadd.f32 0.0, %v1399
        %v1401 = vpop.f32.mrb[0].mxu0
        %1402 = vdwg.mxu0
        %v1404 = vsel %vm511, %v1400, 0
        %1406 = vmatprep.subr.mxu0 0.0
        %1407 = vmatpush1.msra.mxu0 %v507
        %1408 = vmatprep.subr.mxu0 0.0
        %1409 = vmatpush1.msra.mxu0 0.0
        %1410 = vmatprep.subr.mxu0 0.0
        %1411 = vmatpush1.msra.mxu0 0.0
        %1412 = vmatprep.subr.mxu0 0.0
        %1413 = vmatpush1.msra.mxu0 0.0
        %1414 = vmatprep.subr.mxu0 0.0
        %1415 = vmatpush1.msra.mxu0 0.0
        %1416 = vmatprep.subr.mxu0 0.0
        %1417 = vmatpush1.msra.mxu0 0.0
        %1418 = vmatprep.subr.mxu0 0.0
        %1419 = vmatpush1.msra.mxu0 0.0
        %1420 = vmatprep.subr.mxu0 0.0
        %1421 = vmatpush1.msra.mxu0 0.0
        %1422 = vmatprep.subr.mxu0 0.0
        %1423 = vmatpush1.msra.mxu0 0.0
        %1424 = vmatprep.subr.mxu0 0.0
        %1425 = vmatpush1.msra.mxu0 0.0
        %1426 = vmatprep.subr.mxu0 0.0
        %1427 = vmatpush1.msra.mxu0 0.0
        %1428 = vmatprep.subr.mxu0 0.0
        %1429 = vmatpush1.msra.mxu0 0.0
        %1430 = vmatprep.subr.mxu0 0.0
        %1431 = vmatpush1.msra.mxu0 0.0
        %1432 = vmatprep.subr.mxu0 0.0
        %1433 = vmatpush1.msra.mxu0 0.0
        %1434 = vmatprep.subr.mxu0 0.0
        %1435 = vmatpush1.msra.mxu0 0.0
        %1436 = vmatprep.subr.mxu0 0.0
        %1437 = vmatpush1.msra.mxu0 0.0
        %1438 = vmatprep.subr.mxu0 0.0
        %1439 = vmatpush1.msra.mxu0 0.0
        %1440 = vmatprep.subr.mxu0 0.0
        %1441 = vmatpush1.msra.mxu0 0.0
        %1442 = vmatprep.subr.mxu0 0.0
        %1443 = vmatpush1.msra.mxu0 0.0
        %1444 = vmatprep.subr.mxu0 0.0
        %1445 = vmatpush1.msra.mxu0 0.0
        %1446 = vmatprep.subr.mxu0 0.0
        %1447 = vmatpush1.msra.mxu0 0.0
        %1448 = vmatprep.subr.mxu0 0.0
        %1449 = vmatpush1.msra.mxu0 0.0
        %1450 = vmatprep.subr.mxu0 0.0
        %1451 = vmatpush1.msra.mxu0 0.0
        %1452 = vmatprep.subr.mxu0 0.0
        %1453 = vmatpush1.msra.mxu0 0.0
        %1454 = vmatprep.subr.mxu0 0.0
        %1455 = vmatpush1.msra.mxu0 0.0
        %1456 = vmatprep.subr.mxu0 0.0
        %1457 = vmatpush1.msra.mxu0 0.0
        %1458 = vmatprep.subr.mxu0 0.0
        %1459 = vmatpush1.msra.mxu0 0.0
        %1460 = vmatprep.subr.mxu0 0.0
        %1461 = vmatpush1.msra.mxu0 0.0
        %1462 = vmatprep.subr.mxu0 0.0
        %1463 = vmatpush1.msra.mxu0 0.0
        %1464 = vmatprep.subr.mxu0 0.0
        %1465 = vmatpush1.msra.mxu0 0.0
        %1466 = vmatprep.subr.mxu0 0.0
        %1467 = vmatpush1.msra.mxu0 0.0
        %1468 = vmatprep.subr.mxu0 0.0
        %1469 = vmatpush1.msra.mxu0 0.0
        %1470 = vmatprep.mubr.f32.mxu0 0.0
        %1471 = vmatmul.mubr.f32.gmra.mrb[0].mxu0 %v1404
        %v1472 = vpop.f32.mrb[0].mxu0
        %v1473 = vadd.f32 0.0, %v1472
        %v1474 = vpop.f32.mrb[0].mxu0
        %1475 = vdwg.mxu0
        %v1476 = vadd.f32 %v1235, %v1473
        %v1477 = vld [vmem:[#allocation9] sm:$0x1]
        %v1479 = vlaneseq
        %v1480 = vshrl.u32 %v1479, 7
        %v1481 = vsub.s32 0, %v1480
        %v1482 = vrot.slane %v1477, %v1481
        %v1484 = vadd.f32 %v1476, %v1482
        %v1485 = vadd.f32 %v380, %v1484
        %1486 = vst.msk [vmem:[%s379] sm:$0xff] %vm381, %v1485
        %p1487 = scmp.lt.s32.totalorder %s22, 1
        %s1488 = scalar_select %p1487, %s22, 1
        %s1489 = smul.addr %s1488, 8
        %s1490 = scalar_lea.vmem %s8, %s1489
        // Predicated region
        $region73: #{encoder_forward.7} parent=51 // pred_check
          %p1491 = pneg %p218
        $region74: #{encoder_forward.7} parent=51 // pred_check_branch
          %1493 = sbr.rel (%p1491) target = $region76
        $region75: #{encoder_forward.7} parent=51 // pred_region
          _
        $region76: #{encoder_forward.7} parent=51 // pred_fallthru
          _
      $region52: #{encoder_forward.7} parent=5 // pred_fallthru
        _
      %p1494 = scmp.le.s32.totalorder 2, %s17
      // Predicated region
      $region77: #{encoder_forward.7} parent=5 // pred_check
        %p1495 = pneg %p1494
      $region78: #{encoder_forward.7} parent=5 // pred_check_branch
        %1497 = sbr.rel (%p1495) target = $region80
      $region79: #{encoder_forward.7} parent=5 // pred_region
        %s1498 = ssub.s32 %s17, 2
        // Predicated region
        $region81: #{encoder_forward.7} parent=79 // pred_check
          %p1499 = pneg %p224
        $region82: #{encoder_forward.7} parent=79 // pred_check_branch
          %1501 = sbr.rel (%p1499) target = $region84
        $region83: #{encoder_forward.7} parent=79 // pred_region
          %p1502 = scmp.lt.s32.totalorder %s23, 1
          %s1503 = scalar_select %p1502, %s23, 1
          %s1504 = smul.addr %s1503, 8
          %s1505 = scalar_lea.vmem %s8, %s1504
        $region84: #{encoder_forward.7} parent=79 // pred_fallthru
          _
      $region80: #{encoder_forward.7} parent=5 // pred_fallthru
        _
    $region6: #{encoder_forward.7} parent=1 // loop_footer
      %s21 = sadd.s32 1, %s17
    $region7: #{encoder_forward.7} parent=1 // loop_footer_branch
      %16 = sbr.rel target = $region3
    $region8: #{encoder_forward.7} parent=1 // loop_exit
      _
    %1506 = vsyncpa [#allocation3], 1
    %s1507 = scalar_lea.sflag [#allocation3], 1
    %1508 = vsyncpa %s1507, 1
    %1509 = vsyncpa [#allocation5], 1
    %1510 = vsyncpa [#allocation8], 1

// kernel: encoder_forward.9
$region0: #{encoder_forward.9}
  #allocation0 [shape = 'u32[]', space=smem, size = 0x4, offset = 0x4, fixed_abs, tag = 'smem constant byte address 0x4 - core index']
  #allocation1 [shape = 'u32[144,128]{1,0:T(1,128)}', space=vmem, size = 0x12000, scoped, tag = 'internal scratch']
  %s0 = inlined_call_operand.vmem [shape: f32[2,8,32], index: 0, kind: input, shape index: {}]
  %s1 = inlined_call_operand.vmem [shape: s32[2,1,8], index: 1, kind: input, shape index: {}]
  %s2 = inlined_call_operand.vmem [shape: f32[1,32], index: 2, kind: input, shape index: {}]
  %s3 = inlined_call_operand.vmem [shape: f32[1,32], index: 3, kind: input, shape index: {}]
  %s4 = inlined_call_operand.vmem [shape: f32[32,96], index: 4, kind: input, shape index: {}]
  %s5 = inlined_call_operand.vmem [shape: f32[1,96], index: 5, kind: input, shape index: {}]
  %s6 = inlined_call_operand.vmem [shape: f32[32,32], index: 6, kind: input, shape index: {}]
  %s7 = inlined_call_operand.vmem [shape: f32[1,32], index: 7, kind: input, shape index: {}]
  %s8 = inlined_call_operand.vmem [shape: f32[2,8,32], index: 8, kind: output, shape index: {}]
  %s9 = sld [smem:[#allocation0]]
  $region65: #{encoder_forward.9} parent=0
    _
  %s11 = ssub.s32 1, %s9
  %s12 = scalar_select 0, %s11, %s9
  loop: start=0, step=1, limit=4
  $region2: #{encoder_forward.9} parent=0 // loop_pre_header
    _
  $region3: #{encoder_forward.9} parent=0 // loop_header
    %s14 = sphi 0, %s18
    %p15 = scmp.ge.s32.totalorder %s14, 4
    %s24 = sphi 0, %s26
    %s27 = sphi 0, %s24
    %s28 = sphi 0, %s27
    %s44 = sphi 0, %s28
    %s50 = sphi 0, %s52
    %s53 = sphi 0, %s50
    %s54 = sphi 0, %s53
    %s70 = sphi 0, %s54
    %s74 = sphi 0, %s74
    %s76 = sphi 0, %s74
    %s77 = sphi 0, %s76
    %s91 = sphi 0, %s77
    %s95 = sphi 0, %s95
    %s97 = sphi 0, %s95
    %s98 = sphi 0, %s97
    %s112 = sphi 0, %s98
    %s116 = sphi 0, %s116
    %s118 = sphi 0, %s116
    %s119 = sphi 0, %s118
    %s133 = sphi 0, %s119
    %s137 = sphi 0, %s137
    %s139 = sphi 0, %s137
    %s140 = sphi 0, %s139
    %s154 = sphi 0, %s140
    %s158 = sphi 0, %s158
    %s160 = sphi 0, %s158
    %s161 = sphi 0, %s160
    %s175 = sphi 0, %s161
    %s179 = sphi 0, %s179
    %s181 = sphi 0, %s179
    %s182 = sphi 0, %s181
    %s196 = sphi 0, %s182
    %s202 = sphi 0, %s204
    %s205 = sphi 0, %s202
    %s206 = sphi 0, %s205
    %s222 = sphi 0, %s206
  $region4: #{encoder_forward.9} parent=0 // loop_header_branch
    %17 = sbr.rel (%p15) target = $region8
  $region5: #{encoder_forward.9} parent=0 // loop_body
    %s19 = ssub.s32 %s14, 1
    %s20 = ssub.s32 %s14, 2
    %s21 = sadd.s32 %s14, 1
    %s22 = ssub.s32 %s14, %s21
    %p23 = scmp.eq.s32.totalorder %s22, 0
    %s25 = sadd.s32 %s24, 1
    %s26 = scalar_select %p23, %s24, %s25
    %p29 = pneg %p23
    %p30 = scmp.eq.s32.totalorder %s14, 1
    %p31 = por %p29, %p30
    %p32 = scmp.ne.s32.totalorder %s24, %s27
    %p33 = scmp.eq.s32.totalorder %s14, 0
    %p34 = por %p32, %p33
    %p35 = scmp.ne.s32.totalorder %s24, %s27
    %p36 = scmp.eq.s32.totalorder %s19, 1
    %p37 = por %p35, %p36
    %p38 = scmp.ne.s32.totalorder %s27, %s28
    %p39 = scmp.eq.s32.totalorder %s19, 0
    %p40 = por %p38, %p39
    %p41 = scmp.ne.s32.totalorder %s27, %s28
    %p42 = scmp.eq.s32.totalorder %s20, 1
    %p43 = por %p41, %p42
    %p45 = scmp.ne.s32.totalorder %s28, %s44
    %p46 = scmp.eq.s32.totalorder %s20, 0
    %p47 = por %p45, %p46
    %s48 = ssub.s32 %s14, %s21
    %p49 = scmp.eq.s32.totalorder %s48, 0
    %s51 = sadd.s32 %s50, 1
    %s52 = scalar_select %p49, %s50, %s51
    %p55 = pneg %p49
    %p56 = scmp.eq.s32.totalorder %s14, 1
    %p57 = por %p55, %p56
    %p58 = scmp.ne.s32.totalorder %s50, %s53
    %p59 = scmp.eq.s32.totalorder %s14, 0
    %p60 = por %p58, %p59
    %p61 = scmp.ne.s32.totalorder %s50, %s53
    %p62 = scmp.eq.s32.totalorder %s19, 1
    %p63 = por %p61, %p62
    %p64 = scmp.ne.s32.totalorder %s53, %s54
    %p65 = scmp.eq.s32.totalorder %s19, 0
    %p66 = por %p64, %p65
    %p67 = scmp.ne.s32.totalorder %s53, %s54
    %p68 = scmp.eq.s32.totalorder %s20, 1
    %p69 = por %p67, %p68
    %p71 = scmp.ne.s32.totalorder %s54, %s70
    %p72 = scmp.eq.s32.totalorder %s20, 0
    %p73 = por %p71, %p72
    %s75 = sadd.s32 %s74, 1
    %p78 = scmp.eq.s32.totalorder %s14, 1
    %p79 = scmp.ne.s32.totalorder %s74, %s76
    %p80 = scmp.eq.s32.totalorder %s14, 0
    %p81 = por %p79, %p80
    %p82 = scmp.ne.s32.totalorder %s74, %s76
    %p83 = scmp.eq.s32.totalorder %s19, 1
    %p84 = por %p82, %p83
    %p85 = scmp.ne.s32.totalorder %s76, %s77
    %p86 = scmp.eq.s32.totalorder %s19, 0
    %p87 = por %p85, %p86
    %p88 = scmp.ne.s32.totalorder %s76, %s77
    %p89 = scmp.eq.s32.totalorder %s20, 1
    %p90 = por %p88, %p89
    %p92 = scmp.ne.s32.totalorder %s77, %s91
    %p93 = scmp.eq.s32.totalorder %s20, 0
    %p94 = por %p92, %p93
    %s96 = sadd.s32 %s95, 1
    %p99 = scmp.eq.s32.totalorder %s14, 1
    %p100 = scmp.ne.s32.totalorder %s95, %s97
    %p101 = scmp.eq.s32.totalorder %s14, 0
    %p102 = por %p100, %p101
    %p103 = scmp.ne.s32.totalorder %s95, %s97
    %p104 = scmp.eq.s32.totalorder %s19, 1
    %p105 = por %p103, %p104
    %p106 = scmp.ne.s32.totalorder %s97, %s98
    %p107 = scmp.eq.s32.totalorder %s19, 0
    %p108 = por %p106, %p107
    %p109 = scmp.ne.s32.totalorder %s97, %s98
    %p110 = scmp.eq.s32.totalorder %s20, 1
    %p111 = por %p109, %p110
    %p113 = scmp.ne.s32.totalorder %s98, %s112
    %p114 = scmp.eq.s32.totalorder %s20, 0
    %p115 = por %p113, %p114
    %s117 = sadd.s32 %s116, 1
    %p120 = scmp.eq.s32.totalorder %s14, 1
    %p121 = scmp.ne.s32.totalorder %s116, %s118
    %p122 = scmp.eq.s32.totalorder %s14, 0
    %p123 = por %p121, %p122
    %p124 = scmp.ne.s32.totalorder %s116, %s118
    %p125 = scmp.eq.s32.totalorder %s19, 1
    %p126 = por %p124, %p125
    %p127 = scmp.ne.s32.totalorder %s118, %s119
    %p128 = scmp.eq.s32.totalorder %s19, 0
    %p129 = por %p127, %p128
    %p130 = scmp.ne.s32.totalorder %s118, %s119
    %p131 = scmp.eq.s32.totalorder %s20, 1
    %p132 = por %p130, %p131
    %p134 = scmp.ne.s32.totalorder %s119, %s133
    %p135 = scmp.eq.s32.totalorder %s20, 0
    %p136 = por %p134, %p135
    %s138 = sadd.s32 %s137, 1
    %p141 = scmp.eq.s32.totalorder %s14, 1
    %p142 = scmp.ne.s32.totalorder %s137, %s139
    %p143 = scmp.eq.s32.totalorder %s14, 0
    %p144 = por %p142, %p143
    %p145 = scmp.ne.s32.totalorder %s137, %s139
    %p146 = scmp.eq.s32.totalorder %s19, 1
    %p147 = por %p145, %p146
    %p148 = scmp.ne.s32.totalorder %s139, %s140
    %p149 = scmp.eq.s32.totalorder %s19, 0
    %p150 = por %p148, %p149
    %p151 = scmp.ne.s32.totalorder %s139, %s140
    %p152 = scmp.eq.s32.totalorder %s20, 1
    %p153 = por %p151, %p152
    %p155 = scmp.ne.s32.totalorder %s140, %s154
    %p156 = scmp.eq.s32.totalorder %s20, 0
    %p157 = por %p155, %p156
    %s159 = sadd.s32 %s158, 1
    %p162 = scmp.eq.s32.totalorder %s14, 1
    %p163 = scmp.ne.s32.totalorder %s158, %s160
    %p164 = scmp.eq.s32.totalorder %s14, 0
    %p165 = por %p163, %p164
    %p166 = scmp.ne.s32.totalorder %s158, %s160
    %p167 = scmp.eq.s32.totalorder %s19, 1
    %p168 = por %p166, %p167
    %p169 = scmp.ne.s32.totalorder %s160, %s161
    %p170 = scmp.eq.s32.totalorder %s19, 0
    %p171 = por %p169, %p170
    %p172 = scmp.ne.s32.totalorder %s160, %s161
    %p173 = scmp.eq.s32.totalorder %s20, 1
    %p174 = por %p172, %p173
    %p176 = scmp.ne.s32.totalorder %s161, %s175
    %p177 = scmp.eq.s32.totalorder %s20, 0
    %p178 = por %p176, %p177
    %s180 = sadd.s32 %s179, 1
    %p183 = scmp.eq.s32.totalorder %s14, 1
    %p184 = scmp.ne.s32.totalorder %s179, %s181
    %p185 = scmp.eq.s32.totalorder %s14, 0
    %p186 = por %p184, %p185
    %p187 = scmp.ne.s32.totalorder %s179, %s181
    %p188 = scmp.eq.s32.totalorder %s19, 1
    %p189 = por %p187, %p188
    %p190 = scmp.ne.s32.totalorder %s181, %s182
    %p191 = scmp.eq.s32.totalorder %s19, 0
    %p192 = por %p190, %p191
    %p193 = scmp.ne.s32.totalorder %s181, %s182
    %p194 = scmp.eq.s32.totalorder %s20, 1
    %p195 = por %p193, %p194
    %p197 = scmp.ne.s32.totalorder %s182, %s196
    %p198 = scmp.eq.s32.totalorder %s20, 0
    %p199 = por %p197, %p198
    %s200 = ssub.s32 %s14, %s21
    %p201 = scmp.eq.s32.totalorder %s200, 0
    %s203 = sadd.s32 %s202, 1
    %s204 = scalar_select %p201, %s202, %s203
    %p207 = pneg %p201
    %p208 = scmp.eq.s32.totalorder %s14, 1
    %p209 = por %p207, %p208
    %p210 = scmp.ne.s32.totalorder %s202, %s205
    %p211 = scmp.eq.s32.totalorder %s14, 0
    %p212 = por %p210, %p211
    %p213 = scmp.ne.s32.totalorder %s202, %s205
    %p214 = scmp.eq.s32.totalorder %s19, 1
    %p215 = por %p213, %p214
    %p216 = scmp.ne.s32.totalorder %s205, %s206
    %p217 = scmp.eq.s32.totalorder %s19, 0
    %p218 = por %p216, %p217
    %p219 = scmp.ne.s32.totalorder %s205, %s206
    %p220 = scmp.eq.s32.totalorder %s20, 1
    %p221 = por %p219, %p220
    %p223 = scmp.ne.s32.totalorder %s206, %s222
    %p224 = scmp.eq.s32.totalorder %s20, 0
    %p225 = por %p223, %p224
    %p226 = scmp.le.s32.totalorder 1, %s14
    %p227 = scmp.lt.s32.totalorder %s14, 3
    %p228 = pnand %p226, %p227
    %p229 = pneg %p228
    // Predicated region
    $region9: #{encoder_forward.9} parent=5 // pred_check
      _
    $region10: #{encoder_forward.9} parent=5 // pred_check_branch
      %231 = sbr.rel (%p228) target = $region12
    $region11: #{encoder_forward.9} parent=5 // pred_region
      %s232 = ssub.s32 %s14, 1
      // Predicated region
      $region13: #{encoder_forward.9} parent=11 // pred_check
        %p233 = pneg %p87
      $region14: #{encoder_forward.9} parent=11 // pred_check_branch
        %235 = sbr.rel (%p233) target = $region16
      $region15: #{encoder_forward.9} parent=11 // pred_region
        _
      $region16: #{encoder_forward.9} parent=11 // pred_fallthru
        _
      // Predicated region
      $region17: #{encoder_forward.9} parent=11 // pred_check
        %p236 = pneg %p108
      $region18: #{encoder_forward.9} parent=11 // pred_check_branch
        %238 = sbr.rel (%p236) target = $region20
      $region19: #{encoder_forward.9} parent=11 // pred_region
        _
      $region20: #{encoder_forward.9} parent=11 // pred_fallthru
        _
      // Predicated region
      $region21: #{encoder_forward.9} parent=11 // pred_check
        %p239 = pneg %p129
      $region22: #{encoder_forward.9} parent=11 // pred_check_branch
        %241 = sbr.rel (%p239) target = $region24
      $region23: #{encoder_forward.9} parent=11 // pred_region
        _
      $region24: #{encoder_forward.9} parent=11 // pred_fallthru
        _
      // Predicated region
      $region25: #{encoder_forward.9} parent=11 // pred_check
        %p242 = pneg %p150
      $region26: #{encoder_forward.9} parent=11 // pred_check_branch
        %244 = sbr.rel (%p242) target = $region28
      $region27: #{encoder_forward.9} parent=11 // pred_region
        _
      $region28: #{encoder_forward.9} parent=11 // pred_fallthru
        _
      // Predicated region
      $region29: #{encoder_forward.9} parent=11 // pred_check
        %p245 = pneg %p171
      $region30: #{encoder_forward.9} parent=11 // pred_check_branch
        %247 = sbr.rel (%p245) target = $region32
      $region31: #{encoder_forward.9} parent=11 // pred_region
        _
      $region32: #{encoder_forward.9} parent=11 // pred_fallthru
        _
      // Predicated region
      $region33: #{encoder_forward.9} parent=11 // pred_check
        %p248 = pneg %p192
      $region34: #{encoder_forward.9} parent=11 // pred_check_branch
        %250 = sbr.rel (%p248) target = $region36
      $region35: #{encoder_forward.9} parent=11 // pred_region
        _
      $region36: #{encoder_forward.9} parent=11 // pred_fallthru
        _
    $region12: #{encoder_forward.9} parent=5 // pred_fallthru
      _
    %p251 = scmp.lt.s32.totalorder %s14, 2
    // Predicated region
    $region37: #{encoder_forward.9} parent=5 // pred_check
      %p252 = pneg %p251
    $region38: #{encoder_forward.9} parent=5 // pred_check_branch
      %254 = sbr.rel (%p252) target = $region40
    $region39: #{encoder_forward.9} parent=5 // pred_region
      // Predicated region
      $region41: #{encoder_forward.9} parent=39 // pred_check
        %p255 = pneg %p34
      $region42: #{encoder_forward.9} parent=39 // pred_check_branch
        %257 = sbr.rel (%p255) target = $region44
      $region43: #{encoder_forward.9} parent=39 // pred_region
        %p258 = scmp.lt.s32.totalorder %s14, 1
        %s259 = scalar_select %p258, %s14, 1
        %s260 = smul.addr %s259, 8
        %s261 = scalar_lea.vmem %s0, %s260
      $region44: #{encoder_forward.9} parent=39 // pred_fallthru
        _
      // Predicated region
      $region45: #{encoder_forward.9} parent=39 // pred_check
        %p262 = pneg %p60
      $region46: #{encoder_forward.9} parent=39 // pred_check_branch
        %264 = sbr.rel (%p262) target = $region48
      $region47: #{encoder_forward.9} parent=39 // pred_region
        %p265 = scmp.lt.s32.totalorder %s14, 1
        %s266 = scalar_select %p265, %s14, 1
        %s267 = scalar_lea.vmem %s1, %s266
      $region48: #{encoder_forward.9} parent=39 // pred_fallthru
        _
    $region40: #{encoder_forward.9} parent=5 // pred_fallthru
      _
    %p268 = scmp.le.s32.totalorder 1, %s14
    %p269 = scmp.lt.s32.totalorder %s14, 3
    %p270 = pnand %p268, %p269
    %p271 = pneg %p270
    // Predicated region
    $region49: #{encoder_forward.9} parent=5 // pred_check
      _
    $region50: #{encoder_forward.9} parent=5 // pred_check_branch
      %273 = sbr.rel (%p270) target = $region52
    $region51: #{encoder_forward.9} parent=5 // pred_region
      %s274 = ssub.s32 %s14, 1
      %p275 = scmp.lt.s32.totalorder %s19, 1
      %s276 = scalar_select %p275, %s19, 1
      %s277 = smul.addr %s276, 8
      %s278 = scalar_lea.vmem %s0, %s277
      %p279 = pneg %p40
      %p280 = pneg %p37
      %p281 = scmp.lt.s32.totalorder %s19, 1
      %s282 = scalar_select %p281, %s19, 1
      %s283 = scalar_lea.vmem %s1, %s282
      %p284 = pneg %p66
      %p285 = pneg %p63
      %p286 = pneg %p87
      %p287 = pneg %p84
      %p288 = pneg %p108
      %p289 = pneg %p105
      %p290 = pneg %p129
      %p291 = pneg %p126
      %p292 = pneg %p150
      %p293 = pneg %p147
      %p294 = pneg %p171
      %p295 = pneg %p168
      %p296 = pneg %p192
      %p297 = pneg %p189
      %p298 = pneg %p218
      %p299 = pneg %p215
      %p300 = scmp.lt.s32.totalorder %s19, 1
      %s301 = scalar_select %p300, %s19, 1
      %s302 = smul.addr %s301, 8
      %s303 = scalar_lea.vmem %s8, %s302
      %p304 = scmp.lt.s32.totalorder %s19, 1
      %s305 = scalar_select %p304, %s19, 1
      %s306 = smul.addr %s305, 8
      %s307 = scalar_lea.vmem %s0, %s306
      %p308 = scmp.lt.s32.totalorder %s19, 1
      %s309 = scalar_select %p308, %s19, 1
      %s310 = scalar_lea.vmem %s1, %s309
      %p311 = scmp.lt.s32.totalorder %s19, 1
      %s312 = scalar_select %p311, %s19, 1
      %s313 = smul.addr %s312, 8
      %s314 = scalar_lea.vmem %s8, %s313
      %v315 = vld [vmem:[%s307] sm:$0xff]
      %vm316 = vcmask 261120
      %v317 = vsel %vm316, %v315, 0.0
      %318 = vadd.xlane.f32.xlu0 %v317
      %v319 = vpop.xlane.xlu0 %318
      %v320 = vrcp.pop 32.0
      %v321 = vmul.f32 %v319, %v320
      %v322 = vsub.f32 %v315, %v321
      %v323 = vmul.f32 %v322, %v322
      %v324 = vsel %vm316, %v323, 0.0
      %325 = vadd.xlane.f32.xlu0 %v324
      %v326 = vpop.xlane.xlu0 %325
      %v327 = vmul.f32 %v326, 0.032258064
      %v328 = vld [vmem:[%s2] sm:$0x1]
      %v330 = vlaneseq
      %v331 = vshrl.u32 %v330, 7
      %v332 = vsub.s32 0, %v331
      %v333 = vrot.slane %v328, %v332
      %v335 = vmul.f32 %v333, %v322
      %v336 = vrsqrt.pop %v327
      %v337 = vmul.f32 %v327, %v336
      %vm338 = vcmp.eq.f32.partialorder %v327, inf
      %v339 = vsel %vm338, %v327, %v337
      %vm340 = vcmp.eq.f32.partialorder %v327, 0.0
      %v341 = vand.u32 %v327, 2147483648
      %v342 = vsel %vm340, %v341, %v339
      %v343 = vadd.f32 %v342, 1e-06
      %v344 = vrcp.pop %v343
      %v345 = vmul.f32 %v335, %v344
      %v346 = vld [vmem:[%s3] sm:$0x1]
      %v348 = vlaneseq
      %v349 = vshrl.u32 %v348, 7
      %v350 = vsub.s32 0, %v349
      %v351 = vrot.slane %v346, %v350
      %v353 = vadd.f32 %v345, %v351
      %v354 = vld [vmem:[%s4] sm:$0xff]
      %v355 = vld [vmem:[%s4 + $0x8] sm:$0xff]
      %v356 = vld [vmem:[%s4 + $0x10] sm:$0xff]
      %v357 = vld [vmem:[%s4 + $0x18] sm:$0xff]
      %v358 = vld [vmem:[%s5] sm:$0x1]
      %v360 = vlaneseq
      %v361 = vshrl.u32 %v360, 7
      %v362 = vsub.s32 0, %v361
      %v363 = vrot.slane %v358, %v362
      %v366 = vsel %vm316, %v353, 0
      %368 = vmatprep.subr.mxu0 0.0
      %369 = vmatpush1.msra.mxu0 %v354
      %370 = vmatprep.subr.mxu0 0.0
      %371 = vmatpush1.msra.mxu0 %v355
      %372 = vmatprep.subr.mxu0 0.0
      %373 = vmatpush1.msra.mxu0 %v356
      %374 = vmatprep.subr.mxu0 0.0
      %375 = vmatpush1.msra.mxu0 %v357
      %376 = vmatprep.subr.mxu0 0.0
      %377 = vmatpush1.msra.mxu0 0.0
      %378 = vmatprep.subr.mxu0 0.0
      %379 = vmatpush1.msra.mxu0 0.0
      %380 = vmatprep.subr.mxu0 0.0
      %381 = vmatpush1.msra.mxu0 0.0
      %382 = vmatprep.subr.mxu0 0.0
      %383 = vmatpush1.msra.mxu0 0.0
      %384 = vmatprep.subr.mxu0 0.0
      %385 = vmatpush1.msra.mxu0 0.0
      %386 = vmatprep.subr.mxu0 0.0
      %387 = vmatpush1.msra.mxu0 0.0
      %388 = vmatprep.subr.mxu0 0.0
      %389 = vmatpush1.msra.mxu0 0.0
      %390 = vmatprep.subr.mxu0 0.0
      %391 = vmatpush1.msra.mxu0 0.0
      %392 = vmatprep.subr.mxu0 0.0
      %393 = vmatpush1.msra.mxu0 0.0
      %394 = vmatprep.subr.mxu0 0.0
      %395 = vmatpush1.msra.mxu0 0.0
      %396 = vmatprep.subr.mxu0 0.0
      %397 = vmatpush1.msra.mxu0 0.0
      %398 = vmatprep.subr.mxu0 0.0
      %399 = vmatpush1.msra.mxu0 0.0
      %400 = vmatprep.subr.mxu0 0.0
      %401 = vmatpush1.msra.mxu0 0.0
      %402 = vmatprep.subr.mxu0 0.0
      %403 = vmatpush1.msra.mxu0 0.0
      %404 = vmatprep.subr.mxu0 0.0
      %405 = vmatpush1.msra.mxu0 0.0
      %406 = vmatprep.subr.mxu0 0.0
      %407 = vmatpush1.msra.mxu0 0.0
      %408 = vmatprep.subr.mxu0 0.0
      %409 = vmatpush1.msra.mxu0 0.0
      %410 = vmatprep.subr.mxu0 0.0
      %411 = vmatpush1.msra.mxu0 0.0
      %412 = vmatprep.subr.mxu0 0.0
      %413 = vmatpush1.msra.mxu0 0.0
      %414 = vmatprep.subr.mxu0 0.0
      %415 = vmatpush1.msra.mxu0 0.0
      %416 = vmatprep.subr.mxu0 0.0
      %417 = vmatpush1.msra.mxu0 0.0
      %418 = vmatprep.subr.mxu0 0.0
      %419 = vmatpush1.msra.mxu0 0.0
      %420 = vmatprep.subr.mxu0 0.0
      %421 = vmatpush1.msra.mxu0 0.0
      %422 = vmatprep.subr.mxu0 0.0
      %423 = vmatpush1.msra.mxu0 0.0
      %424 = vmatprep.subr.mxu0 0.0
      %425 = vmatpush1.msra.mxu0 0.0
      %426 = vmatprep.subr.mxu0 0.0
      %427 = vmatpush1.msra.mxu0 0.0
      %428 = vmatprep.subr.mxu0 0.0
      %429 = vmatpush1.msra.mxu0 0.0
      %430 = vmatprep.subr.mxu0 0.0
      %431 = vmatpush1.msra.mxu0 0.0
      %432 = vmatprep.mubr.f32.mxu0 0.0
      %433 = vmatmul.mubr.f32.gmra.mrb[0].mxu0 %v366
      %v434 = vpop.f32.mrb[0].mxu0
      %v435 = vadd.f32 %v363, %v434
      %v436 = vpop.f32.mrb[0].mxu0
      %437 = vdwg.mxu0
      %v438 = vld [vmem:[%s310] sm:$0x1]
      %v439 = vld [vmem:[%s6] sm:$0xff]
      %v440 = vld [vmem:[%s6 + $0x8] sm:$0xff]
      %v441 = vld [vmem:[%s6 + $0x10] sm:$0xff]
      %v442 = vld [vmem:[%s6 + $0x18] sm:$0xff]
      %444 = vrot.lane.b32.xlu0 %v435, 96
      %v445 = vpop.permute.xlu0 %444
      %vm446 = vcmask 64512
      %v447 = vsel %vm446, %v435, 0
      %v449 = vsel %vm446, %v445, 0
      %451 = vmatprep.subr.mxu0 0.0
      %452 = vmatpush1.xpose.msra.mxu0 %v449
      %453 = vmatprep.subr.mxu0 0.0
      %454 = vmatpush1.xpose.msra.mxu0 0.0
      %455 = vmatprep.subr.mxu0 0.0
      %456 = vmatpush1.xpose.msra.mxu0 0.0
      %457 = vmatprep.subr.mxu0 0.0
      %458 = vmatpush1.xpose.msra.mxu0 0.0
      %459 = vmatprep.subr.mxu0 0.0
      %460 = vmatpush1.xpose.msra.mxu0 0.0
      %461 = vmatprep.subr.mxu0 0.0
      %462 = vmatpush1.xpose.msra.mxu0 0.0
      %463 = vmatprep.subr.mxu0 0.0
      %464 = vmatpush1.xpose.msra.mxu0 0.0
      %465 = vmatprep.subr.mxu0 0.0
      %466 = vmatpush1.xpose.msra.mxu0 0.0
      %467 = vmatprep.subr.mxu0 0.0
      %468 = vmatpush1.xpose.msra.mxu0 0.0
      %469 = vmatprep.subr.mxu0 0.0
      %470 = vmatpush1.xpose.msra.mxu0 0.0
      %471 = vmatprep.subr.mxu0 0.0
      %472 = vmatpush1.xpose.msra.mxu0 0.0
      %473 = vmatprep.subr.mxu0 0.0
      %474 = vmatpush1.xpose.msra.mxu0 0.0
      %475 = vmatprep.subr.mxu0 0.0
      %476 = vmatpush1.xpose.msra.mxu0 0.0
      %477 = vmatprep.subr.mxu0 0.0
      %478 = vmatpush1.xpose.msra.mxu0 0.0
      %479 = vmatprep.subr.mxu0 0.0
      %480 = vmatpush1.xpose.msra.mxu0 0.0
      %481 = vmatprep.subr.mxu0 0.0
      %482 = vmatpush1.xpose.msra.mxu0 0.0
      %483 = vmatprep.subr.mxu0 0.0
      %484 = vmatpush1.xpose.msra.mxu0 0.0
      %485 = vmatprep.subr.mxu0 0.0
      %486 = vmatpush1.xpose.msra.mxu0 0.0
      %487 = vmatprep.subr.mxu0 0.0
      %488 = vmatpush1.xpose.msra.mxu0 0.0
      %489 = vmatprep.subr.mxu0 0.0
      %490 = vmatpush1.xpose.msra.mxu0 0.0
      %491 = vmatprep.subr.mxu0 0.0
      %492 = vmatpush1.xpose.msra.mxu0 0.0
      %493 = vmatprep.subr.mxu0 0.0
      %494 = vmatpush1.xpose.msra.mxu0 0.0
      %495 = vmatprep.subr.mxu0 0.0
      %496 = vmatpush1.xpose.msra.mxu0 0.0
      %497 = vmatprep.subr.mxu0 0.0
      %498 = vmatpush1.xpose.msra.mxu0 0.0
      %499 = vmatprep.subr.mxu0 0.0
      %500 = vmatpush1.xpose.msra.mxu0 0.0
      %501 = vmatprep.subr.mxu0 0.0
      %502 = vmatpush1.xpose.msra.mxu0 0.0
      %503 = vmatprep.subr.mxu0 0.0
      %504 = vmatpush1.xpose.msra.mxu0 0.0
      %505 = vmatprep.subr.mxu0 0.0
      %506 = vmatpush1.xpose.msra.mxu0 0.0
      %507 = vmatprep.subr.mxu0 0.0
      %508 = vmatpush1.xpose.msra.mxu0 0.0
      %509 = vmatprep.subr.mxu0 0.0
      %510 = vmatpush1.xpose.msra.mxu0 0.0
      %511 = vmatprep.subr.mxu0 0.0
      %512 = vmatpush1.xpose.msra.mxu0 0.0
      %513 = vmatprep.subr.mxu0 0.0
      %514 = vmatpush1.xpose.msra.mxu0 0.0
      %515 = vmatprep.mubr.f32.mxu0 0.0
      %516 = vmatmul.mubr.f32.gmra.mrb[0].mxu0 %v447
      %v517 = vpop.f32.mrb[0].mxu0
      %v518 = vadd.f32 0.0, %v517
      %v519 = vpop.f32.mrb[0].mxu0
      %520 = vdwg.mxu0
      %v521 = vmul.f32 %v518, 0.35355338
      %vm522 = vcmp.eq.s32.totalorder %v438, 0
      %v523 = vsel %vm522, 1, 0
      %v524 = vlaneseq
      %v525 = vshrl.u32 %v524, 7
      %v526 = vsub.s32 0, %v525
      %v527 = vrot.slane %v523, %v526
      %vm528 = vcmp.eq.s32.totalorder %v527, 1
      %v529 = vsel %vm528, -1e+09, %v521
      %v530 = vsel %vm446, %v529, -inf
      %531 = vmax.xlane.f32.xlu0 %v530
      %v532 = vpop.xlane.xlu0 %531
      %v533 = vsub.f32 %v529, %v532
      %v534 = vmul.f32 %v533, 1.442695
      %v535 = vpow.pop %v534
      %v536 = vsel %vm446, %v535, 0.0
      %537 = vadd.xlane.f32.xlu0 %v536
      %v538 = vpop.xlane.xlu0 %537
      %v539 = vrcp.pop %v538
      %v540 = vmul.f32 %v535, %v539
      %541 = vrot.lane.b32.xlu0 %v435, 64
      %v542 = vpop.permute.xlu0 %541
      %v545 = vsel %vm446, %v540, 0
      %547 = vmatprep.subr.mxu0 0.0
      %548 = vmatpush1.msra.mxu0 %v542
      %549 = vmatprep.subr.mxu0 0.0
      %550 = vmatpush1.msra.mxu0 0.0
      %551 = vmatprep.subr.mxu0 0.0
      %552 = vmatpush1.msra.mxu0 0.0
      %553 = vmatprep.subr.mxu0 0.0
      %554 = vmatpush1.msra.mxu0 0.0
      %555 = vmatprep.subr.mxu0 0.0
      %556 = vmatpush1.msra.mxu0 0.0
      %557 = vmatprep.subr.mxu0 0.0
      %558 = vmatpush1.msra.mxu0 0.0
      %559 = vmatprep.subr.mxu0 0.0
      %560 = vmatpush1.msra.mxu0 0.0
      %561 = vmatprep.subr.mxu0 0.0
      %562 = vmatpush1.msra.mxu0 0.0
      %563 = vmatprep.subr.mxu0 0.0
      %564 = vmatpush1.msra.mxu0 0.0
      %565 = vmatprep.subr.mxu0 0.0
      %566 = vmatpush1.msra.mxu0 0.0
      %567 = vmatprep.subr.mxu0 0.0
      %568 = vmatpush1.msra.mxu0 0.0
      %569 = vmatprep.subr.mxu0 0.0
      %570 = vmatpush1.msra.mxu0 0.0
      %571 = vmatprep.subr.mxu0 0.0
      %572 = vmatpush1.msra.mxu0 0.0
      %573 = vmatprep.subr.mxu0 0.0
      %574 = vmatpush1.msra.mxu0 0.0
      %575 = vmatprep.subr.mxu0 0.0
      %576 = vmatpush1.msra.mxu0 0.0
      %577 = vmatprep.subr.mxu0 0.0
      %578 = vmatpush1.msra.mxu0 0.0
      %579 = vmatprep.subr.mxu0 0.0
      %580 = vmatpush1.msra.mxu0 0.0
      %581 = vmatprep.subr.mxu0 0.0
      %582 = vmatpush1.msra.mxu0 0.0
      %583 = vmatprep.subr.mxu0 0.0
      %584 = vmatpush1.msra.mxu0 0.0
      %585 = vmatprep.subr.mxu0 0.0
      %586 = vmatpush1.msra.mxu0 0.0
      %587 = vmatprep.subr.mxu0 0.0
      %588 = vmatpush1.msra.mxu0 0.0
      %589 = vmatprep.subr.mxu0 0.0
      %590 = vmatpush1.msra.mxu0 0.0
      %591 = vmatprep.subr.mxu0 0.0
      %592 = vmatpush1.msra.mxu0 0.0
      %593 = vmatprep.subr.mxu0 0.0
      %594 = vmatpush1.msra.mxu0 0.0
      %595 = vmatprep.subr.mxu0 0.0
      %596 = vmatpush1.msra.mxu0 0.0
      %597 = vmatprep.subr.mxu0 0.0
      %598 = vmatpush1.msra.mxu0 0.0
      %599 = vmatprep.subr.mxu0 0.0
      %600 = vmatpush1.msra.mxu0 0.0
      %601 = vmatprep.subr.mxu0 0.0
      %602 = vmatpush1.msra.mxu0 0.0
      %603 = vmatprep.subr.mxu0 0.0
      %604 = vmatpush1.msra.mxu0 0.0
      %605 = vmatprep.subr.mxu0 0.0
      %606 = vmatpush1.msra.mxu0 0.0
      %607 = vmatprep.subr.mxu0 0.0
      %608 = vmatpush1.msra.mxu0 0.0
      %609 = vmatprep.subr.mxu0 0.0
      %610 = vmatpush1.msra.mxu0 0.0
      %611 = vmatprep.mubr.f32.mxu0 0.0
      %612 = vmatmul.mubr.f32.gmra.mrb[0].mxu0 %v545
      %v613 = vpop.f32.mrb[0].mxu0
      %v614 = vadd.f32 0.0, %v613
      %v615 = vpop.f32.mrb[0].mxu0
      %616 = vdwg.mxu0
      %617 = vrot.lane.b32.xlu0 %v435, 120
      %v618 = vpop.permute.xlu0 %617
      %619 = vrot.lane.b32.xlu0 %v435, 88
      %v620 = vpop.permute.xlu0 %619
      %v621 = vsel %vm446, %v618, 0
      %v623 = vsel %vm446, %v620, 0
      %625 = vmatprep.subr.mxu0 0.0
      %626 = vmatpush1.xpose.msra.mxu0 %v623
      %627 = vmatprep.subr.mxu0 0.0
      %628 = vmatpush1.xpose.msra.mxu0 0.0
      %629 = vmatprep.subr.mxu0 0.0
      %630 = vmatpush1.xpose.msra.mxu0 0.0
      %631 = vmatprep.subr.mxu0 0.0
      %632 = vmatpush1.xpose.msra.mxu0 0.0
      %633 = vmatprep.subr.mxu0 0.0
      %634 = vmatpush1.xpose.msra.mxu0 0.0
      %635 = vmatprep.subr.mxu0 0.0
      %636 = vmatpush1.xpose.msra.mxu0 0.0
      %637 = vmatprep.subr.mxu0 0.0
      %638 = vmatpush1.xpose.msra.mxu0 0.0
      %639 = vmatprep.subr.mxu0 0.0
      %640 = vmatpush1.xpose.msra.mxu0 0.0
      %641 = vmatprep.subr.mxu0 0.0
      %642 = vmatpush1.xpose.msra.mxu0 0.0
      %643 = vmatprep.subr.mxu0 0.0
      %644 = vmatpush1.xpose.msra.mxu0 0.0
      %645 = vmatprep.subr.mxu0 0.0
      %646 = vmatpush1.xpose.msra.mxu0 0.0
      %647 = vmatprep.subr.mxu0 0.0
      %648 = vmatpush1.xpose.msra.mxu0 0.0
      %649 = vmatprep.subr.mxu0 0.0
      %650 = vmatpush1.xpose.msra.mxu0 0.0
      %651 = vmatprep.subr.mxu0 0.0
      %652 = vmatpush1.xpose.msra.mxu0 0.0
      %653 = vmatprep.subr.mxu0 0.0
      %654 = vmatpush1.xpose.msra.mxu0 0.0
      %655 = vmatprep.subr.mxu0 0.0
      %656 = vmatpush1.xpose.msra.mxu0 0.0
      %657 = vmatprep.subr.mxu0 0.0
      %658 = vmatpush1.xpose.msra.mxu0 0.0
      %659 = vmatprep.subr.mxu0 0.0
      %660 = vmatpush1.xpose.msra.mxu0 0.0
      %661 = vmatprep.subr.mxu0 0.0
      %662 = vmatpush1.xpose.msra.mxu0 0.0
      %663 = vmatprep.subr.mxu0 0.0
      %664 = vmatpush1.xpose.msra.mxu0 0.0
      %665 = vmatprep.subr.mxu0 0.0
      %666 = vmatpush1.xpose.msra.mxu0 0.0
      %667 = vmatprep.subr.mxu0 0.0
      %668 = vmatpush1.xpose.msra.mxu0 0.0
      %669 = vmatprep.subr.mxu0 0.0
      %670 = vmatpush1.xpose.msra.mxu0 0.0
      %671 = vmatprep.subr.mxu0 0.0
      %672 = vmatpush1.xpose.msra.mxu0 0.0
      %673 = vmatprep.subr.mxu0 0.0
      %674 = vmatpush1.xpose.msra.mxu0 0.0
      %675 = vmatprep.subr.mxu0 0.0
      %676 = vmatpush1.xpose.msra.mxu0 0.0
      %677 = vmatprep.subr.mxu0 0.0
      %678 = vmatpush1.xpose.msra.mxu0 0.0
      %679 = vmatprep.subr.mxu0 0.0
      %680 = vmatpush1.xpose.msra.mxu0 0.0
      %681 = vmatprep.subr.mxu0 0.0
      %682 = vmatpush1.xpose.msra.mxu0 0.0
      %683 = vmatprep.subr.mxu0 0.0
      %684 = vmatpush1.xpose.msra.mxu0 0.0
      %685 = vmatprep.subr.mxu0 0.0
      %686 = vmatpush1.xpose.msra.mxu0 0.0
      %687 = vmatprep.subr.mxu0 0.0
      %688 = vmatpush1.xpose.msra.mxu0 0.0
      %689 = vmatprep.mubr.f32.mxu0 0.0
      %690 = vmatmul.mubr.f32.gmra.mrb[0].mxu0 %v621
      %v691 = vpop.f32.mrb[0].mxu0
      %v692 = vadd.f32 0.0, %v691
      %v693 = vpop.f32.mrb[0].mxu0
      %694 = vdwg.mxu0
      %v695 = vmul.f32 %v692, 0.35355338
      %v696 = vsel %vm528, -1e+09, %v695
      %v697 = vsel %vm446, %v696, -inf
      %698 = vmax.xlane.f32.xlu0 %v697
      %v699 = vpop.xlane.xlu0 %698
      %v700 = vsub.f32 %v696, %v699
      %v701 = vmul.f32 %v700, 1.442695
      %v702 = vpow.pop %v701
      %v703 = vsel %vm446, %v702, 0.0
      %704 = vadd.xlane.f32.xlu0 %v703
      %v705 = vpop.xlane.xlu0 %704
      %v706 = vrcp.pop %v705
      %v707 = vmul.f32 %v702, %v706
      %708 = vrot.lane.b32.xlu0 %v435, 56
      %v709 = vpop.permute.xlu0 %708
      %v712 = vsel %vm446, %v707, 0
      %714 = vmatprep.subr.mxu0 0.0
      %715 = vmatpush1.msra.mxu0 %v709
      %716 = vmatprep.subr.mxu0 0.0
      %717 = vmatpush1.msra.mxu0 0.0
      %718 = vmatprep.subr.mxu0 0.0
      %719 = vmatpush1.msra.mxu0 0.0
      %720 = vmatprep.subr.mxu0 0.0
      %721 = vmatpush1.msra.mxu0 0.0
      %722 = vmatprep.subr.mxu0 0.0
      %723 = vmatpush1.msra.mxu0 0.0
      %724 = vmatprep.subr.mxu0 0.0
      %725 = vmatpush1.msra.mxu0 0.0
      %726 = vmatprep.subr.mxu0 0.0
      %727 = vmatpush1.msra.mxu0 0.0
      %728 = vmatprep.subr.mxu0 0.0
      %729 = vmatpush1.msra.mxu0 0.0
      %730 = vmatprep.subr.mxu0 0.0
      %731 = vmatpush1.msra.mxu0 0.0
      %732 = vmatprep.subr.mxu0 0.0
      %733 = vmatpush1.msra.mxu0 0.0
      %734 = vmatprep.subr.mxu0 0.0
      %735 = vmatpush1.msra.mxu0 0.0
      %736 = vmatprep.subr.mxu0 0.0
      %737 = vmatpush1.msra.mxu0 0.0
      %738 = vmatprep.subr.mxu0 0.0
      %739 = vmatpush1.msra.mxu0 0.0
      %740 = vmatprep.subr.mxu0 0.0
      %741 = vmatpush1.msra.mxu0 0.0
      %742 = vmatprep.subr.mxu0 0.0
      %743 = vmatpush1.msra.mxu0 0.0
      %744 = vmatprep.subr.mxu0 0.0
      %745 = vmatpush1.msra.mxu0 0.0
      %746 = vmatprep.subr.mxu0 0.0
      %747 = vmatpush1.msra.mxu0 0.0
      %748 = vmatprep.subr.mxu0 0.0
      %749 = vmatpush1.msra.mxu0 0.0
      %750 = vmatprep.subr.mxu0 0.0
      %751 = vmatpush1.msra.mxu0 0.0
      %752 = vmatprep.subr.mxu0 0.0
      %753 = vmatpush1.msra.mxu0 0.0
      %754 = vmatprep.subr.mxu0 0.0
      %755 = vmatpush1.msra.mxu0 0.0
      %756 = vmatprep.subr.mxu0 0.0
      %757 = vmatpush1.msra.mxu0 0.0
      %758 = vmatprep.subr.mxu0 0.0
      %759 = vmatpush1.msra.mxu0 0.0
      %760 = vmatprep.subr.mxu0 0.0
      %761 = vmatpush1.msra.mxu0 0.0
      %762 = vmatprep.subr.mxu0 0.0
      %763 = vmatpush1.msra.mxu0 0.0
      %764 = vmatprep.subr.mxu0 0.0
      %765 = vmatpush1.msra.mxu0 0.0
      %766 = vmatprep.subr.mxu0 0.0
      %767 = vmatpush1.msra.mxu0 0.0
      %768 = vmatprep.subr.mxu0 0.0
      %769 = vmatpush1.msra.mxu0 0.0
      %770 = vmatprep.subr.mxu0 0.0
      %771 = vmatpush1.msra.mxu0 0.0
      %772 = vmatprep.subr.mxu0 0.0
      %773 = vmatpush1.msra.mxu0 0.0
      %774 = vmatprep.subr.mxu0 0.0
      %775 = vmatpush1.msra.mxu0 0.0
      %776 = vmatprep.subr.mxu0 0.0
      %777 = vmatpush1.msra.mxu0 0.0
      %778 = vmatprep.mubr.f32.mxu0 0.0
      %779 = vmatmul.mubr.f32.gmra.mrb[0].mxu0 %v712
      %v780 = vpop.f32.mrb[0].mxu0
      %v781 = vadd.f32 0.0, %v780
      %v782 = vpop.f32.mrb[0].mxu0
      %783 = vdwg.mxu0
      %v785 = vsel %vm446, %v781, 0
      %787 = vmatprep.subr.mxu0 0.0
      %788 = vmatpush1.msra.mxu0 %v440
      %789 = vmatprep.subr.mxu0 0.0
      %790 = vmatpush1.msra.mxu0 0.0
      %791 = vmatprep.subr.mxu0 0.0
      %792 = vmatpush1.msra.mxu0 0.0
      %793 = vmatprep.subr.mxu0 0.0
      %794 = vmatpush1.msra.mxu0 0.0
      %795 = vmatprep.subr.mxu0 0.0
      %796 = vmatpush1.msra.mxu0 0.0
      %797 = vmatprep.subr.mxu0 0.0
      %798 = vmatpush1.msra.mxu0 0.0
      %799 = vmatprep.subr.mxu0 0.0
      %800 = vmatpush1.msra.mxu0 0.0
      %801 = vmatprep.subr.mxu0 0.0
      %802 = vmatpush1.msra.mxu0 0.0
      %803 = vmatprep.subr.mxu0 0.0
      %804 = vmatpush1.msra.mxu0 0.0
      %805 = vmatprep.subr.mxu0 0.0
      %806 = vmatpush1.msra.mxu0 0.0
      %807 = vmatprep.subr.mxu0 0.0
      %808 = vmatpush1.msra.mxu0 0.0
      %809 = vmatprep.subr.mxu0 0.0
      %810 = vmatpush1.msra.mxu0 0.0
      %811 = vmatprep.subr.mxu0 0.0
      %812 = vmatpush1.msra.mxu0 0.0
      %813 = vmatprep.subr.mxu0 0.0
      %814 = vmatpush1.msra.mxu0 0.0
      %815 = vmatprep.subr.mxu0 0.0
      %816 = vmatpush1.msra.mxu0 0.0
      %817 = vmatprep.subr.mxu0 0.0
      %818 = vmatpush1.msra.mxu0 0.0
      %819 = vmatprep.subr.mxu0 0.0
      %820 = vmatpush1.msra.mxu0 0.0
      %821 = vmatprep.subr.mxu0 0.0
      %822 = vmatpush1.msra.mxu0 0.0
      %823 = vmatprep.subr.mxu0 0.0
      %824 = vmatpush1.msra.mxu0 0.0
      %825 = vmatprep.subr.mxu0 0.0
      %826 = vmatpush1.msra.mxu0 0.0
      %827 = vmatprep.subr.mxu0 0.0
      %828 = vmatpush1.msra.mxu0 0.0
      %829 = vmatprep.subr.mxu0 0.0
      %830 = vmatpush1.msra.mxu0 0.0
      %831 = vmatprep.subr.mxu0 0.0
      %832 = vmatpush1.msra.mxu0 0.0
      %833 = vmatprep.subr.mxu0 0.0
      %834 = vmatpush1.msra.mxu0 0.0
      %835 = vmatprep.subr.mxu0 0.0
      %836 = vmatpush1.msra.mxu0 0.0
      %837 = vmatprep.subr.mxu0 0.0
      %838 = vmatpush1.msra.mxu0 0.0
      %839 = vmatprep.subr.mxu0 0.0
      %840 = vmatpush1.msra.mxu0 0.0
      %841 = vmatprep.subr.mxu0 0.0
      %842 = vmatpush1.msra.mxu0 0.0
      %843 = vmatprep.subr.mxu0 0.0
      %844 = vmatpush1.msra.mxu0 0.0
      %845 = vmatprep.subr.mxu0 0.0
      %846 = vmatpush1.msra.mxu0 0.0
      %847 = vmatprep.subr.mxu0 0.0
      %848 = vmatpush1.msra.mxu0 0.0
      %849 = vmatprep.subr.mxu0 0.0
      %850 = vmatpush1.msra.mxu0 0.0
      %851 = vmatprep.mubr.f32.mxu0 0.0
      %852 = vmatmul.mubr.f32.gmra.mrb[0].mxu0 %v785
      %v853 = vpop.f32.mrb[0].mxu0
      %v854 = vadd.f32 0.0, %v853
      %v855 = vpop.f32.mrb[0].mxu0
      %856 = vdwg.mxu0
      %v858 = vsel %vm446, %v614, 0
      %860 = vmatprep.subr.mxu0 0.0
      %861 = vmatpush1.msra.mxu0 %v439
      %862 = vmatprep.subr.mxu0 0.0
      %863 = vmatpush1.msra.mxu0 0.0
      %864 = vmatprep.subr.mxu0 0.0
      %865 = vmatpush1.msra.mxu0 0.0
      %866 = vmatprep.subr.mxu0 0.0
      %867 = vmatpush1.msra.mxu0 0.0
      %868 = vmatprep.subr.mxu0 0.0
      %869 = vmatpush1.msra.mxu0 0.0
      %870 = vmatprep.subr.mxu0 0.0
      %871 = vmatpush1.msra.mxu0 0.0
      %872 = vmatprep.subr.mxu0 0.0
      %873 = vmatpush1.msra.mxu0 0.0
      %874 = vmatprep.subr.mxu0 0.0
      %875 = vmatpush1.msra.mxu0 0.0
      %876 = vmatprep.subr.mxu0 0.0
      %877 = vmatpush1.msra.mxu0 0.0
      %878 = vmatprep.subr.mxu0 0.0
      %879 = vmatpush1.msra.mxu0 0.0
      %880 = vmatprep.subr.mxu0 0.0
      %881 = vmatpush1.msra.mxu0 0.0
      %882 = vmatprep.subr.mxu0 0.0
      %883 = vmatpush1.msra.mxu0 0.0
      %884 = vmatprep.subr.mxu0 0.0
      %885 = vmatpush1.msra.mxu0 0.0
      %886 = vmatprep.subr.mxu0 0.0
      %887 = vmatpush1.msra.mxu0 0.0
      %888 = vmatprep.subr.mxu0 0.0
      %889 = vmatpush1.msra.mxu0 0.0
      %890 = vmatprep.subr.mxu0 0.0
      %891 = vmatpush1.msra.mxu0 0.0
      %892 = vmatprep.subr.mxu0 0.0
      %893 = vmatpush1.msra.mxu0 0.0
      %894 = vmatprep.subr.mxu0 0.0
      %895 = vmatpush1.msra.mxu0 0.0
      %896 = vmatprep.subr.mxu0 0.0
      %897 = vmatpush1.msra.mxu0 0.0
      %898 = vmatprep.subr.mxu0 0.0
      %899 = vmatpush1.msra.mxu0 0.0
      %900 = vmatprep.subr.mxu0 0.0
      %901 = vmatpush1.msra.mxu0 0.0
      %902 = vmatprep.subr.mxu0 0.0
      %903 = vmatpush1.msra.mxu0 0.0
      %904 = vmatprep.subr.mxu0 0.0
      %905 = vmatpush1.msra.mxu0 0.0
      %906 = vmatprep.subr.mxu0 0.0
      %907 = vmatpush1.msra.mxu0 0.0
      %908 = vmatprep.subr.mxu0 0.0
      %909 = vmatpush1.msra.mxu0 0.0
      %910 = vmatprep.subr.mxu0 0.0
      %911 = vmatpush1.msra.mxu0 0.0
      %912 = vmatprep.subr.mxu0 0.0
      %913 = vmatpush1.msra.mxu0 0.0
      %914 = vmatprep.subr.mxu0 0.0
      %915 = vmatpush1.msra.mxu0 0.0
      %916 = vmatprep.subr.mxu0 0.0
      %917 = vmatpush1.msra.mxu0 0.0
      %918 = vmatprep.subr.mxu0 0.0
      %919 = vmatpush1.msra.mxu0 0.0
      %920 = vmatprep.subr.mxu0 0.0
      %921 = vmatpush1.msra.mxu0 0.0
      %922 = vmatprep.subr.mxu0 0.0
      %923 = vmatpush1.msra.mxu0 0.0
      %924 = vmatprep.mubr.f32.mxu0 0.0
      %925 = vmatmul.mubr.f32.gmra.mrb[0].mxu0 %v858
      %v926 = vpop.f32.mrb[0].mxu0
      %v927 = vadd.f32 %v854, %v926
      %v928 = vpop.f32.mrb[0].mxu0
      %929 = vdwg.mxu0
      %930 = vrot.lane.b32.xlu0 %v435, 112
      %v931 = vpop.permute.xlu0 %930
      %932 = vrot.lane.b32.xlu0 %v435, 80
      %v933 = vpop.permute.xlu0 %932
      %v934 = vsel %vm446, %v931, 0
      %v936 = vsel %vm446, %v933, 0
      %938 = vmatprep.subr.mxu0 0.0
      %939 = vmatpush1.xpose.msra.mxu0 %v936
      %940 = vmatprep.subr.mxu0 0.0
      %941 = vmatpush1.xpose.msra.mxu0 0.0
      %942 = vmatprep.subr.mxu0 0.0
      %943 = vmatpush1.xpose.msra.mxu0 0.0
      %944 = vmatprep.subr.mxu0 0.0
      %945 = vmatpush1.xpose.msra.mxu0 0.0
      %946 = vmatprep.subr.mxu0 0.0
      %947 = vmatpush1.xpose.msra.mxu0 0.0
      %948 = vmatprep.subr.mxu0 0.0
      %949 = vmatpush1.xpose.msra.mxu0 0.0
      %950 = vmatprep.subr.mxu0 0.0
      %951 = vmatpush1.xpose.msra.mxu0 0.0
      %952 = vmatprep.subr.mxu0 0.0
      %953 = vmatpush1.xpose.msra.mxu0 0.0
      %954 = vmatprep.subr.mxu0 0.0
      %955 = vmatpush1.xpose.msra.mxu0 0.0
      %956 = vmatprep.subr.mxu0 0.0
      %957 = vmatpush1.xpose.msra.mxu0 0.0
      %958 = vmatprep.subr.mxu0 0.0
      %959 = vmatpush1.xpose.msra.mxu0 0.0
      %960 = vmatprep.subr.mxu0 0.0
      %961 = vmatpush1.xpose.msra.mxu0 0.0
      %962 = vmatprep.subr.mxu0 0.0
      %963 = vmatpush1.xpose.msra.mxu0 0.0
      %964 = vmatprep.subr.mxu0 0.0
      %965 = vmatpush1.xpose.msra.mxu0 0.0
      %966 = vmatprep.subr.mxu0 0.0
      %967 = vmatpush1.xpose.msra.mxu0 0.0
      %968 = vmatprep.subr.mxu0 0.0
      %969 = vmatpush1.xpose.msra.mxu0 0.0
      %970 = vmatprep.subr.mxu0 0.0
      %971 = vmatpush1.xpose.msra.mxu0 0.0
      %972 = vmatprep.subr.mxu0 0.0
      %973 = vmatpush1.xpose.msra.mxu0 0.0
      %974 = vmatprep.subr.mxu0 0.0
      %975 = vmatpush1.xpose.msra.mxu0 0.0
      %976 = vmatprep.subr.mxu0 0.0
      %977 = vmatpush1.xpose.msra.mxu0 0.0
      %978 = vmatprep.subr.mxu0 0.0
      %979 = vmatpush1.xpose.msra.mxu0 0.0
      %980 = vmatprep.subr.mxu0 0.0
      %981 = vmatpush1.xpose.msra.mxu0 0.0
      %982 = vmatprep.subr.mxu0 0.0
      %983 = vmatpush1.xpose.msra.mxu0 0.0
      %984 = vmatprep.subr.mxu0 0.0
      %985 = vmatpush1.xpose.msra.mxu0 0.0
      %986 = vmatprep.subr.mxu0 0.0
      %987 = vmatpush1.xpose.msra.mxu0 0.0
      %988 = vmatprep.subr.mxu0 0.0
      %989 = vmatpush1.xpose.msra.mxu0 0.0
      %990 = vmatprep.subr.mxu0 0.0
      %991 = vmatpush1.xpose.msra.mxu0 0.0
      %992 = vmatprep.subr.mxu0 0.0
      %993 = vmatpush1.xpose.msra.mxu0 0.0
      %994 = vmatprep.subr.mxu0 0.0
      %995 = vmatpush1.xpose.msra.mxu0 0.0
      %996 = vmatprep.subr.mxu0 0.0
      %997 = vmatpush1.xpose.msra.mxu0 0.0
      %998 = vmatprep.subr.mxu0 0.0
      %999 = vmatpush1.xpose.msra.mxu0 0.0
      %1000 = vmatprep.subr.mxu0 0.0
      %1001 = vmatpush1.xpose.msra.mxu0 0.0
      %1002 = vmatprep.mubr.f32.mxu0 0.0
      %1003 = vmatmul.mubr.f32.gmra.mrb[0].mxu0 %v934
      %v1004 = vpop.f32.mrb[0].mxu0
      %v1005 = vadd.f32 0.0, %v1004
      %v1006 = vpop.f32.mrb[0].mxu0
      %1007 = vdwg.mxu0
      %v1008 = vmul.f32 %v1005, 0.35355338
      %v1009 = vsel %vm528, -1e+09, %v1008
      %v1010 = vsel %vm446, %v1009, -inf
      %1011 = vmax.xlane.f32.xlu0 %v1010
      %v1012 = vpop.xlane.xlu0 %1011
      %v1013 = vsub.f32 %v1009, %v1012
      %v1014 = vmul.f32 %v1013, 1.442695
      %v1015 = vpow.pop %v1014
      %v1016 = vsel %vm446, %v1015, 0.0
      %1017 = vadd.xlane.f32.xlu0 %v1016
      %v1018 = vpop.xlane.xlu0 %1017
      %v1019 = vrcp.pop %v1018
      %v1020 = vmul.f32 %v1015, %v1019
      %1021 = vrot.lane.b32.xlu0 %v435, 48
      %v1022 = vpop.permute.xlu0 %1021
      %v1025 = vsel %vm446, %v1020, 0
      %1027 = vmatprep.subr.mxu0 0.0
      %1028 = vmatpush1.msra.mxu0 %v1022
      %1029 = vmatprep.subr.mxu0 0.0
      %1030 = vmatpush1.msra.mxu0 0.0
      %1031 = vmatprep.subr.mxu0 0.0
      %1032 = vmatpush1.msra.mxu0 0.0
      %1033 = vmatprep.subr.mxu0 0.0
      %1034 = vmatpush1.msra.mxu0 0.0
      %1035 = vmatprep.subr.mxu0 0.0
      %1036 = vmatpush1.msra.mxu0 0.0
      %1037 = vmatprep.subr.mxu0 0.0
      %1038 = vmatpush1.msra.mxu0 0.0
      %1039 = vmatprep.subr.mxu0 0.0
      %1040 = vmatpush1.msra.mxu0 0.0
      %1041 = vmatprep.subr.mxu0 0.0
      %1042 = vmatpush1.msra.mxu0 0.0
      %1043 = vmatprep.subr.mxu0 0.0
      %1044 = vmatpush1.msra.mxu0 0.0
      %1045 = vmatprep.subr.mxu0 0.0
      %1046 = vmatpush1.msra.mxu0 0.0
      %1047 = vmatprep.subr.mxu0 0.0
      %1048 = vmatpush1.msra.mxu0 0.0
      %1049 = vmatprep.subr.mxu0 0.0
      %1050 = vmatpush1.msra.mxu0 0.0
      %1051 = vmatprep.subr.mxu0 0.0
      %1052 = vmatpush1.msra.mxu0 0.0
      %1053 = vmatprep.subr.mxu0 0.0
      %1054 = vmatpush1.msra.mxu0 0.0
      %1055 = vmatprep.subr.mxu0 0.0
      %1056 = vmatpush1.msra.mxu0 0.0
      %1057 = vmatprep.subr.mxu0 0.0
      %1058 = vmatpush1.msra.mxu0 0.0
      %1059 = vmatprep.subr.mxu0 0.0
      %1060 = vmatpush1.msra.mxu0 0.0
      %1061 = vmatprep.subr.mxu0 0.0
      %1062 = vmatpush1.msra.mxu0 0.0
      %1063 = vmatprep.subr.mxu0 0.0
      %1064 = vmatpush1.msra.mxu0 0.0
      %1065 = vmatprep.subr.mxu0 0.0
      %1066 = vmatpush1.msra.mxu0 0.0
      %1067 = vmatprep.subr.mxu0 0.0
      %1068 = vmatpush1.msra.mxu0 0.0
      %1069 = vmatprep.subr.mxu0 0.0
      %1070 = vmatpush1.msra.mxu0 0.0
      %1071 = vmatprep.subr.mxu0 0.0
      %1072 = vmatpush1.msra.mxu0 0.0
      %1073 = vmatprep.subr.mxu0 0.0
      %1074 = vmatpush1.msra.mxu0 0.0
      %1075 = vmatprep.subr.mxu0 0.0
      %1076 = vmatpush1.msra.mxu0 0.0
      %1077 = vmatprep.subr.mxu0 0.0
      %1078 = vmatpush1.msra.mxu0 0.0
      %1079 = vmatprep.subr.mxu0 0.0
      %1080 = vmatpush1.msra.mxu0 0.0
      %1081 = vmatprep.subr.mxu0 0.0
      %1082 = vmatpush1.msra.mxu0 0.0
      %1083 = vmatprep.subr.mxu0 0.0
      %1084 = vmatpush1.msra.mxu0 0.0
      %1085 = vmatprep.subr.mxu0 0.0
      %1086 = vmatpush1.msra.mxu0 0.0
      %1087 = vmatprep.subr.mxu0 0.0
      %1088 = vmatpush1.msra.mxu0 0.0
      %1089 = vmatprep.subr.mxu0 0.0
      %1090 = vmatpush1.msra.mxu0 0.0
      %1091 = vmatprep.mubr.f32.mxu0 0.0
      %1092 = vmatmul.mubr.f32.gmra.mrb[0].mxu0 %v1025
      %v1093 = vpop.f32.mrb[0].mxu0
      %v1094 = vadd.f32 0.0, %v1093
      %v1095 = vpop.f32.mrb[0].mxu0
      %1096 = vdwg.mxu0
      %v1098 = vsel %vm446, %v1094, 0
      %1100 = vmatprep.subr.mxu0 0.0
      %1101 = vmatpush1.msra.mxu0 %v441
      %1102 = vmatprep.subr.mxu0 0.0
      %1103 = vmatpush1.msra.mxu0 0.0
      %1104 = vmatprep.subr.mxu0 0.0
      %1105 = vmatpush1.msra.mxu0 0.0
      %1106 = vmatprep.subr.mxu0 0.0
      %1107 = vmatpush1.msra.mxu0 0.0
      %1108 = vmatprep.subr.mxu0 0.0
      %1109 = vmatpush1.msra.mxu0 0.0
      %1110 = vmatprep.subr.mxu0 0.0
      %1111 = vmatpush1.msra.mxu0 0.0
      %1112 = vmatprep.subr.mxu0 0.0
      %1113 = vmatpush1.msra.mxu0 0.0
      %1114 = vmatprep.subr.mxu0 0.0
      %1115 = vmatpush1.msra.mxu0 0.0
      %1116 = vmatprep.subr.mxu0 0.0
      %1117 = vmatpush1.msra.mxu0 0.0
      %1118 = vmatprep.subr.mxu0 0.0
      %1119 = vmatpush1.msra.mxu0 0.0
      %1120 = vmatprep.subr.mxu0 0.0
      %1121 = vmatpush1.msra.mxu0 0.0
      %1122 = vmatprep.subr.mxu0 0.0
      %1123 = vmatpush1.msra.mxu0 0.0
      %1124 = vmatprep.subr.mxu0 0.0
      %1125 = vmatpush1.msra.mxu0 0.0
      %1126 = vmatprep.subr.mxu0 0.0
      %1127 = vmatpush1.msra.mxu0 0.0
      %1128 = vmatprep.subr.mxu0 0.0
      %1129 = vmatpush1.msra.mxu0 0.0
      %1130 = vmatprep.subr.mxu0 0.0
      %1131 = vmatpush1.msra.mxu0 0.0
      %1132 = vmatprep.subr.mxu0 0.0
      %1133 = vmatpush1.msra.mxu0 0.0
      %1134 = vmatprep.subr.mxu0 0.0
      %1135 = vmatpush1.msra.mxu0 0.0
      %1136 = vmatprep.subr.mxu0 0.0
      %1137 = vmatpush1.msra.mxu0 0.0
      %1138 = vmatprep.subr.mxu0 0.0
      %1139 = vmatpush1.msra.mxu0 0.0
      %1140 = vmatprep.subr.mxu0 0.0
      %1141 = vmatpush1.msra.mxu0 0.0
      %1142 = vmatprep.subr.mxu0 0.0
      %1143 = vmatpush1.msra.mxu0 0.0
      %1144 = vmatprep.subr.mxu0 0.0
      %1145 = vmatpush1.msra.mxu0 0.0
      %1146 = vmatprep.subr.mxu0 0.0
      %1147 = vmatpush1.msra.mxu0 0.0
      %1148 = vmatprep.subr.mxu0 0.0
      %1149 = vmatpush1.msra.mxu0 0.0
      %1150 = vmatprep.subr.mxu0 0.0
      %1151 = vmatpush1.msra.mxu0 0.0
      %1152 = vmatprep.subr.mxu0 0.0
      %1153 = vmatpush1.msra.mxu0 0.0
      %1154 = vmatprep.subr.mxu0 0.0
      %1155 = vmatpush1.msra.mxu0 0.0
      %1156 = vmatprep.subr.mxu0 0.0
      %1157 = vmatpush1.msra.mxu0 0.0
      %1158 = vmatprep.subr.mxu0 0.0
      %1159 = vmatpush1.msra.mxu0 0.0
      %1160 = vmatprep.subr.mxu0 0.0
      %1161 = vmatpush1.msra.mxu0 0.0
      %1162 = vmatprep.subr.mxu0 0.0
      %1163 = vmatpush1.msra.mxu0 0.0
      %1164 = vmatprep.mubr.f32.mxu0 0.0
      %1165 = vmatmul.mubr.f32.gmra.mrb[0].mxu0 %v1098
      %v1166 = vpop.f32.mrb[0].mxu0
      %v1167 = vadd.f32 0.0, %v1166
      %v1168 = vpop.f32.mrb[0].mxu0
      %1169 = vdwg.mxu0
      %v1170 = vadd.f32 %v927, %v1167
      %1171 = vrot.lane.b32.xlu0 %v435, 104
      %v1172 = vpop.permute.xlu0 %1171
      %1173 = vrot.lane.b32.xlu0 %v435, 72
      %v1174 = vpop.permute.xlu0 %1173
      %v1175 = vsel %vm446, %v1172, 0
      %v1177 = vsel %vm446, %v1174, 0
      %1179 = vmatprep.subr.mxu0 0.0
      %1180 = vmatpush1.xpose.msra.mxu0 %v1177
      %1181 = vmatprep.subr.mxu0 0.0
      %1182 = vmatpush1.xpose.msra.mxu0 0.0
      %1183 = vmatprep.subr.mxu0 0.0
      %1184 = vmatpush1.xpose.msra.mxu0 0.0
      %1185 = vmatprep.subr.mxu0 0.0
      %1186 = vmatpush1.xpose.msra.mxu0 0.0
      %1187 = vmatprep.subr.mxu0 0.0
      %1188 = vmatpush1.xpose.msra.mxu0 0.0
      %1189 = vmatprep.subr.mxu0 0.0
      %1190 = vmatpush1.xpose.msra.mxu0 0.0
      %1191 = vmatprep.subr.mxu0 0.0
      %1192 = vmatpush1.xpose.msra.mxu0 0.0
      %1193 = vmatprep.subr.mxu0 0.0
      %1194 = vmatpush1.xpose.msra.mxu0 0.0
      %1195 = vmatprep.subr.mxu0 0.0
      %1196 = vmatpush1.xpose.msra.mxu0 0.0
      %1197 = vmatprep.subr.mxu0 0.0
      %1198 = vmatpush1.xpose.msra.mxu0 0.0
      %1199 = vmatprep.subr.mxu0 0.0
      %1200 = vmatpush1.xpose.msra.mxu0 0.0
      %1201 = vmatprep.subr.mxu0 0.0
      %1202 = vmatpush1.xpose.msra.mxu0 0.0
      %1203 = vmatprep.subr.mxu0 0.0
      %1204 = vmatpush1.xpose.msra.mxu0 0.0
      %1205 = vmatprep.subr.mxu0 0.0
      %1206 = vmatpush1.xpose.msra.mxu0 0.0
      %1207 = vmatprep.subr.mxu0 0.0
      %1208 = vmatpush1.xpose.msra.mxu0 0.0
      %1209 = vmatprep.subr.mxu0 0.0
      %1210 = vmatpush1.xpose.msra.mxu0 0.0
      %1211 = vmatprep.subr.mxu0 0.0
      %1212 = vmatpush1.xpose.msra.mxu0 0.0
      %1213 = vmatprep.subr.mxu0 0.0
      %1214 = vmatpush1.xpose.msra.mxu0 0.0
      %1215 = vmatprep.subr.mxu0 0.0
      %1216 = vmatpush1.xpose.msra.mxu0 0.0
      %1217 = vmatprep.subr.mxu0 0.0
      %1218 = vmatpush1.xpose.msra.mxu0 0.0
      %1219 = vmatprep.subr.mxu0 0.0
      %1220 = vmatpush1.xpose.msra.mxu0 0.0
      %1221 = vmatprep.subr.mxu0 0.0
      %1222 = vmatpush1.xpose.msra.mxu0 0.0
      %1223 = vmatprep.subr.mxu0 0.0
      %1224 = vmatpush1.xpose.msra.mxu0 0.0
      %1225 = vmatprep.subr.mxu0 0.0
      %1226 = vmatpush1.xpose.msra.mxu0 0.0
      %1227 = vmatprep.subr.mxu0 0.0
      %1228 = vmatpush1.xpose.msra.mxu0 0.0
      %1229 = vmatprep.subr.mxu0 0.0
      %1230 = vmatpush1.xpose.msra.mxu0 0.0
      %1231 = vmatprep.subr.mxu0 0.0
      %1232 = vmatpush1.xpose.msra.mxu0 0.0
      %1233 = vmatprep.subr.mxu0 0.0
      %1234 = vmatpush1.xpose.msra.mxu0 0.0
      %1235 = vmatprep.subr.mxu0 0.0
      %1236 = vmatpush1.xpose.msra.mxu0 0.0
      %1237 = vmatprep.subr.mxu0 0.0
      %1238 = vmatpush1.xpose.msra.mxu0 0.0
      %1239 = vmatprep.subr.mxu0 0.0
      %1240 = vmatpush1.xpose.msra.mxu0 0.0
      %1241 = vmatprep.subr.mxu0 0.0
      %1242 = vmatpush1.xpose.msra.mxu0 0.0
      %1243 = vmatprep.mubr.f32.mxu0 0.0
      %1244 = vmatmul.mubr.f32.gmra.mrb[0].mxu0 %v1175
      %v1245 = vpop.f32.mrb[0].mxu0
      %v1246 = vadd.f32 0.0, %v1245
      %v1247 = vpop.f32.mrb[0].mxu0
      %1248 = vdwg.mxu0
      %v1249 = vmul.f32 %v1246, 0.35355338
      %v1250 = vsel %vm528, -1e+09, %v1249
      %v1251 = vsel %vm446, %v1250, -inf
      %1252 = vmax.xlane.f32.xlu0 %v1251
      %v1253 = vpop.xlane.xlu0 %1252
      %v1254 = vsub.f32 %v1250, %v1253
      %v1255 = vmul.f32 %v1254, 1.442695
      %v1256 = vpow.pop %v1255
      %v1257 = vsel %vm446, %v1256, 0.0
      %1258 = vadd.xlane.f32.xlu0 %v1257
      %v1259 = vpop.xlane.xlu0 %1258
      %v1260 = vrcp.pop %v1259
      %v1261 = vmul.f32 %v1256, %v1260
      %1262 = vrot.lane.b32.xlu0 %v435, 40
      %v1263 = vpop.permute.xlu0 %1262
      %v1266 = vsel %vm446, %v1261, 0
      %1268 = vmatprep.subr.mxu0 0.0
      %1269 = vmatpush1.msra.mxu0 %v1263
      %1270 = vmatprep.subr.mxu0 0.0
      %1271 = vmatpush1.msra.mxu0 0.0
      %1272 = vmatprep.subr.mxu0 0.0
      %1273 = vmatpush1.msra.mxu0 0.0
      %1274 = vmatprep.subr.mxu0 0.0
      %1275 = vmatpush1.msra.mxu0 0.0
      %1276 = vmatprep.subr.mxu0 0.0
      %1277 = vmatpush1.msra.mxu0 0.0
      %1278 = vmatprep.subr.mxu0 0.0
      %1279 = vmatpush1.msra.mxu0 0.0
      %1280 = vmatprep.subr.mxu0 0.0
      %1281 = vmatpush1.msra.mxu0 0.0
      %1282 = vmatprep.subr.mxu0 0.0
      %1283 = vmatpush1.msra.mxu0 0.0
      %1284 = vmatprep.subr.mxu0 0.0
      %1285 = vmatpush1.msra.mxu0 0.0
      %1286 = vmatprep.subr.mxu0 0.0
      %1287 = vmatpush1.msra.mxu0 0.0
      %1288 = vmatprep.subr.mxu0 0.0
      %1289 = vmatpush1.msra.mxu0 0.0
      %1290 = vmatprep.subr.mxu0 0.0
      %1291 = vmatpush1.msra.mxu0 0.0
      %1292 = vmatprep.subr.mxu0 0.0
      %1293 = vmatpush1.msra.mxu0 0.0
      %1294 = vmatprep.subr.mxu0 0.0
      %1295 = vmatpush1.msra.mxu0 0.0
      %1296 = vmatprep.subr.mxu0 0.0
      %1297 = vmatpush1.msra.mxu0 0.0
      %1298 = vmatprep.subr.mxu0 0.0
      %1299 = vmatpush1.msra.mxu0 0.0
      %1300 = vmatprep.subr.mxu0 0.0
      %1301 = vmatpush1.msra.mxu0 0.0
      %1302 = vmatprep.subr.mxu0 0.0
      %1303 = vmatpush1.msra.mxu0 0.0
      %1304 = vmatprep.subr.mxu0 0.0
      %1305 = vmatpush1.msra.mxu0 0.0
      %1306 = vmatprep.subr.mxu0 0.0
      %1307 = vmatpush1.msra.mxu0 0.0
      %1308 = vmatprep.subr.mxu0 0.0
      %1309 = vmatpush1.msra.mxu0 0.0
      %1310 = vmatprep.subr.mxu0 0.0
      %1311 = vmatpush1.msra.mxu0 0.0
      %1312 = vmatprep.subr.mxu0 0.0
      %1313 = vmatpush1.msra.mxu0 0.0
      %1314 = vmatprep.subr.mxu0 0.0
      %1315 = vmatpush1.msra.mxu0 0.0
      %1316 = vmatprep.subr.mxu0 0.0
      %1317 = vmatpush1.msra.mxu0 0.0
      %1318 = vmatprep.subr.mxu0 0.0
      %1319 = vmatpush1.msra.mxu0 0.0
      %1320 = vmatprep.subr.mxu0 0.0
      %1321 = vmatpush1.msra.mxu0 0.0
      %1322 = vmatprep.subr.mxu0 0.0
      %1323 = vmatpush1.msra.mxu0 0.0
      %1324 = vmatprep.subr.mxu0 0.0
      %1325 = vmatpush1.msra.mxu0 0.0
      %1326 = vmatprep.subr.mxu0 0.0
      %1327 = vmatpush1.msra.mxu0 0.0
      %1328 = vmatprep.subr.mxu0 0.0
      %1329 = vmatpush1.msra.mxu0 0.0
      %1330 = vmatprep.subr.mxu0 0.0
      %1331 = vmatpush1.msra.mxu0 0.0
      %1332 = vmatprep.mubr.f32.mxu0 0.0
      %1333 = vmatmul.mubr.f32.gmra.mrb[0].mxu0 %v1266
      %v1334 = vpop.f32.mrb[0].mxu0
      %v1335 = vadd.f32 0.0, %v1334
      %v1336 = vpop.f32.mrb[0].mxu0
      %1337 = vdwg.mxu0
      %v1339 = vsel %vm446, %v1335, 0
      %1341 = vmatprep.subr.mxu0 0.0
      %1342 = vmatpush1.msra.mxu0 %v442
      %1343 = vmatprep.subr.mxu0 0.0
      %1344 = vmatpush1.msra.mxu0 0.0
      %1345 = vmatprep.subr.mxu0 0.0
      %1346 = vmatpush1.msra.mxu0 0.0
      %1347 = vmatprep.subr.mxu0 0.0
      %1348 = vmatpush1.msra.mxu0 0.0
      %1349 = vmatprep.subr.mxu0 0.0
      %1350 = vmatpush1.msra.mxu0 0.0
      %1351 = vmatprep.subr.mxu0 0.0
      %1352 = vmatpush1.msra.mxu0 0.0
      %1353 = vmatprep.subr.mxu0 0.0
      %1354 = vmatpush1.msra.mxu0 0.0
      %1355 = vmatprep.subr.mxu0 0.0
      %1356 = vmatpush1.msra.mxu0 0.0
      %1357 = vmatprep.subr.mxu0 0.0
      %1358 = vmatpush1.msra.mxu0 0.0
      %1359 = vmatprep.subr.mxu0 0.0
      %1360 = vmatpush1.msra.mxu0 0.0
      %1361 = vmatprep.subr.mxu0 0.0
      %1362 = vmatpush1.msra.mxu0 0.0
      %1363 = vmatprep.subr.mxu0 0.0
      %1364 = vmatpush1.msra.mxu0 0.0
      %1365 = vmatprep.subr.mxu0 0.0
      %1366 = vmatpush1.msra.mxu0 0.0
      %1367 = vmatprep.subr.mxu0 0.0
      %1368 = vmatpush1.msra.mxu0 0.0
      %1369 = vmatprep.subr.mxu0 0.0
      %1370 = vmatpush1.msra.mxu0 0.0
      %1371 = vmatprep.subr.mxu0 0.0
      %1372 = vmatpush1.msra.mxu0 0.0
      %1373 = vmatprep.subr.mxu0 0.0
      %1374 = vmatpush1.msra.mxu0 0.0
      %1375 = vmatprep.subr.mxu0 0.0
      %1376 = vmatpush1.msra.mxu0 0.0
      %1377 = vmatprep.subr.mxu0 0.0
      %1378 = vmatpush1.msra.mxu0 0.0
      %1379 = vmatprep.subr.mxu0 0.0
      %1380 = vmatpush1.msra.mxu0 0.0
      %1381 = vmatprep.subr.mxu0 0.0
      %1382 = vmatpush1.msra.mxu0 0.0
      %1383 = vmatprep.subr.mxu0 0.0
      %1384 = vmatpush1.msra.mxu0 0.0
      %1385 = vmatprep.subr.mxu0 0.0
      %1386 = vmatpush1.msra.mxu0 0.0
      %1387 = vmatprep.subr.mxu0 0.0
      %1388 = vmatpush1.msra.mxu0 0.0
      %1389 = vmatprep.subr.mxu0 0.0
      %1390 = vmatpush1.msra.mxu0 0.0
      %1391 = vmatprep.subr.mxu0 0.0
      %1392 = vmatpush1.msra.mxu0 0.0
      %1393 = vmatprep.subr.mxu0 0.0
      %1394 = vmatpush1.msra.mxu0 0.0
      %1395 = vmatprep.subr.mxu0 0.0
      %1396 = vmatpush1.msra.mxu0 0.0
      %1397 = vmatprep.subr.mxu0 0.0
      %1398 = vmatpush1.msra.mxu0 0.0
      %1399 = vmatprep.subr.mxu0 0.0
      %1400 = vmatpush1.msra.mxu0 0.0
      %1401 = vmatprep.subr.mxu0 0.0
      %1402 = vmatpush1.msra.mxu0 0.0
      %1403 = vmatprep.subr.mxu0 0.0
      %1404 = vmatpush1.msra.mxu0 0.0
      %1405 = vmatprep.mubr.f32.mxu0 0.0
      %1406 = vmatmul.mubr.f32.gmra.mrb[0].mxu0 %v1339
      %v1407 = vpop.f32.mrb[0].mxu0
      %v1408 = vadd.f32 0.0, %v1407
      %v1409 = vpop.f32.mrb[0].mxu0
      %1410 = vdwg.mxu0
      %v1411 = vadd.f32 %v1170, %v1408
      %v1412 = vld [vmem:[%s7] sm:$0x1]
      %v1414 = vlaneseq
      %v1415 = vshrl.u32 %v1414, 7
      %v1416 = vsub.s32 0, %v1415
      %v1417 = vrot.slane %v1412, %v1416
      %v1419 = vadd.f32 %v1411, %v1417
      %v1420 = vadd.f32 %v315, %v1419
      %1421 = vst.msk [vmem:[%s314] sm:$0xff] %vm316, %v1420
      %p1422 = scmp.lt.s32.totalorder %s19, 1
      %s1423 = scalar_select %p1422, %s19, 1
      %s1424 = smul.addr %s1423, 8
      %s1425 = scalar_lea.vmem %s8, %s1424
      // Predicated region
      $region53: #{encoder_forward.9} parent=51 // pred_check
        %p1426 = pneg %p215
      $region54: #{encoder_forward.9} parent=51 // pred_check_branch
        %1428 = sbr.rel (%p1426) target = $region56
      $region55: #{encoder_forward.9} parent=51 // pred_region
        _
      $region56: #{encoder_forward.9} parent=51 // pred_fallthru
        _
    $region52: #{encoder_forward.9} parent=5 // pred_fallthru
      _
    %p1429 = scmp.le.s32.totalorder 2, %s14
    // Predicated region
    $region57: #{encoder_forward.9} parent=5 // pred_check
      %p1430 = pneg %p1429
    $region58: #{encoder_forward.9} parent=5 // pred_check_branch
      %1432 = sbr.rel (%p1430) target = $region60
    $region59: #{encoder_forward.9} parent=5 // pred_region
      %s1433 = ssub.s32 %s14, 2
      // Predicated region
      $region61: #{encoder_forward.9} parent=59 // pred_check
        %p1434 = pneg %p221
      $region62: #{encoder_forward.9} parent=59 // pred_check_branch
        %1436 = sbr.rel (%p1434) target = $region64
      $region63: #{encoder_forward.9} parent=59 // pred_region
        %p1437 = scmp.lt.s32.totalorder %s20, 1
        %s1438 = scalar_select %p1437, %s20, 1
        %s1439 = smul.addr %s1438, 8
        %s1440 = scalar_lea.vmem %s8, %s1439
      $region64: #{encoder_forward.9} parent=59 // pred_fallthru
        _
    $region60: #{encoder_forward.9} parent=5 // pred_fallthru
      _
  $region6: #{encoder_forward.9} parent=0 // loop_footer
    %s18 = sadd.s32 1, %s14
  $region7: #{encoder_forward.9} parent=0 // loop_footer_branch
    %13 = sbr.rel target = $region3
  $region8: #{encoder_forward.9} parent=0 // loop_exit
    _

// kernel: encoder_forward.8
$region0: #{encoder_forward.8}
  #allocation0 [shape = 'u32[]', space=smem, size = 0x4, offset = 0x4, fixed_abs, tag = 'smem constant byte address 0x4 - core index']
  #allocation1 [shape = 'u32[144,128]{1,0:T(1,128)}', space=vmem, size = 0x12000, scoped, tag = 'internal scratch']
  %s0 = inlined_call_operand.vmem [shape: f32[16,32], index: 0, kind: input, shape index: {}]
  %s1 = inlined_call_operand.vmem [shape: f32[1,32], index: 1, kind: input, shape index: {}]
  %s2 = inlined_call_operand.vmem [shape: f32[1,32], index: 2, kind: input, shape index: {}]
  %s3 = inlined_call_operand.vmem [shape: f32[32,2048], index: 3, kind: input, shape index: {}]
  %s4 = inlined_call_operand.vmem [shape: f32[1,2048], index: 4, kind: input, shape index: {}]
  %s5 = inlined_call_operand.vmem [shape: f32[2048,32], index: 5, kind: input, shape index: {}]
  %s6 = inlined_call_operand.vmem [shape: f32[1,32], index: 6, kind: input, shape index: {}]
  %s7 = inlined_call_operand.vmem [shape: f32[16,32], index: 7, kind: output, shape index: {}]
  %s8 = sld [smem:[#allocation0]]
  $region38: #{encoder_forward.8} parent=0
    _
  %s10 = ssub.s32 1, %s8
  %s11 = scalar_select 0, %s10, %s8
  // Predicated region
  $region2: #{encoder_forward.8} parent=0 // pred_check
    _
  $region3: #{encoder_forward.8} parent=0 // pred_check_branch
    %13 = sbr.rel (0) target = $region5
  $region4: #{encoder_forward.8} parent=0 // pred_region
    _
  $region5: #{encoder_forward.8} parent=0 // pred_fallthru
    _
  // Predicated region
  $region6: #{encoder_forward.8} parent=0 // pred_check
    _
  $region7: #{encoder_forward.8} parent=0 // pred_check_branch
    %15 = sbr.rel (0) target = $region9
  $region8: #{encoder_forward.8} parent=0 // pred_region
    _
  $region9: #{encoder_forward.8} parent=0 // pred_fallthru
    _
  // Predicated region
  $region10: #{encoder_forward.8} parent=0 // pred_check
    _
  $region11: #{encoder_forward.8} parent=0 // pred_check_branch
    %17 = sbr.rel (0) target = $region13
  $region12: #{encoder_forward.8} parent=0 // pred_region
    _
  $region13: #{encoder_forward.8} parent=0 // pred_fallthru
    _
  // Predicated region
  $region14: #{encoder_forward.8} parent=0 // pred_check
    _
  $region15: #{encoder_forward.8} parent=0 // pred_check_branch
    %19 = sbr.rel (0) target = $region17
  $region16: #{encoder_forward.8} parent=0 // pred_region
    _
  $region17: #{encoder_forward.8} parent=0 // pred_fallthru
    _
  // Predicated region
  $region18: #{encoder_forward.8} parent=0 // pred_check
    _
  $region19: #{encoder_forward.8} parent=0 // pred_check_branch
    %21 = sbr.rel (0) target = $region21
  $region20: #{encoder_forward.8} parent=0 // pred_region
    _
  $region21: #{encoder_forward.8} parent=0 // pred_fallthru
    _
  // Predicated region
  $region22: #{encoder_forward.8} parent=0 // pred_check
    _
  $region23: #{encoder_forward.8} parent=0 // pred_check_branch
    %23 = sbr.rel (0) target = $region25
  $region24: #{encoder_forward.8} parent=0 // pred_region
    _
  $region25: #{encoder_forward.8} parent=0 // pred_fallthru
    _
  // Predicated region
  $region26: #{encoder_forward.8} parent=0 // pred_check
    _
  $region27: #{encoder_forward.8} parent=0 // pred_check_branch
    %25 = sbr.rel (0) target = $region29
  $region28: #{encoder_forward.8} parent=0 // pred_region
    _
  $region29: #{encoder_forward.8} parent=0 // pred_fallthru
    _
  %v26 = vld [vmem:[%s0] sm:$0xff]
  %v27 = vld [vmem:[%s0 + $0x8] sm:$0xff]
  %vm28 = vcmask 261120
  %v29 = vsel %vm28, %v26, 0.0
  %30 = vadd.xlane.f32.xlu0 %v29
  %v31 = vpop.xlane.xlu0 %30
  %v32 = vsel %vm28, %v27, 0.0
  %33 = vadd.xlane.f32.xlu0 %v32
  %v34 = vpop.xlane.xlu0 %33
  %v35 = vrcp.pop 32.0
  %v36 = vmul.f32 %v31, %v35
  %v37 = vmul.f32 %v34, %v35
  %v38 = vsub.f32 %v26, %v36
  %v39 = vsub.f32 %v27, %v37
  %v40 = vmul.f32 %v38, %v38
  %v41 = vmul.f32 %v39, %v39
  %v42 = vsel %vm28, %v40, 0.0
  %43 = vadd.xlane.f32.xlu0 %v42
  %v44 = vpop.xlane.xlu0 %43
  %v45 = vsel %vm28, %v41, 0.0
  %46 = vadd.xlane.f32.xlu0 %v45
  %v47 = vpop.xlane.xlu0 %46
  %v48 = vmul.f32 %v44, 0.032258064
  %v49 = vmul.f32 %v47, 0.032258064
  %v50 = vld [vmem:[%s1] sm:$0x1]
  %v52 = vlaneseq
  %v53 = vshrl.u32 %v52, 7
  %v54 = vsub.s32 0, %v53
  %v55 = vrot.slane %v50, %v54
  %v57 = vmul.f32 %v55, %v38
  %v58 = vmul.f32 %v55, %v39
  %v59 = vrsqrt.pop %v48
  %v60 = vmul.f32 %v48, %v59
  %vm61 = vcmp.eq.f32.partialorder %v48, inf
  %v62 = vsel %vm61, %v48, %v60
  %vm63 = vcmp.eq.f32.partialorder %v48, 0.0
  %v64 = vand.u32 %v48, 2147483648
  %v65 = vsel %vm63, %v64, %v62
  %v66 = vrsqrt.pop %v49
  %v67 = vmul.f32 %v49, %v66
  %vm68 = vcmp.eq.f32.partialorder %v49, inf
  %v69 = vsel %vm68, %v49, %v67
  %vm70 = vcmp.eq.f32.partialorder %v49, 0.0
  %v71 = vand.u32 %v49, 2147483648
  %v72 = vsel %vm70, %v71, %v69
  %v73 = vadd.f32 %v65, 1e-06
  %v74 = vadd.f32 %v72, 1e-06
  %v75 = vrcp.pop %v73
  %v76 = vmul.f32 %v57, %v75
  %v77 = vrcp.pop %v74
  %v78 = vmul.f32 %v58, %v77
  %v79 = vld [vmem:[%s2] sm:$0x1]
  %v81 = vlaneseq
  %v82 = vshrl.u32 %v81, 7
  %v83 = vsub.s32 0, %v82
  %v84 = vrot.slane %v79, %v83
  %v86 = vadd.f32 %v76, %v84
  %v87 = vadd.f32 %v78, %v84
  %v88 = vld [vmem:[%s3] sm:$0xff]
  %v89 = vld [vmem:[%s3 + $0x8] sm:$0xff]
  %v90 = vld [vmem:[%s3 + $0x10] sm:$0xff]
  %v91 = vld [vmem:[%s3 + $0x18] sm:$0xff]
  %v92 = vld [vmem:[%s3 + $0x20] sm:$0xff]
  %v93 = vld [vmem:[%s3 + $0x28] sm:$0xff]
  %v94 = vld [vmem:[%s3 + $0x30] sm:$0xff]
  %v95 = vld [vmem:[%s3 + $0x38] sm:$0xff]
  %v96 = vld [vmem:[%s3 + $0x40] sm:$0xff]
  %v97 = vld [vmem:[%s3 + $0x48] sm:$0xff]
  %v98 = vld [vmem:[%s3 + $0x50] sm:$0xff]
  %v99 = vld [vmem:[%s3 + $0x58] sm:$0xff]
  %v100 = vld [vmem:[%s3 + $0x60] sm:$0xff]
  %v101 = vld [vmem:[%s3 + $0x68] sm:$0xff]
  %v102 = vld [vmem:[%s3 + $0x70] sm:$0xff]
  %v103 = vld [vmem:[%s3 + $0x78] sm:$0xff]
  %v104 = vld [vmem:[%s3 + $0x80] sm:$0xff]
  %v105 = vld [vmem:[%s3 + $0x88] sm:$0xff]
  %v106 = vld [vmem:[%s3 + $0x90] sm:$0xff]
  %v107 = vld [vmem:[%s3 + $0x98] sm:$0xff]
  %v108 = vld [vmem:[%s3 + $0xa0] sm:$0xff]
  %v109 = vld [vmem:[%s3 + $0xa8] sm:$0xff]
  %v110 = vld [vmem:[%s3 + $0xb0] sm:$0xff]
  %v111 = vld [vmem:[%s3 + $0xb8] sm:$0xff]
  %v112 = vld [vmem:[%s3 + $0xc0] sm:$0xff]
  %v113 = vld [vmem:[%s3 + $0xc8] sm:$0xff]
  %v114 = vld [vmem:[%s3 + $0xd0] sm:$0xff]
  %v115 = vld [vmem:[%s3 + $0xd8] sm:$0xff]
  %v116 = vld [vmem:[%s3 + $0xe0] sm:$0xff]
  %v117 = vld [vmem:[%s3 + $0xe8] sm:$0xff]
  %v118 = vld [vmem:[%s3 + $0xf0] sm:$0xff]
  %v119 = vld [vmem:[%s3 + $0xf8] sm:$0xff]
  %v120 = vld [vmem:[%s3 + $0x100] sm:$0xff]
  %v121 = vld [vmem:[%s3 + $0x108] sm:$0xff]
  %v122 = vld [vmem:[%s3 + $0x110] sm:$0xff]
  %v123 = vld [vmem:[%s3 + $0x118] sm:$0xff]
  %v124 = vld [vmem:[%s3 + $0x120] sm:$0xff]
  %v125 = vld [vmem:[%s3 + $0x128] sm:$0xff]
  %v126 = vld [vmem:[%s3 + $0x130] sm:$0xff]
  %v127 = vld [vmem:[%s3 + $0x138] sm:$0xff]
  %v128 = vld [vmem:[%s3 + $0x140] sm:$0xff]
  %v129 = vld [vmem:[%s3 + $0x148] sm:$0xff]
  %v130 = vld [vmem:[%s3 + $0x150] sm:$0xff]
  %v131 = vld [vmem:[%s3 + $0x158] sm:$0xff]
  %v132 = vld [vmem:[%s3 + $0x160] sm:$0xff]
  %v133 = vld [vmem:[%s3 + $0x168] sm:$0xff]
  %v134 = vld [vmem:[%s3 + $0x170] sm:$0xff]
  %v135 = vld [vmem:[%s3 + $0x178] sm:$0xff]
  %v136 = vld [vmem:[%s3 + $0x180] sm:$0xff]
  %v137 = vld [vmem:[%s3 + $0x188] sm:$0xff]
  %v138 = vld [vmem:[%s3 + $0x190] sm:$0xff]
  %v139 = vld [vmem:[%s3 + $0x198] sm:$0xff]
  %v140 = vld [vmem:[%s3 + $0x1a0] sm:$0xff]
  %v141 = vld [vmem:[%s3 + $0x1a8] sm:$0xff]
  %v142 = vld [vmem:[%s3 + $0x1b0] sm:$0xff]
  %v143 = vld [vmem:[%s3 + $0x1b8] sm:$0xff]
  %v144 = vld [vmem:[%s3 + $0x1c0] sm:$0xff]
  %v145 = vld [vmem:[%s3 + $0x1c8] sm:$0xff]
  %v146 = vld [vmem:[%s3 + $0x1d0] sm:$0xff]
  %v147 = vld [vmem:[%s3 + $0x1d8] sm:$0xff]
  %v148 = vld [vmem:[%s3 + $0x1e0] sm:$0xff]
  %v149 = vld [vmem:[%s3 + $0x1e8] sm:$0xff]
  %v150 = vld [vmem:[%s3 + $0x1f0] sm:$0xff]
  %v151 = vld [vmem:[%s3 + $0x1f8] sm:$0xff]
  %v152 = vld [vmem:[%s4] sm:$0xff]
  %v153 = vld [vmem:[%s4 + $0x8] sm:$0xff]
  %v156 = vlaneseq
  %v157 = vshrl.u32 %v156, 7
  %v158 = vsub.s32 0, %v157
  %v159 = vrot.slane %v152, %v158
  %v160 = vlaneseq
  %v161 = vshrl.u32 %v160, 7
  %v162 = vsub.s32 1, %v161
  %v163 = vrot.slane %v152, %v162
  %v164 = vlaneseq
  %v165 = vshrl.u32 %v164, 7
  %v166 = vsub.s32 2, %v165
  %v167 = vrot.slane %v152, %v166
  %v168 = vlaneseq
  %v169 = vshrl.u32 %v168, 7
  %v170 = vsub.s32 3, %v169
  %v171 = vrot.slane %v152, %v170
  %v172 = vlaneseq
  %v173 = vshrl.u32 %v172, 7
  %v174 = vsub.s32 4, %v173
  %v175 = vrot.slane %v152, %v174
  %v176 = vlaneseq
  %v177 = vshrl.u32 %v176, 7
  %v178 = vsub.s32 5, %v177
  %v179 = vrot.slane %v152, %v178
  %v180 = vlaneseq
  %v181 = vshrl.u32 %v180, 7
  %v182 = vsub.s32 6, %v181
  %v183 = vrot.slane %v152, %v182
  %v184 = vlaneseq
  %v185 = vshrl.u32 %v184, 7
  %v186 = vsub.s32 7, %v185
  %v187 = vrot.slane %v152, %v186
  %v188 = vlaneseq
  %v189 = vshrl.u32 %v188, 7
  %v190 = vsub.s32 0, %v189
  %v191 = vrot.slane %v153, %v190
  %v192 = vlaneseq
  %v193 = vshrl.u32 %v192, 7
  %v194 = vsub.s32 1, %v193
  %v195 = vrot.slane %v153, %v194
  %v196 = vlaneseq
  %v197 = vshrl.u32 %v196, 7
  %v198 = vsub.s32 2, %v197
  %v199 = vrot.slane %v153, %v198
  %v200 = vlaneseq
  %v201 = vshrl.u32 %v200, 7
  %v202 = vsub.s32 3, %v201
  %v203 = vrot.slane %v153, %v202
  %v204 = vlaneseq
  %v205 = vshrl.u32 %v204, 7
  %v206 = vsub.s32 4, %v205
  %v207 = vrot.slane %v153, %v206
  %v208 = vlaneseq
  %v209 = vshrl.u32 %v208, 7
  %v210 = vsub.s32 5, %v209
  %v211 = vrot.slane %v153, %v210
  %v212 = vlaneseq
  %v213 = vshrl.u32 %v212, 7
  %v214 = vsub.s32 6, %v213
  %v215 = vrot.slane %v153, %v214
  %v216 = vlaneseq
  %v217 = vshrl.u32 %v216, 7
  %v218 = vsub.s32 7, %v217
  %v219 = vrot.slane %v153, %v218
  %v237 = vsel %vm28, %v86, 0
  %v240 = vsel %vm28, %v87, 0
  %242 = vmatprep.subr.mxu0 %v89
  %243 = vmatpush1.msra.mxu0 %v88
  %244 = vmatprep.subr.mxu0 %v105
  %245 = vmatpush1.msra.mxu0 %v104
  %246 = vmatprep.subr.mxu0 %v121
  %247 = vmatpush1.msra.mxu0 %v120
  %248 = vmatprep.subr.mxu0 %v137
  %249 = vmatpush1.msra.mxu0 %v136
  %250 = vmatprep.subr.mxu0 0.0
  %251 = vmatpush1.msra.mxu0 0.0
  %252 = vmatprep.subr.mxu0 0.0
  %253 = vmatpush1.msra.mxu0 0.0
  %254 = vmatprep.subr.mxu0 0.0
  %255 = vmatpush1.msra.mxu0 0.0
  %256 = vmatprep.subr.mxu0 0.0
  %257 = vmatpush1.msra.mxu0 0.0
  %258 = vmatprep.subr.mxu0 0.0
  %259 = vmatpush1.msra.mxu0 0.0
  %260 = vmatprep.subr.mxu0 0.0
  %261 = vmatpush1.msra.mxu0 0.0
  %262 = vmatprep.subr.mxu0 0.0
  %263 = vmatpush1.msra.mxu0 0.0
  %264 = vmatprep.subr.mxu0 0.0
  %265 = vmatpush1.msra.mxu0 0.0
  %266 = vmatprep.subr.mxu0 0.0
  %267 = vmatpush1.msra.mxu0 0.0
  %268 = vmatprep.subr.mxu0 0.0
  %269 = vmatpush1.msra.mxu0 0.0
  %270 = vmatprep.subr.mxu0 0.0
  %271 = vmatpush1.msra.mxu0 0.0
  %272 = vmatprep.subr.mxu0 0.0
  %273 = vmatpush1.msra.mxu0 0.0
  %274 = vmatprep.subr.mxu0 0.0
  %275 = vmatpush1.msra.mxu0 0.0
  %276 = vmatprep.subr.mxu0 0.0
  %277 = vmatpush1.msra.mxu0 0.0
  %278 = vmatprep.subr.mxu0 0.0
  %279 = vmatpush1.msra.mxu0 0.0
  %280 = vmatprep.subr.mxu0 0.0
  %281 = vmatpush1.msra.mxu0 0.0
  %282 = vmatprep.subr.mxu0 0.0
  %283 = vmatpush1.msra.mxu0 0.0
  %284 = vmatprep.subr.mxu0 0.0
  %285 = vmatpush1.msra.mxu0 0.0
  %286 = vmatprep.subr.mxu0 0.0
  %287 = vmatpush1.msra.mxu0 0.0
  %288 = vmatprep.subr.mxu0 0.0
  %289 = vmatpush1.msra.mxu0 0.0
  %290 = vmatprep.subr.mxu0 0.0
  %291 = vmatpush1.msra.mxu0 0.0
  %292 = vmatprep.subr.mxu0 0.0
  %293 = vmatpush1.msra.mxu0 0.0
  %294 = vmatprep.subr.mxu0 0.0
  %295 = vmatpush1.msra.mxu0 0.0
  %296 = vmatprep.subr.mxu0 0.0
  %297 = vmatpush1.msra.mxu0 0.0
  %298 = vmatprep.subr.mxu0 0.0
  %299 = vmatpush1.msra.mxu0 0.0
  %300 = vmatprep.subr.mxu0 0.0
  %301 = vmatpush1.msra.mxu0 0.0
  %302 = vmatprep.subr.mxu0 0.0
  %303 = vmatpush1.msra.mxu0 0.0
  %304 = vmatprep.subr.mxu0 0.0
  %305 = vmatpush1.msra.mxu0 0.0
  %306 = vmatprep.mubr.f32.mxu0 0.0
  %307 = vmatmul.mubr.f32.gmra.mrb[0].mxu0 %v237
  %v308 = vpop.f32.mrb[0].mxu0
  %v309 = vadd.f32 %v159, %v308
  %v310 = vpop.f32.mrb[0].mxu0
  %v311 = vadd.f32 %v163, %v310
  %312 = vmatprep.mubr.f32.mxu0 0.0
  %313 = vmatmul.mubr.f32.gmra.mrb[0].mxu0 %v240
  %v314 = vpop.f32.mrb[0].mxu0
  %v315 = vadd.f32 %v159, %v314
  %v316 = vpop.f32.mrb[0].mxu0
  %v317 = vadd.f32 %v163, %v316
  %318 = vdwg.mxu0
  %319 = vmatprep.subr.mxu0 %v91
  %320 = vmatpush1.msra.mxu0 %v90
  %321 = vmatprep.subr.mxu0 %v107
  %322 = vmatpush1.msra.mxu0 %v106
  %323 = vmatprep.subr.mxu0 %v123
  %324 = vmatpush1.msra.mxu0 %v122
  %325 = vmatprep.subr.mxu0 %v139
  %326 = vmatpush1.msra.mxu0 %v138
  %327 = vmatprep.subr.mxu0 0.0
  %328 = vmatpush1.msra.mxu0 0.0
  %329 = vmatprep.subr.mxu0 0.0
  %330 = vmatpush1.msra.mxu0 0.0
  %331 = vmatprep.subr.mxu0 0.0
  %332 = vmatpush1.msra.mxu0 0.0
  %333 = vmatprep.subr.mxu0 0.0
  %334 = vmatpush1.msra.mxu0 0.0
  %335 = vmatprep.subr.mxu0 0.0
  %336 = vmatpush1.msra.mxu0 0.0
  %337 = vmatprep.subr.mxu0 0.0
  %338 = vmatpush1.msra.mxu0 0.0
  %339 = vmatprep.subr.mxu0 0.0
  %340 = vmatpush1.msra.mxu0 0.0
  %341 = vmatprep.subr.mxu0 0.0
  %342 = vmatpush1.msra.mxu0 0.0
  %343 = vmatprep.subr.mxu0 0.0
  %344 = vmatpush1.msra.mxu0 0.0
  %345 = vmatprep.subr.mxu0 0.0
  %346 = vmatpush1.msra.mxu0 0.0
  %347 = vmatprep.subr.mxu0 0.0
  %348 = vmatpush1.msra.mxu0 0.0
  %349 = vmatprep.subr.mxu0 0.0
  %350 = vmatpush1.msra.mxu0 0.0
  %351 = vmatprep.subr.mxu0 0.0
  %352 = vmatpush1.msra.mxu0 0.0
  %353 = vmatprep.subr.mxu0 0.0
  %354 = vmatpush1.msra.mxu0 0.0
  %355 = vmatprep.subr.mxu0 0.0
  %356 = vmatpush1.msra.mxu0 0.0
  %357 = vmatprep.subr.mxu0 0.0
  %358 = vmatpush1.msra.mxu0 0.0
  %359 = vmatprep.subr.mxu0 0.0
  %360 = vmatpush1.msra.mxu0 0.0
  %361 = vmatprep.subr.mxu0 0.0
  %362 = vmatpush1.msra.mxu0 0.0
  %363 = vmatprep.subr.mxu0 0.0
  %364 = vmatpush1.msra.mxu0 0.0
  %365 = vmatprep.subr.mxu0 0.0
  %366 = vmatpush1.msra.mxu0 0.0
  %367 = vmatprep.subr.mxu0 0.0
  %368 = vmatpush1.msra.mxu0 0.0
  %369 = vmatprep.subr.mxu0 0.0
  %370 = vmatpush1.msra.mxu0 0.0
  %371 = vmatprep.subr.mxu0 0.0
  %372 = vmatpush1.msra.mxu0 0.0
  %373 = vmatprep.subr.mxu0 0.0
  %374 = vmatpush1.msra.mxu0 0.0
  %375 = vmatprep.subr.mxu0 0.0
  %376 = vmatpush1.msra.mxu0 0.0
  %377 = vmatprep.subr.mxu0 0.0
  %378 = vmatpush1.msra.mxu0 0.0
  %379 = vmatprep.subr.mxu0 0.0
  %380 = vmatpush1.msra.mxu0 0.0
  %381 = vmatprep.subr.mxu0 0.0
  %382 = vmatpush1.msra.mxu0 0.0
  %383 = vmatprep.mubr.f32.mxu0 0.0
  %384 = vmatmul.mubr.f32.gmra.mrb[0].mxu0 %v237
  %v385 = vpop.f32.mrb[0].mxu0
  %v386 = vadd.f32 %v167, %v385
  %v387 = vpop.f32.mrb[0].mxu0
  %v388 = vadd.f32 %v171, %v387
  %389 = vmatprep.mubr.f32.mxu0 0.0
  %390 = vmatmul.mubr.f32.gmra.mrb[0].mxu0 %v240
  %v391 = vpop.f32.mrb[0].mxu0
  %v392 = vadd.f32 %v167, %v391
  %v393 = vpop.f32.mrb[0].mxu0
  %v394 = vadd.f32 %v171, %v393
  %395 = vdwg.mxu0
  %396 = vmatprep.subr.mxu0 %v93
  %397 = vmatpush1.msra.mxu0 %v92
  %398 = vmatprep.subr.mxu0 %v109
  %399 = vmatpush1.msra.mxu0 %v108
  %400 = vmatprep.subr.mxu0 %v125
  %401 = vmatpush1.msra.mxu0 %v124
  %402 = vmatprep.subr.mxu0 %v141
  %403 = vmatpush1.msra.mxu0 %v140
  %404 = vmatprep.subr.mxu0 0.0
  %405 = vmatpush1.msra.mxu0 0.0
  %406 = vmatprep.subr.mxu0 0.0
  %407 = vmatpush1.msra.mxu0 0.0
  %408 = vmatprep.subr.mxu0 0.0
  %409 = vmatpush1.msra.mxu0 0.0
  %410 = vmatprep.subr.mxu0 0.0
  %411 = vmatpush1.msra.mxu0 0.0
  %412 = vmatprep.subr.mxu0 0.0
  %413 = vmatpush1.msra.mxu0 0.0
  %414 = vmatprep.subr.mxu0 0.0
  %415 = vmatpush1.msra.mxu0 0.0
  %416 = vmatprep.subr.mxu0 0.0
  %417 = vmatpush1.msra.mxu0 0.0
  %418 = vmatprep.subr.mxu0 0.0
  %419 = vmatpush1.msra.mxu0 0.0
  %420 = vmatprep.subr.mxu0 0.0
  %421 = vmatpush1.msra.mxu0 0.0
  %422 = vmatprep.subr.mxu0 0.0
  %423 = vmatpush1.msra.mxu0 0.0
  %424 = vmatprep.subr.mxu0 0.0
  %425 = vmatpush1.msra.mxu0 0.0
  %426 = vmatprep.subr.mxu0 0.0
  %427 = vmatpush1.msra.mxu0 0.0
  %428 = vmatprep.subr.mxu0 0.0
  %429 = vmatpush1.msra.mxu0 0.0
  %430 = vmatprep.subr.mxu0 0.0
  %431 = vmatpush1.msra.mxu0 0.0
  %432 = vmatprep.subr.mxu0 0.0
  %433 = vmatpush1.msra.mxu0 0.0
  %434 = vmatprep.subr.mxu0 0.0
  %435 = vmatpush1.msra.mxu0 0.0
  %436 = vmatprep.subr.mxu0 0.0
  %437 = vmatpush1.msra.mxu0 0.0
  %438 = vmatprep.subr.mxu0 0.0
  %439 = vmatpush1.msra.mxu0 0.0
  %440 = vmatprep.subr.mxu0 0.0
  %441 = vmatpush1.msra.mxu0 0.0
  %442 = vmatprep.subr.mxu0 0.0
  %443 = vmatpush1.msra.mxu0 0.0
  %444 = vmatprep.subr.mxu0 0.0
  %445 = vmatpush1.msra.mxu0 0.0
  %446 = vmatprep.subr.mxu0 0.0
  %447 = vmatpush1.msra.mxu0 0.0
  %448 = vmatprep.subr.mxu0 0.0
  %449 = vmatpush1.msra.mxu0 0.0
  %450 = vmatprep.subr.mxu0 0.0
  %451 = vmatpush1.msra.mxu0 0.0
  %452 = vmatprep.subr.mxu0 0.0
  %453 = vmatpush1.msra.mxu0 0.0
  %454 = vmatprep.subr.mxu0 0.0
  %455 = vmatpush1.msra.mxu0 0.0
  %456 = vmatprep.subr.mxu0 0.0
  %457 = vmatpush1.msra.mxu0 0.0
  %458 = vmatprep.subr.mxu0 0.0
  %459 = vmatpush1.msra.mxu0 0.0
  %460 = vmatprep.mubr.f32.mxu0 0.0
  %461 = vmatmul.mubr.f32.gmra.mrb[0].mxu0 %v237
  %v462 = vpop.f32.mrb[0].mxu0
  %v463 = vadd.f32 %v175, %v462
  %v464 = vpop.f32.mrb[0].mxu0
  %v465 = vadd.f32 %v179, %v464
  %466 = vmatprep.mubr.f32.mxu0 0.0
  %467 = vmatmul.mubr.f32.gmra.mrb[0].mxu0 %v240
  %v468 = vpop.f32.mrb[0].mxu0
  %v469 = vadd.f32 %v175, %v468
  %v470 = vpop.f32.mrb[0].mxu0
  %v471 = vadd.f32 %v179, %v470
  %472 = vdwg.mxu0
  %473 = vmatprep.subr.mxu0 %v95
  %474 = vmatpush1.msra.mxu0 %v94
  %475 = vmatprep.subr.mxu0 %v111
  %476 = vmatpush1.msra.mxu0 %v110
  %477 = vmatprep.subr.mxu0 %v127
  %478 = vmatpush1.msra.mxu0 %v126
  %479 = vmatprep.subr.mxu0 %v143
  %480 = vmatpush1.msra.mxu0 %v142
  %481 = vmatprep.subr.mxu0 0.0
  %482 = vmatpush1.msra.mxu0 0.0
  %483 = vmatprep.subr.mxu0 0.0
  %484 = vmatpush1.msra.mxu0 0.0
  %485 = vmatprep.subr.mxu0 0.0
  %486 = vmatpush1.msra.mxu0 0.0
  %487 = vmatprep.subr.mxu0 0.0
  %488 = vmatpush1.msra.mxu0 0.0
  %489 = vmatprep.subr.mxu0 0.0
  %490 = vmatpush1.msra.mxu0 0.0
  %491 = vmatprep.subr.mxu0 0.0
  %492 = vmatpush1.msra.mxu0 0.0
  %493 = vmatprep.subr.mxu0 0.0
  %494 = vmatpush1.msra.mxu0 0.0
  %495 = vmatprep.subr.mxu0 0.0
  %496 = vmatpush1.msra.mxu0 0.0
  %497 = vmatprep.subr.mxu0 0.0
  %498 = vmatpush1.msra.mxu0 0.0
  %499 = vmatprep.subr.mxu0 0.0
  %500 = vmatpush1.msra.mxu0 0.0
  %501 = vmatprep.subr.mxu0 0.0
  %502 = vmatpush1.msra.mxu0 0.0
  %503 = vmatprep.subr.mxu0 0.0
  %504 = vmatpush1.msra.mxu0 0.0
  %505 = vmatprep.subr.mxu0 0.0
  %506 = vmatpush1.msra.mxu0 0.0
  %507 = vmatprep.subr.mxu0 0.0
  %508 = vmatpush1.msra.mxu0 0.0
  %509 = vmatprep.subr.mxu0 0.0
  %510 = vmatpush1.msra.mxu0 0.0
  %511 = vmatprep.subr.mxu0 0.0
  %512 = vmatpush1.msra.mxu0 0.0
  %513 = vmatprep.subr.mxu0 0.0
  %514 = vmatpush1.msra.mxu0 0.0
  %515 = vmatprep.subr.mxu0 0.0
  %516 = vmatpush1.msra.mxu0 0.0
  %517 = vmatprep.subr.mxu0 0.0
  %518 = vmatpush1.msra.mxu0 0.0
  %519 = vmatprep.subr.mxu0 0.0
  %520 = vmatpush1.msra.mxu0 0.0
  %521 = vmatprep.subr.mxu0 0.0
  %522 = vmatpush1.msra.mxu0 0.0
  %523 = vmatprep.subr.mxu0 0.0
  %524 = vmatpush1.msra.mxu0 0.0
  %525 = vmatprep.subr.mxu0 0.0
  %526 = vmatpush1.msra.mxu0 0.0
  %527 = vmatprep.subr.mxu0 0.0
  %528 = vmatpush1.msra.mxu0 0.0
  %529 = vmatprep.subr.mxu0 0.0
  %530 = vmatpush1.msra.mxu0 0.0
  %531 = vmatprep.subr.mxu0 0.0
  %532 = vmatpush1.msra.mxu0 0.0
  %533 = vmatprep.subr.mxu0 0.0
  %534 = vmatpush1.msra.mxu0 0.0
  %535 = vmatprep.subr.mxu0 0.0
  %536 = vmatpush1.msra.mxu0 0.0
  %537 = vmatprep.mubr.f32.mxu0 0.0
  %538 = vmatmul.mubr.f32.gmra.mrb[0].mxu0 %v237
  %v539 = vpop.f32.mrb[0].mxu0
  %v540 = vadd.f32 %v183, %v539
  %v541 = vpop.f32.mrb[0].mxu0
  %v542 = vadd.f32 %v187, %v541
  %543 = vmatprep.mubr.f32.mxu0 0.0
  %544 = vmatmul.mubr.f32.gmra.mrb[0].mxu0 %v240
  %v545 = vpop.f32.mrb[0].mxu0
  %v546 = vadd.f32 %v183, %v545
  %v547 = vpop.f32.mrb[0].mxu0
  %v548 = vadd.f32 %v187, %v547
  %549 = vdwg.mxu0
  %550 = vmatprep.subr.mxu0 %v97
  %551 = vmatpush1.msra.mxu0 %v96
  %552 = vmatprep.subr.mxu0 %v113
  %553 = vmatpush1.msra.mxu0 %v112
  %554 = vmatprep.subr.mxu0 %v129
  %555 = vmatpush1.msra.mxu0 %v128
  %556 = vmatprep.subr.mxu0 %v145
  %557 = vmatpush1.msra.mxu0 %v144
  %558 = vmatprep.subr.mxu0 0.0
  %559 = vmatpush1.msra.mxu0 0.0
  %560 = vmatprep.subr.mxu0 0.0
  %561 = vmatpush1.msra.mxu0 0.0
  %562 = vmatprep.subr.mxu0 0.0
  %563 = vmatpush1.msra.mxu0 0.0
  %564 = vmatprep.subr.mxu0 0.0
  %565 = vmatpush1.msra.mxu0 0.0
  %566 = vmatprep.subr.mxu0 0.0
  %567 = vmatpush1.msra.mxu0 0.0
  %568 = vmatprep.subr.mxu0 0.0
  %569 = vmatpush1.msra.mxu0 0.0
  %570 = vmatprep.subr.mxu0 0.0
  %571 = vmatpush1.msra.mxu0 0.0
  %572 = vmatprep.subr.mxu0 0.0
  %573 = vmatpush1.msra.mxu0 0.0
  %574 = vmatprep.subr.mxu0 0.0
  %575 = vmatpush1.msra.mxu0 0.0
  %576 = vmatprep.subr.mxu0 0.0
  %577 = vmatpush1.msra.mxu0 0.0
  %578 = vmatprep.subr.mxu0 0.0
  %579 = vmatpush1.msra.mxu0 0.0
  %580 = vmatprep.subr.mxu0 0.0
  %581 = vmatpush1.msra.mxu0 0.0
  %582 = vmatprep.subr.mxu0 0.0
  %583 = vmatpush1.msra.mxu0 0.0
  %584 = vmatprep.subr.mxu0 0.0
  %585 = vmatpush1.msra.mxu0 0.0
  %586 = vmatprep.subr.mxu0 0.0
  %587 = vmatpush1.msra.mxu0 0.0
  %588 = vmatprep.subr.mxu0 0.0
  %589 = vmatpush1.msra.mxu0 0.0
  %590 = vmatprep.subr.mxu0 0.0
  %591 = vmatpush1.msra.mxu0 0.0
  %592 = vmatprep.subr.mxu0 0.0
  %593 = vmatpush1.msra.mxu0 0.0
  %594 = vmatprep.subr.mxu0 0.0
  %595 = vmatpush1.msra.mxu0 0.0
  %596 = vmatprep.subr.mxu0 0.0
  %597 = vmatpush1.msra.mxu0 0.0
  %598 = vmatprep.subr.mxu0 0.0
  %599 = vmatpush1.msra.mxu0 0.0
  %600 = vmatprep.subr.mxu0 0.0
  %601 = vmatpush1.msra.mxu0 0.0
  %602 = vmatprep.subr.mxu0 0.0
  %603 = vmatpush1.msra.mxu0 0.0
  %604 = vmatprep.subr.mxu0 0.0
  %605 = vmatpush1.msra.mxu0 0.0
  %606 = vmatprep.subr.mxu0 0.0
  %607 = vmatpush1.msra.mxu0 0.0
  %608 = vmatprep.subr.mxu0 0.0
  %609 = vmatpush1.msra.mxu0 0.0
  %610 = vmatprep.subr.mxu0 0.0
  %611 = vmatpush1.msra.mxu0 0.0
  %612 = vmatprep.subr.mxu0 0.0
  %613 = vmatpush1.msra.mxu0 0.0
  %614 = vmatprep.mubr.f32.mxu0 0.0
  %615 = vmatmul.mubr.f32.gmra.mrb[0].mxu0 %v237
  %v616 = vpop.f32.mrb[0].mxu0
  %v617 = vadd.f32 %v191, %v616
  %v618 = vpop.f32.mrb[0].mxu0
  %v619 = vadd.f32 %v195, %v618
  %620 = vmatprep.mubr.f32.mxu0 0.0
  %621 = vmatmul.mubr.f32.gmra.mrb[0].mxu0 %v240
  %v622 = vpop.f32.mrb[0].mxu0
  %v623 = vadd.f32 %v191, %v622
  %v624 = vpop.f32.mrb[0].mxu0
  %v625 = vadd.f32 %v195, %v624
  %626 = vdwg.mxu0
  %627 = vmatprep.subr.mxu0 %v99
  %628 = vmatpush1.msra.mxu0 %v98
  %629 = vmatprep.subr.mxu0 %v115
  %630 = vmatpush1.msra.mxu0 %v114
  %631 = vmatprep.subr.mxu0 %v131
  %632 = vmatpush1.msra.mxu0 %v130
  %633 = vmatprep.subr.mxu0 %v147
  %634 = vmatpush1.msra.mxu0 %v146
  %635 = vmatprep.subr.mxu0 0.0
  %636 = vmatpush1.msra.mxu0 0.0
  %637 = vmatprep.subr.mxu0 0.0
  %638 = vmatpush1.msra.mxu0 0.0
  %639 = vmatprep.subr.mxu0 0.0
  %640 = vmatpush1.msra.mxu0 0.0
  %641 = vmatprep.subr.mxu0 0.0
  %642 = vmatpush1.msra.mxu0 0.0
  %643 = vmatprep.subr.mxu0 0.0
  %644 = vmatpush1.msra.mxu0 0.0
  %645 = vmatprep.subr.mxu0 0.0
  %646 = vmatpush1.msra.mxu0 0.0
  %647 = vmatprep.subr.mxu0 0.0
  %648 = vmatpush1.msra.mxu0 0.0
  %649 = vmatprep.subr.mxu0 0.0
  %650 = vmatpush1.msra.mxu0 0.0
  %651 = vmatprep.subr.mxu0 0.0
  %652 = vmatpush1.msra.mxu0 0.0
  %653 = vmatprep.subr.mxu0 0.0
  %654 = vmatpush1.msra.mxu0 0.0
  %655 = vmatprep.subr.mxu0 0.0
  %656 = vmatpush1.msra.mxu0 0.0
  %657 = vmatprep.subr.mxu0 0.0
  %658 = vmatpush1.msra.mxu0 0.0
  %659 = vmatprep.subr.mxu0 0.0
  %660 = vmatpush1.msra.mxu0 0.0
  %661 = vmatprep.subr.mxu0 0.0
  %662 = vmatpush1.msra.mxu0 0.0
  %663 = vmatprep.subr.mxu0 0.0
  %664 = vmatpush1.msra.mxu0 0.0
  %665 = vmatprep.subr.mxu0 0.0
  %666 = vmatpush1.msra.mxu0 0.0
  %667 = vmatprep.subr.mxu0 0.0
  %668 = vmatpush1.msra.mxu0 0.0
  %669 = vmatprep.subr.mxu0 0.0
  %670 = vmatpush1.msra.mxu0 0.0
  %671 = vmatprep.subr.mxu0 0.0
  %672 = vmatpush1.msra.mxu0 0.0
  %673 = vmatprep.subr.mxu0 0.0
  %674 = vmatpush1.msra.mxu0 0.0
  %675 = vmatprep.subr.mxu0 0.0
  %676 = vmatpush1.msra.mxu0 0.0
  %677 = vmatprep.subr.mxu0 0.0
  %678 = vmatpush1.msra.mxu0 0.0
  %679 = vmatprep.subr.mxu0 0.0
  %680 = vmatpush1.msra.mxu0 0.0
  %681 = vmatprep.subr.mxu0 0.0
  %682 = vmatpush1.msra.mxu0 0.0
  %683 = vmatprep.subr.mxu0 0.0
  %684 = vmatpush1.msra.mxu0 0.0
  %685 = vmatprep.subr.mxu0 0.0
  %686 = vmatpush1.msra.mxu0 0.0
  %687 = vmatprep.subr.mxu0 0.0
  %688 = vmatpush1.msra.mxu0 0.0
  %689 = vmatprep.subr.mxu0 0.0
  %690 = vmatpush1.msra.mxu0 0.0
  %691 = vmatprep.mubr.f32.mxu0 0.0
  %692 = vmatmul.mubr.f32.gmra.mrb[0].mxu0 %v237
  %v693 = vpop.f32.mrb[0].mxu0
  %v694 = vadd.f32 %v199, %v693
  %v695 = vpop.f32.mrb[0].mxu0
  %v696 = vadd.f32 %v203, %v695
  %697 = vmatprep.mubr.f32.mxu0 0.0
  %698 = vmatmul.mubr.f32.gmra.mrb[0].mxu0 %v240
  %v699 = vpop.f32.mrb[0].mxu0
  %v700 = vadd.f32 %v199, %v699
  %v701 = vpop.f32.mrb[0].mxu0
  %v702 = vadd.f32 %v203, %v701
  %703 = vdwg.mxu0
  %704 = vmatprep.subr.mxu0 %v101
  %705 = vmatpush1.msra.mxu0 %v100
  %706 = vmatprep.subr.mxu0 %v117
  %707 = vmatpush1.msra.mxu0 %v116
  %708 = vmatprep.subr.mxu0 %v133
  %709 = vmatpush1.msra.mxu0 %v132
  %710 = vmatprep.subr.mxu0 %v149
  %711 = vmatpush1.msra.mxu0 %v148
  %712 = vmatprep.subr.mxu0 0.0
  %713 = vmatpush1.msra.mxu0 0.0
  %714 = vmatprep.subr.mxu0 0.0
  %715 = vmatpush1.msra.mxu0 0.0
  %716 = vmatprep.subr.mxu0 0.0
  %717 = vmatpush1.msra.mxu0 0.0
  %718 = vmatprep.subr.mxu0 0.0
  %719 = vmatpush1.msra.mxu0 0.0
  %720 = vmatprep.subr.mxu0 0.0
  %721 = vmatpush1.msra.mxu0 0.0
  %722 = vmatprep.subr.mxu0 0.0
  %723 = vmatpush1.msra.mxu0 0.0
  %724 = vmatprep.subr.mxu0 0.0
  %725 = vmatpush1.msra.mxu0 0.0
  %726 = vmatprep.subr.mxu0 0.0
  %727 = vmatpush1.msra.mxu0 0.0
  %728 = vmatprep.subr.mxu0 0.0
  %729 = vmatpush1.msra.mxu0 0.0
  %730 = vmatprep.subr.mxu0 0.0
  %731 = vmatpush1.msra.mxu0 0.0
  %732 = vmatprep.subr.mxu0 0.0
  %733 = vmatpush1.msra.mxu0 0.0
  %734 = vmatprep.subr.mxu0 0.0
  %735 = vmatpush1.msra.mxu0 0.0
  %736 = vmatprep.subr.mxu0 0.0
  %737 = vmatpush1.msra.mxu0 0.0
  %738 = vmatprep.subr.mxu0 0.0
  %739 = vmatpush1.msra.mxu0 0.0
  %740 = vmatprep.subr.mxu0 0.0
  %741 = vmatpush1.msra.mxu0 0.0
  %742 = vmatprep.subr.mxu0 0.0
  %743 = vmatpush1.msra.mxu0 0.0
  %744 = vmatprep.subr.mxu0 0.0
  %745 = vmatpush1.msra.mxu0 0.0
  %746 = vmatprep.subr.mxu0 0.0
  %747 = vmatpush1.msra.mxu0 0.0
  %748 = vmatprep.subr.mxu0 0.0
  %749 = vmatpush1.msra.mxu0 0.0
  %750 = vmatprep.subr.mxu0 0.0
  %751 = vmatpush1.msra.mxu0 0.0
  %752 = vmatprep.subr.mxu0 0.0
  %753 = vmatpush1.msra.mxu0 0.0
  %754 = vmatprep.subr.mxu0 0.0
  %755 = vmatpush1.msra.mxu0 0.0
  %756 = vmatprep.subr.mxu0 0.0
  %757 = vmatpush1.msra.mxu0 0.0
  %758 = vmatprep.subr.mxu0 0.0
  %759 = vmatpush1.msra.mxu0 0.0
  %760 = vmatprep.subr.mxu0 0.0
  %761 = vmatpush1.msra.mxu0 0.0
  %762 = vmatprep.subr.mxu0 0.0
  %763 = vmatpush1.msra.mxu0 0.0
  %764 = vmatprep.subr.mxu0 0.0
  %765 = vmatpush1.msra.mxu0 0.0
  %766 = vmatprep.subr.mxu0 0.0
  %767 = vmatpush1.msra.mxu0 0.0
  %768 = vmatprep.mubr.f32.mxu0 0.0
  %769 = vmatmul.mubr.f32.gmra.mrb[0].mxu0 %v237
  %v770 = vpop.f32.mrb[0].mxu0
  %v771 = vadd.f32 %v207, %v770
  %v772 = vpop.f32.mrb[0].mxu0
  %v773 = vadd.f32 %v211, %v772
  %774 = vmatprep.mubr.f32.mxu0 0.0
  %775 = vmatmul.mubr.f32.gmra.mrb[0].mxu0 %v240
  %v776 = vpop.f32.mrb[0].mxu0
  %v777 = vadd.f32 %v207, %v776
  %v778 = vpop.f32.mrb[0].mxu0
  %v779 = vadd.f32 %v211, %v778
  %780 = vdwg.mxu0
  %781 = vmatprep.subr.mxu0 %v103
  %782 = vmatpush1.msra.mxu0 %v102
  %783 = vmatprep.subr.mxu0 %v119
  %784 = vmatpush1.msra.mxu0 %v118
  %785 = vmatprep.subr.mxu0 %v135
  %786 = vmatpush1.msra.mxu0 %v134
  %787 = vmatprep.subr.mxu0 %v151
  %788 = vmatpush1.msra.mxu0 %v150
  %789 = vmatprep.subr.mxu0 0.0
  %790 = vmatpush1.msra.mxu0 0.0
  %791 = vmatprep.subr.mxu0 0.0
  %792 = vmatpush1.msra.mxu0 0.0
  %793 = vmatprep.subr.mxu0 0.0
  %794 = vmatpush1.msra.mxu0 0.0
  %795 = vmatprep.subr.mxu0 0.0
  %796 = vmatpush1.msra.mxu0 0.0
  %797 = vmatprep.subr.mxu0 0.0
  %798 = vmatpush1.msra.mxu0 0.0
  %799 = vmatprep.subr.mxu0 0.0
  %800 = vmatpush1.msra.mxu0 0.0
  %801 = vmatprep.subr.mxu0 0.0
  %802 = vmatpush1.msra.mxu0 0.0
  %803 = vmatprep.subr.mxu0 0.0
  %804 = vmatpush1.msra.mxu0 0.0
  %805 = vmatprep.subr.mxu0 0.0
  %806 = vmatpush1.msra.mxu0 0.0
  %807 = vmatprep.subr.mxu0 0.0
  %808 = vmatpush1.msra.mxu0 0.0
  %809 = vmatprep.subr.mxu0 0.0
  %810 = vmatpush1.msra.mxu0 0.0
  %811 = vmatprep.subr.mxu0 0.0
  %812 = vmatpush1.msra.mxu0 0.0
  %813 = vmatprep.subr.mxu0 0.0
  %814 = vmatpush1.msra.mxu0 0.0
  %815 = vmatprep.subr.mxu0 0.0
  %816 = vmatpush1.msra.mxu0 0.0
  %817 = vmatprep.subr.mxu0 0.0
  %818 = vmatpush1.msra.mxu0 0.0
  %819 = vmatprep.subr.mxu0 0.0
  %820 = vmatpush1.msra.mxu0 0.0
  %821 = vmatprep.subr.mxu0 0.0
  %822 = vmatpush1.msra.mxu0 0.0
  %823 = vmatprep.subr.mxu0 0.0
  %824 = vmatpush1.msra.mxu0 0.0
  %825 = vmatprep.subr.mxu0 0.0
  %826 = vmatpush1.msra.mxu0 0.0
  %827 = vmatprep.subr.mxu0 0.0
  %828 = vmatpush1.msra.mxu0 0.0
  %829 = vmatprep.subr.mxu0 0.0
  %830 = vmatpush1.msra.mxu0 0.0
  %831 = vmatprep.subr.mxu0 0.0
  %832 = vmatpush1.msra.mxu0 0.0
  %833 = vmatprep.subr.mxu0 0.0
  %834 = vmatpush1.msra.mxu0 0.0
  %835 = vmatprep.subr.mxu0 0.0
  %836 = vmatpush1.msra.mxu0 0.0
  %837 = vmatprep.subr.mxu0 0.0
  %838 = vmatpush1.msra.mxu0 0.0
  %839 = vmatprep.subr.mxu0 0.0
  %840 = vmatpush1.msra.mxu0 0.0
  %841 = vmatprep.subr.mxu0 0.0
  %842 = vmatpush1.msra.mxu0 0.0
  %843 = vmatprep.subr.mxu0 0.0
  %844 = vmatpush1.msra.mxu0 0.0
  %845 = vmatprep.mubr.f32.mxu0 0.0
  %846 = vmatmul.mubr.f32.gmra.mrb[0].mxu0 %v237
  %v847 = vpop.f32.mrb[0].mxu0
  %v848 = vadd.f32 %v215, %v847
  %v849 = vpop.f32.mrb[0].mxu0
  %v850 = vadd.f32 %v219, %v849
  %851 = vmatprep.mubr.f32.mxu0 0.0
  %852 = vmatmul.mubr.f32.gmra.mrb[0].mxu0 %v240
  %v853 = vpop.f32.mrb[0].mxu0
  %v854 = vadd.f32 %v215, %v853
  %v855 = vpop.f32.mrb[0].mxu0
  %v856 = vadd.f32 %v219, %v855
  %857 = vdwg.mxu0
  %v858 = vmax.f32 %v309, 0.0
  %v859 = vmax.f32 %v311, 0.0
  %v860 = vmax.f32 %v386, 0.0
  %v861 = vmax.f32 %v388, 0.0
  %v862 = vmax.f32 %v463, 0.0
  %v863 = vmax.f32 %v465, 0.0
  %v864 = vmax.f32 %v540, 0.0
  %v865 = vmax.f32 %v542, 0.0
  %v866 = vmax.f32 %v617, 0.0
  %v867 = vmax.f32 %v619, 0.0
  %v868 = vmax.f32 %v694, 0.0
  %v869 = vmax.f32 %v696, 0.0
  %v870 = vmax.f32 %v771, 0.0
  %v871 = vmax.f32 %v773, 0.0
  %v872 = vmax.f32 %v848, 0.0
  %v873 = vmax.f32 %v850, 0.0
  %v874 = vmax.f32 %v315, 0.0
  %v875 = vmax.f32 %v317, 0.0
  %v876 = vmax.f32 %v392, 0.0
  %v877 = vmax.f32 %v394, 0.0
  %v878 = vmax.f32 %v469, 0.0
  %v879 = vmax.f32 %v471, 0.0
  %v880 = vmax.f32 %v546, 0.0
  %v881 = vmax.f32 %v548, 0.0
  %v882 = vmax.f32 %v623, 0.0
  %v883 = vmax.f32 %v625, 0.0
  %v884 = vmax.f32 %v700, 0.0
  %v885 = vmax.f32 %v702, 0.0
  %v886 = vmax.f32 %v777, 0.0
  %v887 = vmax.f32 %v779, 0.0
  %v888 = vmax.f32 %v854, 0.0
  %v889 = vmax.f32 %v856, 0.0
  %v890 = vld [vmem:[%s5] sm:$0xff]
  %v891 = vld [vmem:[%s5 + $0x8] sm:$0xff]
  %v892 = vld [vmem:[%s5 + $0x10] sm:$0xff]
  %v893 = vld [vmem:[%s5 + $0x18] sm:$0xff]
  %v894 = vld [vmem:[%s5 + $0x20] sm:$0xff]
  %v895 = vld [vmem:[%s5 + $0x28] sm:$0xff]
  %v896 = vld [vmem:[%s5 + $0x30] sm:$0xff]
  %v897 = vld [vmem:[%s5 + $0x38] sm:$0xff]
  %v898 = vld [vmem:[%s5 + $0x40] sm:$0xff]
  %v899 = vld [vmem:[%s5 + $0x48] sm:$0xff]
  %v900 = vld [vmem:[%s5 + $0x50] sm:$0xff]
  %v901 = vld [vmem:[%s5 + $0x58] sm:$0xff]
  %v902 = vld [vmem:[%s5 + $0x60] sm:$0xff]
  %v903 = vld [vmem:[%s5 + $0x68] sm:$0xff]
  %v904 = vld [vmem:[%s5 + $0x70] sm:$0xff]
  %v905 = vld [vmem:[%s5 + $0x78] sm:$0xff]
  %v906 = vld [vmem:[%s5 + $0x80] sm:$0xff]
  %v907 = vld [vmem:[%s5 + $0x88] sm:$0xff]
  %v908 = vld [vmem:[%s5 + $0x90] sm:$0xff]
  %v909 = vld [vmem:[%s5 + $0x98] sm:$0xff]
  %v910 = vld [vmem:[%s5 + $0xa0] sm:$0xff]
  %v911 = vld [vmem:[%s5 + $0xa8] sm:$0xff]
  %v912 = vld [vmem:[%s5 + $0xb0] sm:$0xff]
  %v913 = vld [vmem:[%s5 + $0xb8] sm:$0xff]
  %v914 = vld [vmem:[%s5 + $0xc0] sm:$0xff]
  %v915 = vld [vmem:[%s5 + $0xc8] sm:$0xff]
  %v916 = vld [vmem:[%s5 + $0xd0] sm:$0xff]
  %v917 = vld [vmem:[%s5 + $0xd8] sm:$0xff]
  %v918 = vld [vmem:[%s5 + $0xe0] sm:$0xff]
  %v919 = vld [vmem:[%s5 + $0xe8] sm:$0xff]
  %v920 = vld [vmem:[%s5 + $0xf0] sm:$0xff]
  %v921 = vld [vmem:[%s5 + $0xf8] sm:$0xff]
  %v922 = vld [vmem:[%s5 + $0x100] sm:$0xff]
  %v923 = vld [vmem:[%s5 + $0x108] sm:$0xff]
  %v924 = vld [vmem:[%s5 + $0x110] sm:$0xff]
  %v925 = vld [vmem:[%s5 + $0x118] sm:$0xff]
  %v926 = vld [vmem:[%s5 + $0x120] sm:$0xff]
  %v927 = vld [vmem:[%s5 + $0x128] sm:$0xff]
  %v928 = vld [vmem:[%s5 + $0x130] sm:$0xff]
  %v929 = vld [vmem:[%s5 + $0x138] sm:$0xff]
  %v930 = vld [vmem:[%s5 + $0x140] sm:$0xff]
  %v931 = vld [vmem:[%s5 + $0x148] sm:$0xff]
  %v932 = vld [vmem:[%s5 + $0x150] sm:$0xff]
  %v933 = vld [vmem:[%s5 + $0x158] sm:$0xff]
  %v934 = vld [vmem:[%s5 + $0x160] sm:$0xff]
  %v935 = vld [vmem:[%s5 + $0x168] sm:$0xff]
  %v936 = vld [vmem:[%s5 + $0x170] sm:$0xff]
  %v937 = vld [vmem:[%s5 + $0x178] sm:$0xff]
  %v938 = vld [vmem:[%s5 + $0x180] sm:$0xff]
  %v939 = vld [vmem:[%s5 + $0x188] sm:$0xff]
  %v940 = vld [vmem:[%s5 + $0x190] sm:$0xff]
  %v941 = vld [vmem:[%s5 + $0x198] sm:$0xff]
  %v942 = vld [vmem:[%s5 + $0x1a0] sm:$0xff]
  %v943 = vld [vmem:[%s5 + $0x1a8] sm:$0xff]
  %v944 = vld [vmem:[%s5 + $0x1b0] sm:$0xff]
  %v945 = vld [vmem:[%s5 + $0x1b8] sm:$0xff]
  %v946 = vld [vmem:[%s5 + $0x1c0] sm:$0xff]
  %v947 = vld [vmem:[%s5 + $0x1c8] sm:$0xff]
  %v948 = vld [vmem:[%s5 + $0x1d0] sm:$0xff]
  %v949 = vld [vmem:[%s5 + $0x1d8] sm:$0xff]
  %v950 = vld [vmem:[%s5 + $0x1e0] sm:$0xff]
  %v951 = vld [vmem:[%s5 + $0x1e8] sm:$0xff]
  %v952 = vld [vmem:[%s5 + $0x1f0] sm:$0xff]
  %v953 = vld [vmem:[%s5 + $0x1f8] sm:$0xff]
  %v954 = vld [vmem:[%s5 + $0x200] sm:$0xff]
  %v955 = vld [vmem:[%s5 + $0x208] sm:$0xff]
  %v956 = vld [vmem:[%s5 + $0x210] sm:$0xff]
  %v957 = vld [vmem:[%s5 + $0x218] sm:$0xff]
  %v958 = vld [vmem:[%s5 + $0x220] sm:$0xff]
  %v959 = vld [vmem:[%s5 + $0x228] sm:$0xff]
  %v960 = vld [vmem:[%s5 + $0x230] sm:$0xff]
  %v961 = vld [vmem:[%s5 + $0x238] sm:$0xff]
  %v962 = vld [vmem:[%s5 + $0x240] sm:$0xff]
  %v963 = vld [vmem:[%s5 + $0x248] sm:$0xff]
  %v964 = vld [vmem:[%s5 + $0x250] sm:$0xff]
  %v965 = vld [vmem:[%s5 + $0x258] sm:$0xff]
  %v966 = vld [vmem:[%s5 + $0x260] sm:$0xff]
  %v967 = vld [vmem:[%s5 + $0x268] sm:$0xff]
  %v968 = vld [vmem:[%s5 + $0x270] sm:$0xff]
  %v969 = vld [vmem:[%s5 + $0x278] sm:$0xff]
  %v970 = vld [vmem:[%s5 + $0x280] sm:$0xff]
  %v971 = vld [vmem:[%s5 + $0x288] sm:$0xff]
  %v972 = vld [vmem:[%s5 + $0x290] sm:$0xff]
  %v973 = vld [vmem:[%s5 + $0x298] sm:$0xff]
  %v974 = vld [vmem:[%s5 + $0x2a0] sm:$0xff]
  %v975 = vld [vmem:[%s5 + $0x2a8] sm:$0xff]
  %v976 = vld [vmem:[%s5 + $0x2b0] sm:$0xff]
  %v977 = vld [vmem:[%s5 + $0x2b8] sm:$0xff]
  %v978 = vld [vmem:[%s5 + $0x2c0] sm:$0xff]
  %v979 = vld [vmem:[%s5 + $0x2c8] sm:$0xff]
  %v980 = vld [vmem:[%s5 + $0x2d0] sm:$0xff]
  %v981 = vld [vmem:[%s5 + $0x2d8] sm:$0xff]
  %v982 = vld [vmem:[%s5 + $0x2e0] sm:$0xff]
  %v983 = vld [vmem:[%s5 + $0x2e8] sm:$0xff]
  %v984 = vld [vmem:[%s5 + $0x2f0] sm:$0xff]
  %v985 = vld [vmem:[%s5 + $0x2f8] sm:$0xff]
  %v986 = vld [vmem:[%s5 + $0x300] sm:$0xff]
  %v987 = vld [vmem:[%s5 + $0x308] sm:$0xff]
  %v988 = vld [vmem:[%s5 + $0x310] sm:$0xff]
  %v989 = vld [vmem:[%s5 + $0x318] sm:$0xff]
  %v990 = vld [vmem:[%s5 + $0x320] sm:$0xff]
  %v991 = vld [vmem:[%s5 + $0x328] sm:$0xff]
  %v992 = vld [vmem:[%s5 + $0x330] sm:$0xff]
  %v993 = vld [vmem:[%s5 + $0x338] sm:$0xff]
  %v994 = vld [vmem:[%s5 + $0x340] sm:$0xff]
  %v995 = vld [vmem:[%s5 + $0x348] sm:$0xff]
  %v996 = vld [vmem:[%s5 + $0x350] sm:$0xff]
  %v997 = vld [vmem:[%s5 + $0x358] sm:$0xff]
  %v998 = vld [vmem:[%s5 + $0x360] sm:$0xff]
  %v999 = vld [vmem:[%s5 + $0x368] sm:$0xff]
  %v1000 = vld [vmem:[%s5 + $0x370] sm:$0xff]
  %v1001 = vld [vmem:[%s5 + $0x378] sm:$0xff]
  %v1002 = vld [vmem:[%s5 + $0x380] sm:$0xff]
  %v1003 = vld [vmem:[%s5 + $0x388] sm:$0xff]
  %v1004 = vld [vmem:[%s5 + $0x390] sm:$0xff]
  %v1005 = vld [vmem:[%s5 + $0x398] sm:$0xff]
  %v1006 = vld [vmem:[%s5 + $0x3a0] sm:$0xff]
  %v1007 = vld [vmem:[%s5 + $0x3a8] sm:$0xff]
  %v1008 = vld [vmem:[%s5 + $0x3b0] sm:$0xff]
  %v1009 = vld [vmem:[%s5 + $0x3b8] sm:$0xff]
  %v1010 = vld [vmem:[%s5 + $0x3c0] sm:$0xff]
  %v1011 = vld [vmem:[%s5 + $0x3c8] sm:$0xff]
  %v1012 = vld [vmem:[%s5 + $0x3d0] sm:$0xff]
  %v1013 = vld [vmem:[%s5 + $0x3d8] sm:$0xff]
  %v1014 = vld [vmem:[%s5 + $0x3e0] sm:$0xff]
  %v1015 = vld [vmem:[%s5 + $0x3e8] sm:$0xff]
  %v1016 = vld [vmem:[%s5 + $0x3f0] sm:$0xff]
  %v1017 = vld [vmem:[%s5 + $0x3f8] sm:$0xff]
  %v1018 = vld [vmem:[%s5 + $0x400] sm:$0xff]
  %v1019 = vld [vmem:[%s5 + $0x408] sm:$0xff]
  %v1020 = vld [vmem:[%s5 + $0x410] sm:$0xff]
  %v1021 = vld [vmem:[%s5 + $0x418] sm:$0xff]
  %v1022 = vld [vmem:[%s5 + $0x420] sm:$0xff]
  %v1023 = vld [vmem:[%s5 + $0x428] sm:$0xff]
  %v1024 = vld [vmem:[%s5 + $0x430] sm:$0xff]
  %v1025 = vld [vmem:[%s5 + $0x438] sm:$0xff]
  %v1026 = vld [vmem:[%s5 + $0x440] sm:$0xff]
  %v1027 = vld [vmem:[%s5 + $0x448] sm:$0xff]
  %v1028 = vld [vmem:[%s5 + $0x450] sm:$0xff]
  %v1029 = vld [vmem:[%s5 + $0x458] sm:$0xff]
  %v1030 = vld [vmem:[%s5 + $0x460] sm:$0xff]
  %v1031 = vld [vmem:[%s5 + $0x468] sm:$0xff]
  %v1032 = vld [vmem:[%s5 + $0x470] sm:$0xff]
  %v1033 = vld [vmem:[%s5 + $0x478] sm:$0xff]
  %v1034 = vld [vmem:[%s5 + $0x480] sm:$0xff]
  %v1035 = vld [vmem:[%s5 + $0x488] sm:$0xff]
  %v1036 = vld [vmem:[%s5 + $0x490] sm:$0xff]
  %v1037 = vld [vmem:[%s5 + $0x498] sm:$0xff]
  %v1038 = vld [vmem:[%s5 + $0x4a0] sm:$0xff]
  %v1039 = vld [vmem:[%s5 + $0x4a8] sm:$0xff]
  %v1040 = vld [vmem:[%s5 + $0x4b0] sm:$0xff]
  %v1041 = vld [vmem:[%s5 + $0x4b8] sm:$0xff]
  %v1042 = vld [vmem:[%s5 + $0x4c0] sm:$0xff]
  %v1043 = vld [vmem:[%s5 + $0x4c8] sm:$0xff]
  %v1044 = vld [vmem:[%s5 + $0x4d0] sm:$0xff]
  %v1045 = vld [vmem:[%s5 + $0x4d8] sm:$0xff]
  %v1046 = vld [vmem:[%s5 + $0x4e0] sm:$0xff]
  %v1047 = vld [vmem:[%s5 + $0x4e8] sm:$0xff]
  %v1048 = vld [vmem:[%s5 + $0x4f0] sm:$0xff]
  %v1049 = vld [vmem:[%s5 + $0x4f8] sm:$0xff]
  %v1050 = vld [vmem:[%s5 + $0x500] sm:$0xff]
  %v1051 = vld [vmem:[%s5 + $0x508] sm:$0xff]
  %v1052 = vld [vmem:[%s5 + $0x510] sm:$0xff]
  %v1053 = vld [vmem:[%s5 + $0x518] sm:$0xff]
  %v1054 = vld [vmem:[%s5 + $0x520] sm:$0xff]
  %v1055 = vld [vmem:[%s5 + $0x528] sm:$0xff]
  %v1056 = vld [vmem:[%s5 + $0x530] sm:$0xff]
  %v1057 = vld [vmem:[%s5 + $0x538] sm:$0xff]
  %v1058 = vld [vmem:[%s5 + $0x540] sm:$0xff]
  %v1059 = vld [vmem:[%s5 + $0x548] sm:$0xff]
  %v1060 = vld [vmem:[%s5 + $0x550] sm:$0xff]
  %v1061 = vld [vmem:[%s5 + $0x558] sm:$0xff]
  %v1062 = vld [vmem:[%s5 + $0x560] sm:$0xff]
  %v1063 = vld [vmem:[%s5 + $0x568] sm:$0xff]
  %v1064 = vld [vmem:[%s5 + $0x570] sm:$0xff]
  %v1065 = vld [vmem:[%s5 + $0x578] sm:$0xff]
  %v1066 = vld [vmem:[%s5 + $0x580] sm:$0xff]
  %v1067 = vld [vmem:[%s5 + $0x588] sm:$0xff]
  %v1068 = vld [vmem:[%s5 + $0x590] sm:$0xff]
  %v1069 = vld [vmem:[%s5 + $0x598] sm:$0xff]
  %v1070 = vld [vmem:[%s5 + $0x5a0] sm:$0xff]
  %v1071 = vld [vmem:[%s5 + $0x5a8] sm:$0xff]
  %v1072 = vld [vmem:[%s5 + $0x5b0] sm:$0xff]
  %v1073 = vld [vmem:[%s5 + $0x5b8] sm:$0xff]
  %v1074 = vld [vmem:[%s5 + $0x5c0] sm:$0xff]
  %v1075 = vld [vmem:[%s5 + $0x5c8] sm:$0xff]
  %v1076 = vld [vmem:[%s5 + $0x5d0] sm:$0xff]
  %v1077 = vld [vmem:[%s5 + $0x5d8] sm:$0xff]
  %v1078 = vld [vmem:[%s5 + $0x5e0] sm:$0xff]
  %v1079 = vld [vmem:[%s5 + $0x5e8] sm:$0xff]
  %v1080 = vld [vmem:[%s5 + $0x5f0] sm:$0xff]
  %v1081 = vld [vmem:[%s5 + $0x5f8] sm:$0xff]
  %v1082 = vld [vmem:[%s5 + $0x600] sm:$0xff]
  %v1083 = vld [vmem:[%s5 + $0x608] sm:$0xff]
  %v1084 = vld [vmem:[%s5 + $0x610] sm:$0xff]
  %v1085 = vld [vmem:[%s5 + $0x618] sm:$0xff]
  %v1086 = vld [vmem:[%s5 + $0x620] sm:$0xff]
  %v1087 = vld [vmem:[%s5 + $0x628] sm:$0xff]
  %v1088 = vld [vmem:[%s5 + $0x630] sm:$0xff]
  %v1089 = vld [vmem:[%s5 + $0x638] sm:$0xff]
  %v1090 = vld [vmem:[%s5 + $0x640] sm:$0xff]
  %v1091 = vld [vmem:[%s5 + $0x648] sm:$0xff]
  %v1092 = vld [vmem:[%s5 + $0x650] sm:$0xff]
  %v1093 = vld [vmem:[%s5 + $0x658] sm:$0xff]
  %v1094 = vld [vmem:[%s5 + $0x660] sm:$0xff]
  %v1095 = vld [vmem:[%s5 + $0x668] sm:$0xff]
  %v1096 = vld [vmem:[%s5 + $0x670] sm:$0xff]
  %v1097 = vld [vmem:[%s5 + $0x678] sm:$0xff]
  %v1098 = vld [vmem:[%s5 + $0x680] sm:$0xff]
  %v1099 = vld [vmem:[%s5 + $0x688] sm:$0xff]
  %v1100 = vld [vmem:[%s5 + $0x690] sm:$0xff]
  %v1101 = vld [vmem:[%s5 + $0x698] sm:$0xff]
  %v1102 = vld [vmem:[%s5 + $0x6a0] sm:$0xff]
  %v1103 = vld [vmem:[%s5 + $0x6a8] sm:$0xff]
  %v1104 = vld [vmem:[%s5 + $0x6b0] sm:$0xff]
  %v1105 = vld [vmem:[%s5 + $0x6b8] sm:$0xff]
  %v1106 = vld [vmem:[%s5 + $0x6c0] sm:$0xff]
  %v1107 = vld [vmem:[%s5 + $0x6c8] sm:$0xff]
  %v1108 = vld [vmem:[%s5 + $0x6d0] sm:$0xff]
  %v1109 = vld [vmem:[%s5 + $0x6d8] sm:$0xff]
  %v1110 = vld [vmem:[%s5 + $0x6e0] sm:$0xff]
  %v1111 = vld [vmem:[%s5 + $0x6e8] sm:$0xff]
  %v1112 = vld [vmem:[%s5 + $0x6f0] sm:$0xff]
  %v1113 = vld [vmem:[%s5 + $0x6f8] sm:$0xff]
  %v1114 = vld [vmem:[%s5 + $0x700] sm:$0xff]
  %v1115 = vld [vmem:[%s5 + $0x708] sm:$0xff]
  %v1116 = vld [vmem:[%s5 + $0x710] sm:$0xff]
  %v1117 = vld [vmem:[%s5 + $0x718] sm:$0xff]
  %v1118 = vld [vmem:[%s5 + $0x720] sm:$0xff]
  %v1119 = vld [vmem:[%s5 + $0x728] sm:$0xff]
  %v1120 = vld [vmem:[%s5 + $0x730] sm:$0xff]
  %v1121 = vld [vmem:[%s5 + $0x738] sm:$0xff]
  %v1122 = vld [vmem:[%s5 + $0x740] sm:$0xff]
  %v1123 = vld [vmem:[%s5 + $0x748] sm:$0xff]
  %v1124 = vld [vmem:[%s5 + $0x750] sm:$0xff]
  %v1125 = vld [vmem:[%s5 + $0x758] sm:$0xff]
  %v1126 = vld [vmem:[%s5 + $0x760] sm:$0xff]
  %v1127 = vld [vmem:[%s5 + $0x768] sm:$0xff]
  %v1128 = vld [vmem:[%s5 + $0x770] sm:$0xff]
  %v1129 = vld [vmem:[%s5 + $0x778] sm:$0xff]
  %v1130 = vld [vmem:[%s5 + $0x780] sm:$0xff]
  %v1131 = vld [vmem:[%s5 + $0x788] sm:$0xff]
  %v1132 = vld [vmem:[%s5 + $0x790] sm:$0xff]
  %v1133 = vld [vmem:[%s5 + $0x798] sm:$0xff]
  %v1134 = vld [vmem:[%s5 + $0x7a0] sm:$0xff]
  %v1135 = vld [vmem:[%s5 + $0x7a8] sm:$0xff]
  %v1136 = vld [vmem:[%s5 + $0x7b0] sm:$0xff]
  %v1137 = vld [vmem:[%s5 + $0x7b8] sm:$0xff]
  %v1138 = vld [vmem:[%s5 + $0x7c0] sm:$0xff]
  %v1139 = vld [vmem:[%s5 + $0x7c8] sm:$0xff]
  %v1140 = vld [vmem:[%s5 + $0x7d0] sm:$0xff]
  %v1141 = vld [vmem:[%s5 + $0x7d8] sm:$0xff]
  %v1142 = vld [vmem:[%s5 + $0x7e0] sm:$0xff]
  %v1143 = vld [vmem:[%s5 + $0x7e8] sm:$0xff]
  %v1144 = vld [vmem:[%s5 + $0x7f0] sm:$0xff]
  %v1145 = vld [vmem:[%s5 + $0x7f8] sm:$0xff]
  %v1146 = vld [vmem:[%s6] sm:$0x1]
  %v1148 = vlaneseq
  %v1149 = vshrl.u32 %v1148, 7
  %v1150 = vsub.s32 0, %v1149
  %v1151 = vrot.slane %v1146, %v1150
  %1153 = vmatprep.subr.mxu0 0.0
  %1154 = vmatpush1.msra.mxu0 %v890
  %1155 = vmatprep.subr.mxu0 0.0
  %1156 = vmatpush1.msra.mxu0 %v891
  %1157 = vmatprep.subr.mxu0 0.0
  %1158 = vmatpush1.msra.mxu0 %v892
  %1159 = vmatprep.subr.mxu0 0.0
  %1160 = vmatpush1.msra.mxu0 %v893
  %1161 = vmatprep.subr.mxu0 0.0
  %1162 = vmatpush1.msra.mxu0 %v894
  %1163 = vmatprep.subr.mxu0 0.0
  %1164 = vmatpush1.msra.mxu0 %v895
  %1165 = vmatprep.subr.mxu0 0.0
  %1166 = vmatpush1.msra.mxu0 %v896
  %1167 = vmatprep.subr.mxu0 0.0
  %1168 = vmatpush1.msra.mxu0 %v897
  %1169 = vmatprep.subr.mxu0 0.0
  %1170 = vmatpush1.msra.mxu0 %v898
  %1171 = vmatprep.subr.mxu0 0.0
  %1172 = vmatpush1.msra.mxu0 %v899
  %1173 = vmatprep.subr.mxu0 0.0
  %1174 = vmatpush1.msra.mxu0 %v900
  %1175 = vmatprep.subr.mxu0 0.0
  %1176 = vmatpush1.msra.mxu0 %v901
  %1177 = vmatprep.subr.mxu0 0.0
  %1178 = vmatpush1.msra.mxu0 %v902
  %1179 = vmatprep.subr.mxu0 0.0
  %1180 = vmatpush1.msra.mxu0 %v903
  %1181 = vmatprep.subr.mxu0 0.0
  %1182 = vmatpush1.msra.mxu0 %v904
  %1183 = vmatprep.subr.mxu0 0.0
  %1184 = vmatpush1.msra.mxu0 %v905
  %1185 = vmatprep.subr.mxu0 0.0
  %1186 = vmatpush1.msra.mxu0 %v906
  %1187 = vmatprep.subr.mxu0 0.0
  %1188 = vmatpush1.msra.mxu0 %v907
  %1189 = vmatprep.subr.mxu0 0.0
  %1190 = vmatpush1.msra.mxu0 %v908
  %1191 = vmatprep.subr.mxu0 0.0
  %1192 = vmatpush1.msra.mxu0 %v909
  %1193 = vmatprep.subr.mxu0 0.0
  %1194 = vmatpush1.msra.mxu0 %v910
  %1195 = vmatprep.subr.mxu0 0.0
  %1196 = vmatpush1.msra.mxu0 %v911
  %1197 = vmatprep.subr.mxu0 0.0
  %1198 = vmatpush1.msra.mxu0 %v912
  %1199 = vmatprep.subr.mxu0 0.0
  %1200 = vmatpush1.msra.mxu0 %v913
  %1201 = vmatprep.subr.mxu0 0.0
  %1202 = vmatpush1.msra.mxu0 %v914
  %1203 = vmatprep.subr.mxu0 0.0
  %1204 = vmatpush1.msra.mxu0 %v915
  %1205 = vmatprep.subr.mxu0 0.0
  %1206 = vmatpush1.msra.mxu0 %v916
  %1207 = vmatprep.subr.mxu0 0.0
  %1208 = vmatpush1.msra.mxu0 %v917
  %1209 = vmatprep.subr.mxu0 0.0
  %1210 = vmatpush1.msra.mxu0 %v918
  %1211 = vmatprep.subr.mxu0 0.0
  %1212 = vmatpush1.msra.mxu0 %v919
  %1213 = vmatprep.subr.mxu0 0.0
  %1214 = vmatpush1.msra.mxu0 %v920
  %1215 = vmatprep.subr.mxu0 0.0
  %1216 = vmatpush1.msra.mxu0 %v921
  %1217 = vmatprep.mubr.f32.mxu0 %v859
  %1218 = vmatmul.mubr.f32.gmra.mrb[0].mxu0 %v858
  %v1219 = vpop.f32.mrb[0].mxu0
  %v1220 = vadd.f32 %v1151, %v1219
  %v1221 = vpop.f32.mrb[0].mxu0
  %1222 = vmatprep.mubr.f32.mxu0 %v875
  %1223 = vmatmul.mubr.f32.gmra.mrb[0].mxu0 %v874
  %v1224 = vpop.f32.mrb[0].mxu0
  %v1225 = vadd.f32 %v1151, %v1224
  %v1226 = vpop.f32.mrb[0].mxu0
  %1227 = vdwg.mxu0
  %1228 = vmatprep.subr.mxu0 0.0
  %1229 = vmatpush1.msra.mxu0 %v922
  %1230 = vmatprep.subr.mxu0 0.0
  %1231 = vmatpush1.msra.mxu0 %v923
  %1232 = vmatprep.subr.mxu0 0.0
  %1233 = vmatpush1.msra.mxu0 %v924
  %1234 = vmatprep.subr.mxu0 0.0
  %1235 = vmatpush1.msra.mxu0 %v925
  %1236 = vmatprep.subr.mxu0 0.0
  %1237 = vmatpush1.msra.mxu0 %v926
  %1238 = vmatprep.subr.mxu0 0.0
  %1239 = vmatpush1.msra.mxu0 %v927
  %1240 = vmatprep.subr.mxu0 0.0
  %1241 = vmatpush1.msra.mxu0 %v928
  %1242 = vmatprep.subr.mxu0 0.0
  %1243 = vmatpush1.msra.mxu0 %v929
  %1244 = vmatprep.subr.mxu0 0.0
  %1245 = vmatpush1.msra.mxu0 %v930
  %1246 = vmatprep.subr.mxu0 0.0
  %1247 = vmatpush1.msra.mxu0 %v931
  %1248 = vmatprep.subr.mxu0 0.0
  %1249 = vmatpush1.msra.mxu0 %v932
  %1250 = vmatprep.subr.mxu0 0.0
  %1251 = vmatpush1.msra.mxu0 %v933
  %1252 = vmatprep.subr.mxu0 0.0
  %1253 = vmatpush1.msra.mxu0 %v934
  %1254 = vmatprep.subr.mxu0 0.0
  %1255 = vmatpush1.msra.mxu0 %v935
  %1256 = vmatprep.subr.mxu0 0.0
  %1257 = vmatpush1.msra.mxu0 %v936
  %1258 = vmatprep.subr.mxu0 0.0
  %1259 = vmatpush1.msra.mxu0 %v937
  %1260 = vmatprep.subr.mxu0 0.0
  %1261 = vmatpush1.msra.mxu0 %v938
  %1262 = vmatprep.subr.mxu0 0.0
  %1263 = vmatpush1.msra.mxu0 %v939
  %1264 = vmatprep.subr.mxu0 0.0
  %1265 = vmatpush1.msra.mxu0 %v940
  %1266 = vmatprep.subr.mxu0 0.0
  %1267 = vmatpush1.msra.mxu0 %v941
  %1268 = vmatprep.subr.mxu0 0.0
  %1269 = vmatpush1.msra.mxu0 %v942
  %1270 = vmatprep.subr.mxu0 0.0
  %1271 = vmatpush1.msra.mxu0 %v943
  %1272 = vmatprep.subr.mxu0 0.0
  %1273 = vmatpush1.msra.mxu0 %v944
  %1274 = vmatprep.subr.mxu0 0.0
  %1275 = vmatpush1.msra.mxu0 %v945
  %1276 = vmatprep.subr.mxu0 0.0
  %1277 = vmatpush1.msra.mxu0 %v946
  %1278 = vmatprep.subr.mxu0 0.0
  %1279 = vmatpush1.msra.mxu0 %v947
  %1280 = vmatprep.subr.mxu0 0.0
  %1281 = vmatpush1.msra.mxu0 %v948
  %1282 = vmatprep.subr.mxu0 0.0
  %1283 = vmatpush1.msra.mxu0 %v949
  %1284 = vmatprep.subr.mxu0 0.0
  %1285 = vmatpush1.msra.mxu0 %v950
  %1286 = vmatprep.subr.mxu0 0.0
  %1287 = vmatpush1.msra.mxu0 %v951
  %1288 = vmatprep.subr.mxu0 0.0
  %1289 = vmatpush1.msra.mxu0 %v952
  %1290 = vmatprep.subr.mxu0 0.0
  %1291 = vmatpush1.msra.mxu0 %v953
  %1292 = vmatprep.mubr.f32.mxu0 %v861
  %1293 = vmatmul.mubr.f32.gmra.mrb[0].mxu0 %v860
  %v1294 = vpop.f32.mrb[0].mxu0
  %v1295 = vadd.f32 %v1220, %v1294
  %v1296 = vpop.f32.mrb[0].mxu0
  %1297 = vmatprep.mubr.f32.mxu0 %v877
  %1298 = vmatmul.mubr.f32.gmra.mrb[0].mxu0 %v876
  %v1299 = vpop.f32.mrb[0].mxu0
  %v1300 = vadd.f32 %v1225, %v1299
  %v1301 = vpop.f32.mrb[0].mxu0
  %1302 = vdwg.mxu0
  %1303 = vmatprep.subr.mxu0 0.0
  %1304 = vmatpush1.msra.mxu0 %v954
  %1305 = vmatprep.subr.mxu0 0.0
  %1306 = vmatpush1.msra.mxu0 %v955
  %1307 = vmatprep.subr.mxu0 0.0
  %1308 = vmatpush1.msra.mxu0 %v956
  %1309 = vmatprep.subr.mxu0 0.0
  %1310 = vmatpush1.msra.mxu0 %v957
  %1311 = vmatprep.subr.mxu0 0.0
  %1312 = vmatpush1.msra.mxu0 %v958
  %1313 = vmatprep.subr.mxu0 0.0
  %1314 = vmatpush1.msra.mxu0 %v959
  %1315 = vmatprep.subr.mxu0 0.0
  %1316 = vmatpush1.msra.mxu0 %v960
  %1317 = vmatprep.subr.mxu0 0.0
  %1318 = vmatpush1.msra.mxu0 %v961
  %1319 = vmatprep.subr.mxu0 0.0
  %1320 = vmatpush1.msra.mxu0 %v962
  %1321 = vmatprep.subr.mxu0 0.0
  %1322 = vmatpush1.msra.mxu0 %v963
  %1323 = vmatprep.subr.mxu0 0.0
  %1324 = vmatpush1.msra.mxu0 %v964
  %1325 = vmatprep.subr.mxu0 0.0
  %1326 = vmatpush1.msra.mxu0 %v965
  %1327 = vmatprep.subr.mxu0 0.0
  %1328 = vmatpush1.msra.mxu0 %v966
  %1329 = vmatprep.subr.mxu0 0.0
  %1330 = vmatpush1.msra.mxu0 %v967
  %1331 = vmatprep.subr.mxu0 0.0
  %1332 = vmatpush1.msra.mxu0 %v968
  %1333 = vmatprep.subr.mxu0 0.0
  %1334 = vmatpush1.msra.mxu0 %v969
  %1335 = vmatprep.subr.mxu0 0.0
  %1336 = vmatpush1.msra.mxu0 %v970
  %1337 = vmatprep.subr.mxu0 0.0
  %1338 = vmatpush1.msra.mxu0 %v971
  %1339 = vmatprep.subr.mxu0 0.0
  %1340 = vmatpush1.msra.mxu0 %v972
  %1341 = vmatprep.subr.mxu0 0.0
  %1342 = vmatpush1.msra.mxu0 %v973
  %1343 = vmatprep.subr.mxu0 0.0
  %1344 = vmatpush1.msra.mxu0 %v974
  %1345 = vmatprep.subr.mxu0 0.0
  %1346 = vmatpush1.msra.mxu0 %v975
  %1347 = vmatprep.subr.mxu0 0.0
  %1348 = vmatpush1.msra.mxu0 %v976
  %1349 = vmatprep.subr.mxu0 0.0
  %1350 = vmatpush1.msra.mxu0 %v977
  %1351 = vmatprep.subr.mxu0 0.0
  %1352 = vmatpush1.msra.mxu0 %v978
  %1353 = vmatprep.subr.mxu0 0.0
  %1354 = vmatpush1.msra.mxu0 %v979
  %1355 = vmatprep.subr.mxu0 0.0
  %1356 = vmatpush1.msra.mxu0 %v980
  %1357 = vmatprep.subr.mxu0 0.0
  %1358 = vmatpush1.msra.mxu0 %v981
  %1359 = vmatprep.subr.mxu0 0.0
  %1360 = vmatpush1.msra.mxu0 %v982
  %1361 = vmatprep.subr.mxu0 0.0
  %1362 = vmatpush1.msra.mxu0 %v983
  %1363 = vmatprep.subr.mxu0 0.0
  %1364 = vmatpush1.msra.mxu0 %v984
  %1365 = vmatprep.subr.mxu0 0.0
  %1366 = vmatpush1.msra.mxu0 %v985
  %1367 = vmatprep.mubr.f32.mxu0 %v863
  %1368 = vmatmul.mubr.f32.gmra.mrb[0].mxu0 %v862
  %v1369 = vpop.f32.mrb[0].mxu0
  %v1370 = vadd.f32 %v1295, %v1369
  %v1371 = vpop.f32.mrb[0].mxu0
  %1372 = vmatprep.mubr.f32.mxu0 %v879
  %1373 = vmatmul.mubr.f32.gmra.mrb[0].mxu0 %v878
  %v1374 = vpop.f32.mrb[0].mxu0
  %v1375 = vadd.f32 %v1300, %v1374
  %v1376 = vpop.f32.mrb[0].mxu0
  %1377 = vdwg.mxu0
  %1378 = vmatprep.subr.mxu0 0.0
  %1379 = vmatpush1.msra.mxu0 %v986
  %1380 = vmatprep.subr.mxu0 0.0
  %1381 = vmatpush1.msra.mxu0 %v987
  %1382 = vmatprep.subr.mxu0 0.0
  %1383 = vmatpush1.msra.mxu0 %v988
  %1384 = vmatprep.subr.mxu0 0.0
  %1385 = vmatpush1.msra.mxu0 %v989
  %1386 = vmatprep.subr.mxu0 0.0
  %1387 = vmatpush1.msra.mxu0 %v990
  %1388 = vmatprep.subr.mxu0 0.0
  %1389 = vmatpush1.msra.mxu0 %v991
  %1390 = vmatprep.subr.mxu0 0.0
  %1391 = vmatpush1.msra.mxu0 %v992
  %1392 = vmatprep.subr.mxu0 0.0
  %1393 = vmatpush1.msra.mxu0 %v993
  %1394 = vmatprep.subr.mxu0 0.0
  %1395 = vmatpush1.msra.mxu0 %v994
  %1396 = vmatprep.subr.mxu0 0.0
  %1397 = vmatpush1.msra.mxu0 %v995
  %1398 = vmatprep.subr.mxu0 0.0
  %1399 = vmatpush1.msra.mxu0 %v996
  %1400 = vmatprep.subr.mxu0 0.0
  %1401 = vmatpush1.msra.mxu0 %v997
  %1402 = vmatprep.subr.mxu0 0.0
  %1403 = vmatpush1.msra.mxu0 %v998
  %1404 = vmatprep.subr.mxu0 0.0
  %1405 = vmatpush1.msra.mxu0 %v999
  %1406 = vmatprep.subr.mxu0 0.0
  %1407 = vmatpush1.msra.mxu0 %v1000
  %1408 = vmatprep.subr.mxu0 0.0
  %1409 = vmatpush1.msra.mxu0 %v1001
  %1410 = vmatprep.subr.mxu0 0.0
  %1411 = vmatpush1.msra.mxu0 %v1002
  %1412 = vmatprep.subr.mxu0 0.0
  %1413 = vmatpush1.msra.mxu0 %v1003
  %1414 = vmatprep.subr.mxu0 0.0
  %1415 = vmatpush1.msra.mxu0 %v1004
  %1416 = vmatprep.subr.mxu0 0.0
  %1417 = vmatpush1.msra.mxu0 %v1005
  %1418 = vmatprep.subr.mxu0 0.0
  %1419 = vmatpush1.msra.mxu0 %v1006
  %1420 = vmatprep.subr.mxu0 0.0
  %1421 = vmatpush1.msra.mxu0 %v1007
  %1422 = vmatprep.subr.mxu0 0.0
  %1423 = vmatpush1.msra.mxu0 %v1008
  %1424 = vmatprep.subr.mxu0 0.0
  %1425 = vmatpush1.msra.mxu0 %v1009
  %1426 = vmatprep.subr.mxu0 0.0
  %1427 = vmatpush1.msra.mxu0 %v1010
  %1428 = vmatprep.subr.mxu0 0.0
  %1429 = vmatpush1.msra.mxu0 %v1011
  %1430 = vmatprep.subr.mxu0 0.0
  %1431 = vmatpush1.msra.mxu0 %v1012
  %1432 = vmatprep.subr.mxu0 0.0
  %1433 = vmatpush1.msra.mxu0 %v1013
  %1434 = vmatprep.subr.mxu0 0.0
  %1435 = vmatpush1.msra.mxu0 %v1014
  %1436 = vmatprep.subr.mxu0 0.0
  %1437 = vmatpush1.msra.mxu0 %v1015
  %1438 = vmatprep.subr.mxu0 0.0
  %1439 = vmatpush1.msra.mxu0 %v1016
  %1440 = vmatprep.subr.mxu0 0.0
  %1441 = vmatpush1.msra.mxu0 %v1017
  %1442 = vmatprep.mubr.f32.mxu0 %v865
  %1443 = vmatmul.mubr.f32.gmra.mrb[0].mxu0 %v864
  %v1444 = vpop.f32.mrb[0].mxu0
  %v1445 = vadd.f32 %v1370, %v1444
  %v1446 = vpop.f32.mrb[0].mxu0
  %1447 = vmatprep.mubr.f32.mxu0 %v881
  %1448 = vmatmul.mubr.f32.gmra.mrb[0].mxu0 %v880
  %v1449 = vpop.f32.mrb[0].mxu0
  %v1450 = vadd.f32 %v1375, %v1449
  %v1451 = vpop.f32.mrb[0].mxu0
  %1452 = vdwg.mxu0
  %1453 = vmatprep.subr.mxu0 0.0
  %1454 = vmatpush1.msra.mxu0 %v1018
  %1455 = vmatprep.subr.mxu0 0.0
  %1456 = vmatpush1.msra.mxu0 %v1019
  %1457 = vmatprep.subr.mxu0 0.0
  %1458 = vmatpush1.msra.mxu0 %v1020
  %1459 = vmatprep.subr.mxu0 0.0
  %1460 = vmatpush1.msra.mxu0 %v1021
  %1461 = vmatprep.subr.mxu0 0.0
  %1462 = vmatpush1.msra.mxu0 %v1022
  %1463 = vmatprep.subr.mxu0 0.0
  %1464 = vmatpush1.msra.mxu0 %v1023
  %1465 = vmatprep.subr.mxu0 0.0
  %1466 = vmatpush1.msra.mxu0 %v1024
  %1467 = vmatprep.subr.mxu0 0.0
  %1468 = vmatpush1.msra.mxu0 %v1025
  %1469 = vmatprep.subr.mxu0 0.0
  %1470 = vmatpush1.msra.mxu0 %v1026
  %1471 = vmatprep.subr.mxu0 0.0
  %1472 = vmatpush1.msra.mxu0 %v1027
  %1473 = vmatprep.subr.mxu0 0.0
  %1474 = vmatpush1.msra.mxu0 %v1028
  %1475 = vmatprep.subr.mxu0 0.0
  %1476 = vmatpush1.msra.mxu0 %v1029
  %1477 = vmatprep.subr.mxu0 0.0
  %1478 = vmatpush1.msra.mxu0 %v1030
  %1479 = vmatprep.subr.mxu0 0.0
  %1480 = vmatpush1.msra.mxu0 %v1031
  %1481 = vmatprep.subr.mxu0 0.0
  %1482 = vmatpush1.msra.mxu0 %v1032
  %1483 = vmatprep.subr.mxu0 0.0
  %1484 = vmatpush1.msra.mxu0 %v1033
  %1485 = vmatprep.subr.mxu0 0.0
  %1486 = vmatpush1.msra.mxu0 %v1034
  %1487 = vmatprep.subr.mxu0 0.0
  %1488 = vmatpush1.msra.mxu0 %v1035
  %1489 = vmatprep.subr.mxu0 0.0
  %1490 = vmatpush1.msra.mxu0 %v1036
  %1491 = vmatprep.subr.mxu0 0.0
  %1492 = vmatpush1.msra.mxu0 %v1037
  %1493 = vmatprep.subr.mxu0 0.0
  %1494 = vmatpush1.msra.mxu0 %v1038
  %1495 = vmatprep.subr.mxu0 0.0
  %1496 = vmatpush1.msra.mxu0 %v1039
  %1497 = vmatprep.subr.mxu0 0.0
  %1498 = vmatpush1.msra.mxu0 %v1040
  %1499 = vmatprep.subr.mxu0 0.0
  %1500 = vmatpush1.msra.mxu0 %v1041
  %1501 = vmatprep.subr.mxu0 0.0
  %1502 = vmatpush1.msra.mxu0 %v1042
  %1503 = vmatprep.subr.mxu0 0.0
  %1504 = vmatpush1.msra.mxu0 %v1043
  %1505 = vmatprep.subr.mxu0 0.0
  %1506 = vmatpush1.msra.mxu0 %v1044
  %1507 = vmatprep.subr.mxu0 0.0
  %1508 = vmatpush1.msra.mxu0 %v1045
  %1509 = vmatprep.subr.mxu0 0.0
  %1510 = vmatpush1.msra.mxu0 %v1046
  %1511 = vmatprep.subr.mxu0 0.0
  %1512 = vmatpush1.msra.mxu0 %v1047
  %1513 = vmatprep.subr.mxu0 0.0
  %1514 = vmatpush1.msra.mxu0 %v1048
  %1515 = vmatprep.subr.mxu0 0.0
  %1516 = vmatpush1.msra.mxu0 %v1049
  %1517 = vmatprep.mubr.f32.mxu0 %v867
  %1518 = vmatmul.mubr.f32.gmra.mrb[0].mxu0 %v866
  %v1519 = vpop.f32.mrb[0].mxu0
  %v1520 = vadd.f32 %v1445, %v1519
  %v1521 = vpop.f32.mrb[0].mxu0
  %1522 = vmatprep.mubr.f32.mxu0 %v883
  %1523 = vmatmul.mubr.f32.gmra.mrb[0].mxu0 %v882
  %v1524 = vpop.f32.mrb[0].mxu0
  %v1525 = vadd.f32 %v1450, %v1524
  %v1526 = vpop.f32.mrb[0].mxu0
  %1527 = vdwg.mxu0
  %1528 = vmatprep.subr.mxu0 0.0
  %1529 = vmatpush1.msra.mxu0 %v1050
  %1530 = vmatprep.subr.mxu0 0.0
  %1531 = vmatpush1.msra.mxu0 %v1051
  %1532 = vmatprep.subr.mxu0 0.0
  %1533 = vmatpush1.msra.mxu0 %v1052
  %1534 = vmatprep.subr.mxu0 0.0
  %1535 = vmatpush1.msra.mxu0 %v1053
  %1536 = vmatprep.subr.mxu0 0.0
  %1537 = vmatpush1.msra.mxu0 %v1054
  %1538 = vmatprep.subr.mxu0 0.0
  %1539 = vmatpush1.msra.mxu0 %v1055
  %1540 = vmatprep.subr.mxu0 0.0
  %1541 = vmatpush1.msra.mxu0 %v1056
  %1542 = vmatprep.subr.mxu0 0.0
  %1543 = vmatpush1.msra.mxu0 %v1057
  %1544 = vmatprep.subr.mxu0 0.0
  %1545 = vmatpush1.msra.mxu0 %v1058
  %1546 = vmatprep.subr.mxu0 0.0
  %1547 = vmatpush1.msra.mxu0 %v1059
  %1548 = vmatprep.subr.mxu0 0.0
  %1549 = vmatpush1.msra.mxu0 %v1060
  %1550 = vmatprep.subr.mxu0 0.0
  %1551 = vmatpush1.msra.mxu0 %v1061
  %1552 = vmatprep.subr.mxu0 0.0
  %1553 = vmatpush1.msra.mxu0 %v1062
  %1554 = vmatprep.subr.mxu0 0.0
  %1555 = vmatpush1.msra.mxu0 %v1063
  %1556 = vmatprep.subr.mxu0 0.0
  %1557 = vmatpush1.msra.mxu0 %v1064
  %1558 = vmatprep.subr.mxu0 0.0
  %1559 = vmatpush1.msra.mxu0 %v1065
  %1560 = vmatprep.subr.mxu0 0.0
  %1561 = vmatpush1.msra.mxu0 %v1066
  %1562 = vmatprep.subr.mxu0 0.0
  %1563 = vmatpush1.msra.mxu0 %v1067
  %1564 = vmatprep.subr.mxu0 0.0
  %1565 = vmatpush1.msra.mxu0 %v1068
  %1566 = vmatprep.subr.mxu0 0.0
  %1567 = vmatpush1.msra.mxu0 %v1069
  %1568 = vmatprep.subr.mxu0 0.0
  %1569 = vmatpush1.msra.mxu0 %v1070
  %1570 = vmatprep.subr.mxu0 0.0
  %1571 = vmatpush1.msra.mxu0 %v1071
  %1572 = vmatprep.subr.mxu0 0.0
  %1573 = vmatpush1.msra.mxu0 %v1072
  %1574 = vmatprep.subr.mxu0 0.0
  %1575 = vmatpush1.msra.mxu0 %v1073
  %1576 = vmatprep.subr.mxu0 0.0
  %1577 = vmatpush1.msra.mxu0 %v1074
  %1578 = vmatprep.subr.mxu0 0.0
  %1579 = vmatpush1.msra.mxu0 %v1075
  %1580 = vmatprep.subr.mxu0 0.0
  %1581 = vmatpush1.msra.mxu0 %v1076
  %1582 = vmatprep.subr.mxu0 0.0
  %1583 = vmatpush1.msra.mxu0 %v1077
  %1584 = vmatprep.subr.mxu0 0.0
  %1585 = vmatpush1.msra.mxu0 %v1078
  %1586 = vmatprep.subr.mxu0 0.0
  %1587 = vmatpush1.msra.mxu0 %v1079
  %1588 = vmatprep.subr.mxu0 0.0
  %1589 = vmatpush1.msra.mxu0 %v1080
  %1590 = vmatprep.subr.mxu0 0.0
  %1591 = vmatpush1.msra.mxu0 %v1081
  %1592 = vmatprep.mubr.f32.mxu0 %v869
  %1593 = vmatmul.mubr.f32.gmra.mrb[0].mxu0 %v868
  %v1594 = vpop.f32.mrb[0].mxu0
  %v1595 = vadd.f32 %v1520, %v1594
  %v1596 = vpop.f32.mrb[0].mxu0
  %1597 = vmatprep.mubr.f32.mxu0 %v885
  %1598 = vmatmul.mubr.f32.gmra.mrb[0].mxu0 %v884
  %v1599 = vpop.f32.mrb[0].mxu0
  %v1600 = vadd.f32 %v1525, %v1599
  %v1601 = vpop.f32.mrb[0].mxu0
  %1602 = vdwg.mxu0
  %1603 = vmatprep.subr.mxu0 0.0
  %1604 = vmatpush1.msra.mxu0 %v1082
  %1605 = vmatprep.subr.mxu0 0.0
  %1606 = vmatpush1.msra.mxu0 %v1083
  %1607 = vmatprep.subr.mxu0 0.0
  %1608 = vmatpush1.msra.mxu0 %v1084
  %1609 = vmatprep.subr.mxu0 0.0
  %1610 = vmatpush1.msra.mxu0 %v1085
  %1611 = vmatprep.subr.mxu0 0.0
  %1612 = vmatpush1.msra.mxu0 %v1086
  %1613 = vmatprep.subr.mxu0 0.0
  %1614 = vmatpush1.msra.mxu0 %v1087
  %1615 = vmatprep.subr.mxu0 0.0
  %1616 = vmatpush1.msra.mxu0 %v1088
  %1617 = vmatprep.subr.mxu0 0.0
  %1618 = vmatpush1.msra.mxu0 %v1089
  %1619 = vmatprep.subr.mxu0 0.0
  %1620 = vmatpush1.msra.mxu0 %v1090
  %1621 = vmatprep.subr.mxu0 0.0
  %1622 = vmatpush1.msra.mxu0 %v1091
  %1623 = vmatprep.subr.mxu0 0.0
  %1624 = vmatpush1.msra.mxu0 %v1092
  %1625 = vmatprep.subr.mxu0 0.0
  %1626 = vmatpush1.msra.mxu0 %v1093
  %1627 = vmatprep.subr.mxu0 0.0
  %1628 = vmatpush1.msra.mxu0 %v1094
  %1629 = vmatprep.subr.mxu0 0.0
  %1630 = vmatpush1.msra.mxu0 %v1095
  %1631 = vmatprep.subr.mxu0 0.0
  %1632 = vmatpush1.msra.mxu0 %v1096
  %1633 = vmatprep.subr.mxu0 0.0
  %1634 = vmatpush1.msra.mxu0 %v1097
  %1635 = vmatprep.subr.mxu0 0.0
  %1636 = vmatpush1.msra.mxu0 %v1098
  %1637 = vmatprep.subr.mxu0 0.0
  %1638 = vmatpush1.msra.mxu0 %v1099
  %1639 = vmatprep.subr.mxu0 0.0
  %1640 = vmatpush1.msra.mxu0 %v1100
  %1641 = vmatprep.subr.mxu0 0.0
  %1642 = vmatpush1.msra.mxu0 %v1101
  %1643 = vmatprep.subr.mxu0 0.0
  %1644 = vmatpush1.msra.mxu0 %v1102
  %1645 = vmatprep.subr.mxu0 0.0
  %1646 = vmatpush1.msra.mxu0 %v1103
  %1647 = vmatprep.subr.mxu0 0.0
  %1648 = vmatpush1.msra.mxu0 %v1104
  %1649 = vmatprep.subr.mxu0 0.0
  %1650 = vmatpush1.msra.mxu0 %v1105
  %1651 = vmatprep.subr.mxu0 0.0
  %1652 = vmatpush1.msra.mxu0 %v1106
  %1653 = vmatprep.subr.mxu0 0.0
  %1654 = vmatpush1.msra.mxu0 %v1107
  %1655 = vmatprep.subr.mxu0 0.0
  %1656 = vmatpush1.msra.mxu0 %v1108
  %1657 = vmatprep.subr.mxu0 0.0
  %1658 = vmatpush1.msra.mxu0 %v1109
  %1659 = vmatprep.subr.mxu0 0.0
  %1660 = vmatpush1.msra.mxu0 %v1110
  %1661 = vmatprep.subr.mxu0 0.0
  %1662 = vmatpush1.msra.mxu0 %v1111
  %1663 = vmatprep.subr.mxu0 0.0
  %1664 = vmatpush1.msra.mxu0 %v1112
  %1665 = vmatprep.subr.mxu0 0.0
  %1666 = vmatpush1.msra.mxu0 %v1113
  %1667 = vmatprep.mubr.f32.mxu0 %v871
  %1668 = vmatmul.mubr.f32.gmra.mrb[0].mxu0 %v870
  %v1669 = vpop.f32.mrb[0].mxu0
  %v1670 = vadd.f32 %v1595, %v1669
  %v1671 = vpop.f32.mrb[0].mxu0
  %1672 = vmatprep.mubr.f32.mxu0 %v887
  %1673 = vmatmul.mubr.f32.gmra.mrb[0].mxu0 %v886
  %v1674 = vpop.f32.mrb[0].mxu0
  %v1675 = vadd.f32 %v1600, %v1674
  %v1676 = vpop.f32.mrb[0].mxu0
  %1677 = vdwg.mxu0
  %1678 = vmatprep.subr.mxu0 0.0
  %1679 = vmatpush1.msra.mxu0 %v1114
  %1680 = vmatprep.subr.mxu0 0.0
  %1681 = vmatpush1.msra.mxu0 %v1115
  %1682 = vmatprep.subr.mxu0 0.0
  %1683 = vmatpush1.msra.mxu0 %v1116
  %1684 = vmatprep.subr.mxu0 0.0
  %1685 = vmatpush1.msra.mxu0 %v1117
  %1686 = vmatprep.subr.mxu0 0.0
  %1687 = vmatpush1.msra.mxu0 %v1118
  %1688 = vmatprep.subr.mxu0 0.0
  %1689 = vmatpush1.msra.mxu0 %v1119
  %1690 = vmatprep.subr.mxu0 0.0
  %1691 = vmatpush1.msra.mxu0 %v1120
  %1692 = vmatprep.subr.mxu0 0.0
  %1693 = vmatpush1.msra.mxu0 %v1121
  %1694 = vmatprep.subr.mxu0 0.0
  %1695 = vmatpush1.msra.mxu0 %v1122
  %1696 = vmatprep.subr.mxu0 0.0
  %1697 = vmatpush1.msra.mxu0 %v1123
  %1698 = vmatprep.subr.mxu0 0.0
  %1699 = vmatpush1.msra.mxu0 %v1124
  %1700 = vmatprep.subr.mxu0 0.0
  %1701 = vmatpush1.msra.mxu0 %v1125
  %1702 = vmatprep.subr.mxu0 0.0
  %1703 = vmatpush1.msra.mxu0 %v1126
  %1704 = vmatprep.subr.mxu0 0.0
  %1705 = vmatpush1.msra.mxu0 %v1127
  %1706 = vmatprep.subr.mxu0 0.0
  %1707 = vmatpush1.msra.mxu0 %v1128
  %1708 = vmatprep.subr.mxu0 0.0
  %1709 = vmatpush1.msra.mxu0 %v1129
  %1710 = vmatprep.subr.mxu0 0.0
  %1711 = vmatpush1.msra.mxu0 %v1130
  %1712 = vmatprep.subr.mxu0 0.0
  %1713 = vmatpush1.msra.mxu0 %v1131
  %1714 = vmatprep.subr.mxu0 0.0
  %1715 = vmatpush1.msra.mxu0 %v1132
  %1716 = vmatprep.subr.mxu0 0.0
  %1717 = vmatpush1.msra.mxu0 %v1133
  %1718 = vmatprep.subr.mxu0 0.0
  %1719 = vmatpush1.msra.mxu0 %v1134
  %1720 = vmatprep.subr.mxu0 0.0
  %1721 = vmatpush1.msra.mxu0 %v1135
  %1722 = vmatprep.subr.mxu0 0.0
  %1723 = vmatpush1.msra.mxu0 %v1136
  %1724 = vmatprep.subr.mxu0 0.0
  %1725 = vmatpush1.msra.mxu0 %v1137
  %1726 = vmatprep.subr.mxu0 0.0
  %1727 = vmatpush1.msra.mxu0 %v1138
  %1728 = vmatprep.subr.mxu0 0.0
  %1729 = vmatpush1.msra.mxu0 %v1139
  %1730 = vmatprep.subr.mxu0 0.0
  %1731 = vmatpush1.msra.mxu0 %v1140
  %1732 = vmatprep.subr.mxu0 0.0
  %1733 = vmatpush1.msra.mxu0 %v1141
  %1734 = vmatprep.subr.mxu0 0.0
  %1735 = vmatpush1.msra.mxu0 %v1142
  %1736 = vmatprep.subr.mxu0 0.0
  %1737 = vmatpush1.msra.mxu0 %v1143
  %1738 = vmatprep.subr.mxu0 0.0
  %1739 = vmatpush1.msra.mxu0 %v1144
  %1740 = vmatprep.subr.mxu0 0.0
  %1741 = vmatpush1.msra.mxu0 %v1145
  %1742 = vmatprep.mubr.f32.mxu0 %v873
  %1743 = vmatmul.mubr.f32.gmra.mrb[0].mxu0 %v872
  %v1744 = vpop.f32.mrb[0].mxu0
  %v1745 = vadd.f32 %v1670, %v1744
  %v1746 = vpop.f32.mrb[0].mxu0
  %1747 = vmatprep.mubr.f32.mxu0 %v889
  %1748 = vmatmul.mubr.f32.gmra.mrb[0].mxu0 %v888
  %v1749 = vpop.f32.mrb[0].mxu0
  %v1750 = vadd.f32 %v1675, %v1749
  %v1751 = vpop.f32.mrb[0].mxu0
  %1752 = vdwg.mxu0
  %v1753 = vadd.f32 %v26, %v1745
  %v1754 = vadd.f32 %v27, %v1750
  %1755 = vst.msk [vmem:[%s7] sm:$0xff] %vm28, %v1753
  %1756 = vst.msk [vmem:[%s7 + $0x8] sm:$0xff] %vm28, %v1754
  // Predicated region
  $region30: #{encoder_forward.8} parent=0 // pred_check
    _
  $region31: #{encoder_forward.8} parent=0 // pred_check_branch
    %1758 = sbr.rel (0) target = $region33
  $region32: #{encoder_forward.8} parent=0 // pred_region
    _
  $region33: #{encoder_forward.8} parent=0 // pred_fallthru
    _
  // Predicated region
  $region34: #{encoder_forward.8} parent=0 // pred_check
    _
  $region35: #{encoder_forward.8} parent=0 // pred_check_branch
    %1760 = sbr.rel (0) target = $region37
  $region36: #{encoder_forward.8} parent=0 // pred_region
    _
  $region37: #{encoder_forward.8} parent=0 // pred_fallthru
    _

// kernel: encoder_forward.11
$region0: #{encoder_forward.11}
  #allocation0 [shape = 'u32[]', space=smem, size = 0x4, offset = 0x4, fixed_abs, tag = 'smem constant byte address 0x4 - core index']
  #allocation1 [shape = 'u32[144,128]{1,0:T(1,128)}', space=vmem, size = 0x12000, scoped, tag = 'internal scratch']
  %s0 = inlined_call_operand.vmem [shape: f32[16,32], index: 0, kind: input, shape index: {}]
  %s1 = inlined_call_operand.vmem [shape: f32[1,32], index: 1, kind: input, shape index: {}]
  %s2 = inlined_call_operand.vmem [shape: f32[1,32], index: 2, kind: input, shape index: {}]
  %s3 = inlined_call_operand.hbm [shape: f32[16,32], index: 3, kind: output, shape index: {}]
  %s4 = sld [smem:[#allocation0]]
  $region22: #{encoder_forward.11} parent=0
    _
  %s6 = ssub.s32 1, %s4
  %s7 = scalar_select 0, %s6, %s4
  $region1: #{encoder_forward.11} parent=0
    #allocation2 [shape = 'u8[8192]{0}', space=vmem, size = 0x2000, scoped, tag = 'output window, operand 0, single buffered']
    #allocation3 [shape = 's32[1]{0}', space=sflag, size = 0x4, scoped, tag = 'scoped memory for encoder_forward.11']
    %8 = vsyncpa [#allocation3], 0
    // Predicated region
    $region2: #{encoder_forward.11} parent=1 // pred_check
      _
    $region3: #{encoder_forward.11} parent=1 // pred_check_branch
      %10 = sbr.rel (0) target = $region5
    $region4: #{encoder_forward.11} parent=1 // pred_region
      _
    $region5: #{encoder_forward.11} parent=1 // pred_fallthru
      _
    // Predicated region
    $region6: #{encoder_forward.11} parent=1 // pred_check
      _
    $region7: #{encoder_forward.11} parent=1 // pred_check_branch
      %12 = sbr.rel (0) target = $region9
    $region8: #{encoder_forward.11} parent=1 // pred_region
      _
    $region9: #{encoder_forward.11} parent=1 // pred_fallthru
      _
    // Predicated region
    $region10: #{encoder_forward.11} parent=1 // pred_check
      _
    $region11: #{encoder_forward.11} parent=1 // pred_check_branch
      %14 = sbr.rel (0) target = $region13
    $region12: #{encoder_forward.11} parent=1 // pred_region
      _
    $region13: #{encoder_forward.11} parent=1 // pred_fallthru
      _
    %v15 = vld [vmem:[%s0] sm:$0xff]
    %v16 = vld [vmem:[%s0 + $0x8] sm:$0xff]
    %vm17 = vcmask 261120
    %v18 = vsel %vm17, %v15, 0.0
    %19 = vadd.xlane.f32.xlu0 %v18
    %v20 = vpop.xlane.xlu0 %19
    %v21 = vsel %vm17, %v16, 0.0
    %22 = vadd.xlane.f32.xlu0 %v21
    %v23 = vpop.xlane.xlu0 %22
    %v24 = vrcp.pop 32.0
    %v25 = vmul.f32 %v20, %v24
    %v26 = vmul.f32 %v23, %v24
    %v27 = vsub.f32 %v15, %v25
    %v28 = vsub.f32 %v16, %v26
    %v29 = vmul.f32 %v27, %v27
    %v30 = vmul.f32 %v28, %v28
    %v31 = vsel %vm17, %v29, 0.0
    %32 = vadd.xlane.f32.xlu0 %v31
    %v33 = vpop.xlane.xlu0 %32
    %v34 = vsel %vm17, %v30, 0.0
    %35 = vadd.xlane.f32.xlu0 %v34
    %v36 = vpop.xlane.xlu0 %35
    %v37 = vmul.f32 %v33, 0.032258064
    %v38 = vmul.f32 %v36, 0.032258064
    %v39 = vld [vmem:[%s1] sm:$0x1]
    %v41 = vlaneseq
    %v42 = vshrl.u32 %v41, 7
    %v43 = vsub.s32 0, %v42
    %v44 = vrot.slane %v39, %v43
    %v46 = vmul.f32 %v44, %v27
    %v47 = vmul.f32 %v44, %v28
    %v48 = vrsqrt.pop %v37
    %v49 = vmul.f32 %v37, %v48
    %vm50 = vcmp.eq.f32.partialorder %v37, inf
    %v51 = vsel %vm50, %v37, %v49
    %vm52 = vcmp.eq.f32.partialorder %v37, 0.0
    %v53 = vand.u32 %v37, 2147483648
    %v54 = vsel %vm52, %v53, %v51
    %v55 = vrsqrt.pop %v38
    %v56 = vmul.f32 %v38, %v55
    %vm57 = vcmp.eq.f32.partialorder %v38, inf
    %v58 = vsel %vm57, %v38, %v56
    %vm59 = vcmp.eq.f32.partialorder %v38, 0.0
    %v60 = vand.u32 %v38, 2147483648
    %v61 = vsel %vm59, %v60, %v58
    %v62 = vadd.f32 %v54, 1e-06
    %v63 = vadd.f32 %v61, 1e-06
    %v64 = vrcp.pop %v62
    %v65 = vmul.f32 %v46, %v64
    %v66 = vrcp.pop %v63
    %v67 = vmul.f32 %v47, %v66
    %v68 = vld [vmem:[%s2] sm:$0x1]
    %v70 = vlaneseq
    %v71 = vshrl.u32 %v70, 7
    %v72 = vsub.s32 0, %v71
    %v73 = vrot.slane %v68, %v72
    %v75 = vadd.f32 %v65, %v73
    %v76 = vadd.f32 %v67, %v73
    %77 = vst.msk [vmem:[#allocation2] sm:$0xff] %vm17, %v75
    %78 = vst.msk [vmem:[#allocation2 + $0x8] sm:$0xff] %vm17, %v76
    // Predicated region
    $region14: #{encoder_forward.11} parent=1 // pred_check
      _
    $region15: #{encoder_forward.11} parent=1 // pred_check_branch
      %80 = sbr.rel (0) target = $region17
    $region16: #{encoder_forward.11} parent=1 // pred_region
      %s82 = ssub.s32 256, 256
      %83 = vsyncadd [#allocation3], %s82
      %s84 = sshll.u32 [#allocation2], 4
      %s85 = int_to_ptr.vmem [resolvable:$true] %s84
      %90 = dma.vmem_to_hbm [thread:$0]  %s85, 256, %s3, [#allocation3], 128, 128, 8
    $region17: #{encoder_forward.11} parent=1 // pred_fallthru
      _
    // Predicated region
    $region18: #{encoder_forward.11} parent=1 // pred_check
      _
    $region19: #{encoder_forward.11} parent=1 // pred_check_branch
      %92 = sbr.rel (0) target = $region21
    $region20: #{encoder_forward.11} parent=1 // pred_region
      %93 = dma.done [#allocation3], 256
    $region21: #{encoder_forward.11} parent=1 // pred_fallthru
      _
    %94 = vsyncpa [#allocation3], 1

</llo_original>
